<compile_context>
chip_gen: v7x
topology: tpu7x:2x2x1
jax: 0.10.0
libtpu: 0.0.40
codegen_flags: <defaults>
</compile_context>

<pallas_src>
import functools

import numpy as np
import jax
import jax.numpy as jnp
from jax import lax
from jax.experimental import pallas as pl
from jax.experimental.pallas import tpu as pltpu

F32 = jnp.float32
NEG_FILL = -1e10          # torch masked_fill_(mask, -10000000000.0)


def _round_up(x, m):
    return ((x + m - 1) // m) * m


# --------------------------------------------------------------------------
# fused kernel: attention + gated recurrence (optionally bidirectional)
# --------------------------------------------------------------------------
def attgru_kernel(*refs, bidirectional):
    if bidirectional:
        (q_ref, ctx_ref, ctxf_ref, mask_ref,
         h0f_ref, winf_ref, binf_ref, uhf_ref, buf_ref,
         h0b_ref, winb_ref, binb_ref, uhb_ref, bub_ref,
         outf_ref, outb_ref, scores_ref,
         cpf_scr, cpb_scr, gates_scr, hf_scr, hb_scr) = refs
    else:
        (q_ref, ctx_ref, ctxf_ref, mask_ref,
         h0f_ref, winf_ref, binf_ref, uhf_ref, buf_ref,
         outf_ref, scores_ref,
         cpf_scr, gates_scr, hf_scr) = refs

    S, Bp, Hp = ctx_ref.shape

    # ---- attention scores: softmax_s( q . ctx_s ) with mask ----------------
    q = q_ref[...]                                          # (Bp, Hp)
    ctx = ctx_ref[...]                                      # (S, Bp, Hp)
    logits = jnp.sum(ctx * q[None, :, :], axis=-1, keepdims=True)   # (S,Bp,1)
    logits = jnp.where(mask_ref[...] > 0, NEG_FILL, logits)
    mx = jnp.max(logits, axis=0, keepdims=True)             # (1,Bp,1)
    e = jnp.exp(logits - mx)
    denom = jnp.sum(e, axis=0, keepdims=True)
    scores = e * pl.reciprocal(denom, approx=True)          # (S,Bp,1)
    scores_ref[...] = scores
    # broadcast gates across the hidden lanes once (hoisted out of the loop)
    gates_scr[...] = jnp.broadcast_to(scores, (S, Bp, Hp))

    # ---- input projections for all timesteps: one matmul per direction -----
    ctxf = ctxf_ref[...]                                    # (S*Bp, Hp)
    cpf_scr[...] = (jnp.dot(ctxf, winf_ref[...], preferred_element_type=F32)
                    + binf_ref[...])                        # (S*Bp, 2Hp)
    if bidirectional:
        cpb_scr[...] = (jnp.dot(ctxf, winb_ref[...], preferred_element_type=F32)
                        + binb_ref[...])

    # hoist bias broadcasts out of the recurrence
    buf_b = jnp.broadcast_to(buf_ref[...], (Bp, Hp))
    if bidirectional:
        bub_b = jnp.broadcast_to(bub_ref[...], (Bp, Hp))

    hf_scr[...] = h0f_ref[...]
    if bidirectional:
        hb_scr[...] = h0b_ref[...]

    def cell(cp, hprev, uh_ref, bu_b, g):
        # single fused hidden matmul per step: h @ [Ur | U]  -> (Bp, 2Hp)
        hp_ = jnp.dot(hprev, uh_ref[...], preferred_element_type=F32)
        r = jax.nn.sigmoid(cp[:, :Hp] + hp_[:, :Hp])
        htil = jnp.tanh(cp[:, Hp:] + r * (hp_[:, Hp:] + bu_b))
        return g * htil + (1.0 - g) * hprev

    def step(i, carry):
        off_f = pl.multiple_of(i * Bp, Bp)
        cp_f = cpf_scr[pl.ds(off_f, Bp), :]                 # (Bp, 2Hp)
        g_f = gates_scr[i]                                  # (Bp, Hp)
        hf_scr[...] = cell(cp_f, hf_scr[...], uhf_ref, buf_b, g_f)
        if bidirectional:
            t = S - 1 - i
            off_b = pl.multiple_of(t * Bp, Bp)
            cp_b = cpb_scr[pl.ds(off_b, Bp), :]
            g_b = gates_scr[t]
            hb_scr[...] = cell(cp_b, hb_scr[...], uhb_ref, bub_b, g_b)
        return carry

    lax.fori_loop(0, S, step, 0, unroll=True)

    outf_ref[...] = hf_scr[...]
    if bidirectional:
        outb_ref[...] = hb_scr[...]


# --------------------------------------------------------------------------
# wrapper: padding / weight fusion / layout plumbing (pure JAX glue)
# --------------------------------------------------------------------------
def attgru_forward(params, query, context, init_hidden, attn_mask=None,
                   bidirectional=False):
    """query (B,1,H), context (B,S,H), init_hidden (nd,B,H), attn_mask (B,1,S) bool."""
    B, _, H = query.shape
    S = context.shape[1]
    Hp = _round_up(H, 128)
    Bp = _round_up(B, 8)

    def pad2(x, r, c):
        return jnp.pad(x.astype(F32), ((0, r - x.shape[0]), (0, c - x.shape[1])))

    q_p = pad2(query[:, 0, :], Bp, Hp)                          # (Bp, Hp)
    ctx_tm = jnp.transpose(context, (1, 0, 2)).astype(F32)      # (S, B, H)
    ctx_tm = jnp.pad(ctx_tm, ((0, 0), (0, Bp - B), (0, Hp - H)))  # (S, Bp, Hp)
    ctx_flat = ctx_tm.reshape(S * Bp, Hp)                       # (S*Bp, Hp)

    if attn_mask is None:
        mask_sb1 = jnp.zeros((S, Bp, 1), jnp.int32)
    else:
        m = jnp.transpose(attn_mask.astype(jnp.int32), (2, 0, 1))  # (S, B, 1)
        mask_sb1 = jnp.pad(m, ((0, 0), (0, Bp - B), (0, 0)))

    def prep_dir(p, h0):
        # fused input weight [Wr | W] and its bias [bWr + bUr | bW]
        win = jnp.concatenate([pad2(p["wr"], Hp, Hp), pad2(p["w"], Hp, Hp)], axis=1)
        bin_ = jnp.concatenate([pad2((p["bwr"] + p["bur"])[None, :], 1, Hp),
                                pad2(p["bw"][None, :], 1, Hp)], axis=1)
        # fused hidden weight [Ur | U]; bU stays inside r*(.) per torch formula
        uh = jnp.concatenate([pad2(p["ur"], Hp, Hp), pad2(p["u"], Hp, Hp)], axis=1)
        bu = pad2(p["bu"][None, :], 1, Hp)
        h0p = pad2(h0, Bp, Hp)
        return h0p, win, bin_, uh, bu

    args = [q_p, ctx_tm, ctx_flat, mask_sb1]
    args += list(prep_dir(params["fwd"], init_hidden[0]))
    if bidirectional:
        args += list(prep_dir(params["bwd"], init_hidden[1]))

    out_shapes = [jax.ShapeDtypeStruct((Bp, Hp), F32)]
    if bidirectional:
        out_shapes.append(jax.ShapeDtypeStruct((Bp, Hp), F32))
    out_shapes.append(jax.ShapeDtypeStruct((S, Bp, 1), F32))

    if bidirectional:
        scratch = [pltpu.VMEM((S * Bp, 2 * Hp), F32),
                   pltpu.VMEM((S * Bp, 2 * Hp), F32),
                   pltpu.VMEM((S, Bp, Hp), F32),
                   pltpu.VMEM((Bp, Hp), F32),
                   pltpu.VMEM((Bp, Hp), F32)]
    else:
        scratch = [pltpu.VMEM((S * Bp, 2 * Hp), F32),
                   pltpu.VMEM((S, Bp, Hp), F32),
                   pltpu.VMEM((Bp, Hp), F32)]

    outs = pl.pallas_call(
        functools.partial(attgru_kernel, bidirectional=bidirectional),
        out_shape=tuple(out_shapes),
        in_specs=[pl.BlockSpec(memory_space=pltpu.MemorySpace.VMEM)] * len(args),
        out_specs=tuple(pl.BlockSpec(memory_space=pltpu.MemorySpace.VMEM)
                        for _ in out_shapes),
        scratch_shapes=scratch,
        compiler_params=pltpu.CompilerParams(vmem_limit_bytes=32 * 1024 * 1024),
    )(*args)

    if bidirectional:
        hf_p, hb_p, scores_p = outs
        out = jnp.concatenate([hf_p[:B, :H], hb_p[:B, :H]], axis=-1)[:, None, :]
    else:
        hf_p, scores_p = outs
        out = hf_p[:B, :H][:, None, :]
    scores = jnp.transpose(scores_p[:, :B, :], (1, 2, 0))       # (B, 1, S)
    return out, scores


# --------------------------------------------------------------------------
# pure-JAX reference (correctness check only)
# --------------------------------------------------------------------------
def ref_forward(params, query, context, init_hidden, attn_mask=None,
                bidirectional=False):
    S = context.shape[1]
    attn = jnp.einsum('bqh,bsh->bqs', query, context)
    if attn_mask is not None:
        attn = jnp.where(attn_mask, NEG_FILL, attn)
    scores = jax.nn.softmax(attn, axis=-1)                      # (B, 1, S)
    inp = jnp.transpose(context, (1, 0, 2))                     # (S, B, H)
    gates = jnp.transpose(scores, (2, 0, 1))                    # (S, B, 1)

    def cell(p, c, hprev, g):
        r = jax.nn.sigmoid(c @ p["wr"] + p["bwr"] + hprev @ p["ur"] + p["bur"])
        htil = jnp.tanh(c @ p["w"] + p["bw"] + r * (hprev @ p["u"] + p["bu"]))
        return g * htil + (1.0 - g) * hprev

    h = init_hidden[0]
    hb = init_hidden[1] if bidirectional else None
    for i in range(S):
        h = cell(params["fwd"], inp[i], h, gates[i])
        if bidirectional:
            t = S - 1 - i
            hb = cell(params["bwd"], inp[t], hb, gates[t])
    if bidirectional:
        out = jnp.concatenate([h, hb], axis=-1)[:, None, :]
    else:
        out = h[:, None, :]
    return out, scores


# --------------------------------------------------------------------------
# deterministic synthetic parameters (weights stored (in, out); biases (H,))
# --------------------------------------------------------------------------
def init_params(key, H, bidirectional):
    ks = iter(jax.random.split(key, 32))

    def mat(shape, scale):
        return jax.random.normal(next(ks), shape, F32) * scale

    def cell_params():
        s = 1.0 / np.sqrt(H)
        return dict(wr=mat((H, H), s), ur=mat((H, H), s),
                    w=mat((H, H), s), u=mat((H, H), s),
                    bwr=mat((H,), 0.1), bur=mat((H,), 0.1),
                    bw=mat((H,), 0.1), bu=mat((H,), 0.1))

    p = dict(fwd=cell_params())
    if bidirectional:
        p["bwd"] = cell_params()
    return p


if __name__ == "__main__":
    # AttGRU hard-codes AttnGRUCell(100, 100) => hidden size H = 100.
    B, S, H = 4, 6, 100

    key = jax.random.PRNGKey(0)
    kq, kc, kh, km, kp = jax.random.split(key, 5)
    query = jax.random.normal(kq, (B, 1, H), F32)
    context = jax.random.normal(kc, (B, S, H), F32)
    init_hidden = jax.random.normal(kh, (2, B, H), F32) * 0.1
    attn_mask = jax.random.uniform(km, (B, 1, S)) < 0.3      # True = masked

    params = init_params(kp, H, bidirectional=True)

    # --- bidirectional, with mask ---
    out_bi, sc_bi = attgru_forward(params, query, context, init_hidden,
                                   attn_mask=attn_mask, bidirectional=True)
    out_bi = jax.block_until_ready(out_bi)
    out_ref, sc_ref = ref_forward(params, query, context, init_hidden,
                                  attn_mask=attn_mask, bidirectional=True)
    np.testing.assert_allclose(np.asarray(out_bi), np.asarray(out_ref),
                               rtol=1e-2, atol=1e-2)
    np.testing.assert_allclose(np.asarray(sc_bi), np.asarray(sc_ref),
                               rtol=1e-2, atol=1e-2)

    # --- unidirectional (module default), no mask ---
    out_u, sc_u = attgru_forward(params, query, context, init_hidden[:1],
                                 attn_mask=None, bidirectional=False)
    out_u = jax.block_until_ready(out_u)
    out_ref_u, sc_ref_u = ref_forward(params, query, context, init_hidden[:1],
                                      attn_mask=None, bidirectional=False)
    np.testing.assert_allclose(np.asarray(out_u), np.asarray(out_ref_u),
                               rtol=1e-2, atol=1e-2)
    np.testing.assert_allclose(np.asarray(sc_u), np.asarray(sc_ref_u),
                               rtol=1e-2, atol=1e-2)

    print("KERNEL_OK")
</pallas_src>

<mosaic_0001>
module attributes {stable_mosaic.version = 11 : i64} {
  func.func @attgru_kernel(%arg0: memref<8x128xf32, #tpu.memory_space<vmem>>, %arg1: memref<6x8x128xf32, #tpu.memory_space<vmem>>, %arg2: memref<48x128xf32, #tpu.memory_space<vmem>>, %arg3: memref<6x8x1xi32, #tpu.memory_space<vmem>>, %arg4: memref<8x128xf32, #tpu.memory_space<vmem>>, %arg5: memref<128x256xf32, #tpu.memory_space<vmem>>, %arg6: memref<1x256xf32, #tpu.memory_space<vmem>>, %arg7: memref<128x256xf32, #tpu.memory_space<vmem>>, %arg8: memref<1x128xf32, #tpu.memory_space<vmem>>, %arg9: memref<8x128xf32, #tpu.memory_space<vmem>>, %arg10: memref<128x256xf32, #tpu.memory_space<vmem>>, %arg11: memref<1x256xf32, #tpu.memory_space<vmem>>, %arg12: memref<128x256xf32, #tpu.memory_space<vmem>>, %arg13: memref<1x128xf32, #tpu.memory_space<vmem>>, %arg14: memref<8x128xf32, #tpu.memory_space<vmem>>, %arg15: memref<8x128xf32, #tpu.memory_space<vmem>>, %arg16: memref<6x8x1xf32, #tpu.memory_space<vmem>>, %arg17: memref<48x256xf32, #tpu.memory_space<vmem>>, %arg18: memref<48x256xf32, #tpu.memory_space<vmem>>, %arg19: memref<6x8x128xf32, #tpu.memory_space<vmem>>, %arg20: memref<8x128xf32, #tpu.memory_space<vmem>>, %arg21: memref<8x128xf32, #tpu.memory_space<vmem>>) attributes {dimension_semantics = [], scalar_prefetch = 0 : i64, scratch_operands = 5 : i64, tpu.core_type = #tpu.core_type<tc>} {
    %c0 = arith.constant 0 : index
    %c0_0 = arith.constant 0 : index
    %0 = vector.load %arg0[%c0, %c0_0] : memref<8x128xf32, #tpu.memory_space<vmem>>, vector<8x128xf32>
    %c0_1 = arith.constant 0 : index
    %c0_2 = arith.constant 0 : index
    %c0_3 = arith.constant 0 : index
    %1 = vector.load %arg1[%c0_1, %c0_2, %c0_3] : memref<6x8x128xf32, #tpu.memory_space<vmem>>, vector<6x8x128xf32>
    %2 = vector.shape_cast %0 : vector<8x128xf32> to vector<1x8x128xf32>
    %3 = vector.broadcast %2 : vector<1x8x128xf32> to vector<6x8x128xf32>
    %4 = arith.mulf %1, %3 : vector<6x8x128xf32>
    %cst = arith.constant dense<0.000000e+00> : vector<6x8xf32>
    %5 = vector.multi_reduction <add>, %4, %cst [2] : vector<6x8x128xf32> to vector<6x8xf32>
    %6 = vector.shape_cast %5 : vector<6x8xf32> to vector<6x8x1xf32>
    %c0_4 = arith.constant 0 : index
    %c0_5 = arith.constant 0 : index
    %c0_6 = arith.constant 0 : index
    %7 = vector.load %arg3[%c0_4, %c0_5, %c0_6] : memref<6x8x1xi32, #tpu.memory_space<vmem>>, vector<6x8x1xi32>
    %c0_i32 = arith.constant 0 : i32
    %8 = vector.broadcast %c0_i32 : i32 to vector<6x8x1xi32>
    %9 = arith.cmpi sgt, %7, %8 : vector<6x8x1xi32>
    %cst_7 = arith.constant -1.000000e+10 : f32
    %10 = vector.broadcast %cst_7 : f32 to vector<6x8x1xf32>
    %11 = arith.select %9, %10, %6 : vector<6x8x1xi1>, vector<6x8x1xf32>
    %cst_8 = arith.constant dense<0xFF800000> : vector<8x1xf32>
    %12 = vector.multi_reduction <maximumf>, %11, %cst_8 [0] : vector<6x8x1xf32> to vector<8x1xf32>
    %13 = vector.shape_cast %12 : vector<8x1xf32> to vector<1x8x1xf32>
    %14 = vector.broadcast %13 : vector<1x8x1xf32> to vector<6x8x1xf32>
    %15 = arith.subf %11, %14 : vector<6x8x1xf32>
    %16 = math.exp %15 : vector<6x8x1xf32>
    %cst_9 = arith.constant dense<0.000000e+00> : vector<8x1xf32>
    %17 = vector.multi_reduction <add>, %16, %cst_9 [0] : vector<6x8x1xf32> to vector<8x1xf32>
    %18 = vector.shape_cast %17 : vector<8x1xf32> to vector<1x8x1xf32>
    %19 = tpu.reciprocal %18 {approx = true} : vector<1x8x1xf32> -> vector<1x8x1xf32>
    %20 = vector.broadcast %19 : vector<1x8x1xf32> to vector<6x8x1xf32>
    %21 = arith.mulf %16, %20 : vector<6x8x1xf32>
    %c0_10 = arith.constant 0 : index
    %c0_11 = arith.constant 0 : index
    %c0_12 = arith.constant 0 : index
    %22 = vector.load %arg16[%c0_10, %c0_11, %c0_12] : memref<6x8x1xf32, #tpu.memory_space<vmem>>, vector<6x8x1xf32>
    tpu.vector_store %arg16[%c0_10, %c0_11, %c0_12], %21 {strides = array<i32>} : memref<6x8x1xf32, #tpu.memory_space<vmem>>, vector<6x8x1xf32>,
    %23 = vector.shape_cast %21 : vector<6x8x1xf32> to vector<6x8x1xf32>
    %24 = vector.broadcast %23 : vector<6x8x1xf32> to vector<6x8x128xf32>
    %c0_13 = arith.constant 0 : index
    %c0_14 = arith.constant 0 : index
    %c0_15 = arith.constant 0 : index
    %25 = vector.load %arg19[%c0_13, %c0_14, %c0_15] : memref<6x8x128xf32, #tpu.memory_space<vmem>>, vector<6x8x128xf32>
    tpu.vector_store %arg19[%c0_13, %c0_14, %c0_15], %24 {strides = array<i32>} : memref<6x8x128xf32, #tpu.memory_space<vmem>>, vector<6x8x128xf32>,
    %c0_16 = arith.constant 0 : index
    %c0_17 = arith.constant 0 : index
    %26 = vector.load %arg2[%c0_16, %c0_17] : memref<48x128xf32, #tpu.memory_space<vmem>>, vector<48x128xf32>
    %c0_18 = arith.constant 0 : index
    %c0_19 = arith.constant 0 : index
    %27 = vector.load %arg5[%c0_18, %c0_19] : memref<128x256xf32, #tpu.memory_space<vmem>>, vector<128x256xf32>
    %cst_20 = arith.constant dense<0.000000e+00> : vector<48x256xf32>
    %28 = tpu.matmul %26, %27, %cst_20 {dimension_numbers = #tpu.dot_dimension_numbers<[1], [0], [0], [1], [0, 0, 1, 1], [], []>} : vector<48x128xf32>, vector<128x256xf32>, vector<48x256xf32> -> vector<48x256xf32>
    %c0_21 = arith.constant 0 : index
    %c0_22 = arith.constant 0 : index
    %29 = vector.load %arg6[%c0_21, %c0_22] : memref<1x256xf32, #tpu.memory_space<vmem>>, vector<1x256xf32>
    %30 = vector.broadcast %29 : vector<1x256xf32> to vector<48x256xf32>
    %31 = arith.addf %28, %30 : vector<48x256xf32>
    %c0_23 = arith.constant 0 : index
    %c0_24 = arith.constant 0 : index
    %32 = vector.load %arg17[%c0_23, %c0_24] : memref<48x256xf32, #tpu.memory_space<vmem>>, vector<48x256xf32>
    tpu.vector_store %arg17[%c0_23, %c0_24], %31 {strides = array<i32>} : memref<48x256xf32, #tpu.memory_space<vmem>>, vector<48x256xf32>,
    %c0_25 = arith.constant 0 : index
    %c0_26 = arith.constant 0 : index
    %33 = vector.load %arg10[%c0_25, %c0_26] : memref<128x256xf32, #tpu.memory_space<vmem>>, vector<128x256xf32>
    %cst_27 = arith.constant dense<0.000000e+00> : vector<48x256xf32>
    %34 = tpu.matmul %26, %33, %cst_27 {dimension_numbers = #tpu.dot_dimension_numbers<[1], [0], [0], [1], [0, 0, 1, 1], [], []>} : vector<48x128xf32>, vector<128x256xf32>, vector<48x256xf32> -> vector<48x256xf32>
    %c0_28 = arith.constant 0 : index
    %c0_29 = arith.constant 0 : index
    %35 = vector.load %arg11[%c0_28, %c0_29] : memref<1x256xf32, #tpu.memory_space<vmem>>, vector<1x256xf32>
    %36 = vector.broadcast %35 : vector<1x256xf32> to vector<48x256xf32>
    %37 = arith.addf %34, %36 : vector<48x256xf32>
    %c0_30 = arith.constant 0 : index
    %c0_31 = arith.constant 0 : index
    %38 = vector.load %arg18[%c0_30, %c0_31] : memref<48x256xf32, #tpu.memory_space<vmem>>, vector<48x256xf32>
    tpu.vector_store %arg18[%c0_30, %c0_31], %37 {strides = array<i32>} : memref<48x256xf32, #tpu.memory_space<vmem>>, vector<48x256xf32>,
    %c0_32 = arith.constant 0 : index
    %c0_33 = arith.constant 0 : index
    %39 = vector.load %arg8[%c0_32, %c0_33] : memref<1x128xf32, #tpu.memory_space<vmem>>, vector<1x128xf32>
    %40 = vector.shape_cast %39 : vector<1x128xf32> to vector<1x128xf32>
    %41 = vector.broadcast %40 : vector<1x128xf32> to vector<8x128xf32>
    %c0_34 = arith.constant 0 : index
    %c0_35 = arith.constant 0 : index
    %42 = vector.load %arg13[%c0_34, %c0_35] : memref<1x128xf32, #tpu.memory_space<vmem>>, vector<1x128xf32>
    %43 = vector.shape_cast %42 : vector<1x128xf32> to vector<1x128xf32>
    %44 = vector.broadcast %43 : vector<1x128xf32> to vector<8x128xf32>
    %c0_36 = arith.constant 0 : index
    %c0_37 = arith.constant 0 : index
    %45 = vector.load %arg4[%c0_36, %c0_37] : memref<8x128xf32, #tpu.memory_space<vmem>>, vector<8x128xf32>
    %c0_38 = arith.constant 0 : index
    %c0_39 = arith.constant 0 : index
    %46 = vector.load %arg20[%c0_38, %c0_39] : memref<8x128xf32, #tpu.memory_space<vmem>>, vector<8x128xf32>
    tpu.vector_store %arg20[%c0_38, %c0_39], %45 {strides = array<i32>} : memref<8x128xf32, #tpu.memory_space<vmem>>, vector<8x128xf32>,
    %c0_40 = arith.constant 0 : index
    %c0_41 = arith.constant 0 : index
    %47 = vector.load %arg9[%c0_40, %c0_41] : memref<8x128xf32, #tpu.memory_space<vmem>>, vector<8x128xf32>
    %c0_42 = arith.constant 0 : index
    %c0_43 = arith.constant 0 : index
    %48 = vector.load %arg21[%c0_42, %c0_43] : memref<8x128xf32, #tpu.memory_space<vmem>>, vector<8x128xf32>
    tpu.vector_store %arg21[%c0_42, %c0_43], %47 {strides = array<i32>} : memref<8x128xf32, #tpu.memory_space<vmem>>, vector<8x128xf32>,
    %c0_i32_44 = arith.constant 0 : i32
    %c8_i32 = arith.constant 8 : i32
    %49 = arith.muli %c0_i32_44, %c8_i32 : i32
    %50 = tpu.assume_multiple %49, 8 : i32
    %51 = arith.index_cast %50 : i32 to index
    %c0_45 = arith.constant 0 : index
    %52 = vector.load %arg17[%51, %c0_45] : memref<48x256xf32, #tpu.memory_space<vmem>>, vector<8x256xf32>
    %53 = arith.index_cast %c0_i32_44 : i32 to index
    %c0_46 = arith.constant 0 : index
    %c0_47 = arith.constant 0 : index
    %54 = vector.load %arg19[%53, %c0_46, %c0_47] : memref<6x8x128xf32, #tpu.memory_space<vmem>>, vector<1x8x128xf32>
    %55 = vector.shape_cast %54 : vector<1x8x128xf32> to vector<8x128xf32>
    %c0_48 = arith.constant 0 : index
    %c0_49 = arith.constant 0 : index
    %56 = vector.load %arg20[%c0_48, %c0_49] : memref<8x128xf32, #tpu.memory_space<vmem>>, vector<8x128xf32>
    %c0_50 = arith.constant 0 : index
    %c0_51 = arith.constant 0 : index
    %57 = vector.load %arg7[%c0_50, %c0_51] : memref<128x256xf32, #tpu.memory_space<vmem>>, vector<128x256xf32>
    %cst_52 = arith.constant dense<0.000000e+00> : vector<8x256xf32>
    %58 = tpu.matmul %56, %57, %cst_52 {dimension_numbers = #tpu.dot_dimension_numbers<[1], [0], [0], [1], [0, 0, 1, 1], [], []>} : vector<8x128xf32>, vector<128x256xf32>, vector<8x256xf32> -> vector<8x256xf32>
    %59 = vector.extract_strided_slice %52 {offsets = [0, 0], sizes = [8, 128], strides = [1, 1]} : vector<8x256xf32> to vector<8x128xf32>
    %60 = vector.extract_strided_slice %58 {offsets = [0, 0], sizes = [8, 128], strides = [1, 1]} : vector<8x256xf32> to vector<8x128xf32>
    %61 = arith.addf %59, %60 : vector<8x128xf32>
    %62 = arith.negf %61 : vector<8x128xf32>
    %63 = math.exp %62 : vector<8x128xf32>
    %cst_53 = arith.constant 1.000000e+00 : f32
    %64 = vector.broadcast %cst_53 : f32 to vector<8x128xf32>
    %65 = arith.addf %64, %63 : vector<8x128xf32>
    %66 = arith.divf %64, %65 : vector<8x128xf32>
    %67 = vector.extract_strided_slice %52 {offsets = [0, 128], sizes = [8, 128], strides = [1, 1]} : vector<8x256xf32> to vector<8x128xf32>
    %68 = vector.extract_strided_slice %58 {offsets = [0, 128], sizes = [8, 128], strides = [1, 1]} : vector<8x256xf32> to vector<8x128xf32>
    %69 = arith.addf %68, %41 : vector<8x128xf32>
    %70 = arith.mulf %66, %69 : vector<8x128xf32>
    %71 = arith.addf %67, %70 : vector<8x128xf32>
    %72 = math.tanh %71 : vector<8x128xf32>
    %73 = arith.mulf %55, %72 : vector<8x128xf32>
    %cst_54 = arith.constant 1.000000e+00 : f32
    %74 = vector.broadcast %cst_54 : f32 to vector<8x128xf32>
    %75 = arith.subf %74, %55 : vector<8x128xf32>
    %76 = arith.mulf %75, %56 : vector<8x128xf32>
    %77 = arith.addf %73, %76 : vector<8x128xf32>
    %c0_55 = arith.constant 0 : index
    %c0_56 = arith.constant 0 : index
    %78 = vector.load %arg20[%c0_55, %c0_56] : memref<8x128xf32, #tpu.memory_space<vmem>>, vector<8x128xf32>
    tpu.vector_store %arg20[%c0_55, %c0_56], %77 {strides = array<i32>} : memref<8x128xf32, #tpu.memory_space<vmem>>, vector<8x128xf32>,
    %c5_i32 = arith.constant 5 : i32
    %79 = arith.subi %c5_i32, %c0_i32_44 : i32
    %c8_i32_57 = arith.constant 8 : i32
    %80 = arith.muli %79, %c8_i32_57 : i32
    %81 = tpu.assume_multiple %80, 8 : i32
    %82 = arith.index_cast %81 : i32 to index
    %c0_58 = arith.constant 0 : index
    %83 = vector.load %arg18[%82, %c0_58] : memref<48x256xf32, #tpu.memory_space<vmem>>, vector<8x256xf32>
    %84 = arith.index_cast %79 : i32 to index
    %c0_59 = arith.constant 0 : index
    %c0_60 = arith.constant 0 : index
    %85 = vector.load %arg19[%84, %c0_59, %c0_60] : memref<6x8x128xf32, #tpu.memory_space<vmem>>, vector<1x8x128xf32>
    %86 = vector.shape_cast %85 : vector<1x8x128xf32> to vector<8x128xf32>
    %c0_61 = arith.constant 0 : index
    %c0_62 = arith.constant 0 : index
    %87 = vector.load %arg21[%c0_61, %c0_62] : memref<8x128xf32, #tpu.memory_space<vmem>>, vector<8x128xf32>
    %c0_63 = arith.constant 0 : index
    %c0_64 = arith.constant 0 : index
    %88 = vector.load %arg12[%c0_63, %c0_64] : memref<128x256xf32, #tpu.memory_space<vmem>>, vector<128x256xf32>
    %cst_65 = arith.constant dense<0.000000e+00> : vector<8x256xf32>
    %89 = tpu.matmul %87, %88, %cst_65 {dimension_numbers = #tpu.dot_dimension_numbers<[1], [0], [0], [1], [0, 0, 1, 1], [], []>} : vector<8x128xf32>, vector<128x256xf32>, vector<8x256xf32> -> vector<8x256xf32>
    %90 = vector.extract_strided_slice %83 {offsets = [0, 0], sizes = [8, 128], strides = [1, 1]} : vector<8x256xf32> to vector<8x128xf32>
    %91 = vector.extract_strided_slice %89 {offsets = [0, 0], sizes = [8, 128], strides = [1, 1]} : vector<8x256xf32> to vector<8x128xf32>
    %92 = arith.addf %90, %91 : vector<8x128xf32>
    %93 = arith.negf %92 : vector<8x128xf32>
    %94 = math.exp %93 : vector<8x128xf32>
    %cst_66 = arith.constant 1.000000e+00 : f32
    %95 = vector.broadcast %cst_66 : f32 to vector<8x128xf32>
    %96 = arith.addf %95, %94 : vector<8x128xf32>
    %97 = arith.divf %95, %96 : vector<8x128xf32>
    %98 = vector.extract_strided_slice %83 {offsets = [0, 128], sizes = [8, 128], strides = [1, 1]} : vector<8x256xf32> to vector<8x128xf32>
    %99 = vector.extract_strided_slice %89 {offsets = [0, 128], sizes = [8, 128], strides = [1, 1]} : vector<8x256xf32> to vector<8x128xf32>
    %100 = arith.addf %99, %44 : vector<8x128xf32>
    %101 = arith.mulf %97, %100 : vector<8x128xf32>
    %102 = arith.addf %98, %101 : vector<8x128xf32>
    %103 = math.tanh %102 : vector<8x128xf32>
    %104 = arith.mulf %86, %103 : vector<8x128xf32>
    %cst_67 = arith.constant 1.000000e+00 : f32
    %105 = vector.broadcast %cst_67 : f32 to vector<8x128xf32>
    %106 = arith.subf %105, %86 : vector<8x128xf32>
    %107 = arith.mulf %106, %87 : vector<8x128xf32>
    %108 = arith.addf %104, %107 : vector<8x128xf32>
    %c0_68 = arith.constant 0 : index
    %c0_69 = arith.constant 0 : index
    %109 = vector.load %arg21[%c0_68, %c0_69] : memref<8x128xf32, #tpu.memory_space<vmem>>, vector<8x128xf32>
    tpu.vector_store %arg21[%c0_68, %c0_69], %108 {strides = array<i32>} : memref<8x128xf32, #tpu.memory_space<vmem>>, vector<8x128xf32>,
    %c1_i32 = arith.constant 1 : i32
    %c8_i32_70 = arith.constant 8 : i32
    %110 = arith.muli %c1_i32, %c8_i32_70 : i32
    %111 = tpu.assume_multiple %110, 8 : i32
    %112 = arith.index_cast %111 : i32 to index
    %c0_71 = arith.constant 0 : index
    %113 = vector.load %arg17[%112, %c0_71] : memref<48x256xf32, #tpu.memory_space<vmem>>, vector<8x256xf32>
    %114 = arith.index_cast %c1_i32 : i32 to index
    %c0_72 = arith.constant 0 : index
    %c0_73 = arith.constant 0 : index
    %115 = vector.load %arg19[%114, %c0_72, %c0_73] : memref<6x8x128xf32, #tpu.memory_space<vmem>>, vector<1x8x128xf32>
    %116 = vector.shape_cast %115 : vector<1x8x128xf32> to vector<8x128xf32>
    %c0_74 = arith.constant 0 : index
    %c0_75 = arith.constant 0 : index
    %117 = vector.load %arg20[%c0_74, %c0_75] : memref<8x128xf32, #tpu.memory_space<vmem>>, vector<8x128xf32>
    %c0_76 = arith.constant 0 : index
    %c0_77 = arith.constant 0 : index
    %118 = vector.load %arg7[%c0_76, %c0_77] : memref<128x256xf32, #tpu.memory_space<vmem>>, vector<128x256xf32>
    %cst_78 = arith.constant dense<0.000000e+00> : vector<8x256xf32>
    %119 = tpu.matmul %117, %118, %cst_78 {dimension_numbers = #tpu.dot_dimension_numbers<[1], [0], [0], [1], [0, 0, 1, 1], [], []>} : vector<8x128xf32>, vector<128x256xf32>, vector<8x256xf32> -> vector<8x256xf32>
    %120 = vector.extract_strided_slice %113 {offsets = [0, 0], sizes = [8, 128], strides = [1, 1]} : vector<8x256xf32> to vector<8x128xf32>
    %121 = vector.extract_strided_slice %119 {offsets = [0, 0], sizes = [8, 128], strides = [1, 1]} : vector<8x256xf32> to vector<8x128xf32>
    %122 = arith.addf %120, %121 : vector<8x128xf32>
    %123 = arith.negf %122 : vector<8x128xf32>
    %124 = math.exp %123 : vector<8x128xf32>
    %cst_79 = arith.constant 1.000000e+00 : f32
    %125 = vector.broadcast %cst_79 : f32 to vector<8x128xf32>
    %126 = arith.addf %125, %124 : vector<8x128xf32>
    %127 = arith.divf %125, %126 : vector<8x128xf32>
    %128 = vector.extract_strided_slice %113 {offsets = [0, 128], sizes = [8, 128], strides = [1, 1]} : vector<8x256xf32> to vector<8x128xf32>
    %129 = vector.extract_strided_slice %119 {offsets = [0, 128], sizes = [8, 128], strides = [1, 1]} : vector<8x256xf32> to vector<8x128xf32>
    %130 = arith.addf %129, %41 : vector<8x128xf32>
    %131 = arith.mulf %127, %130 : vector<8x128xf32>
    %132 = arith.addf %128, %131 : vector<8x128xf32>
    %133 = math.tanh %132 : vector<8x128xf32>
    %134 = arith.mulf %116, %133 : vector<8x128xf32>
    %cst_80 = arith.constant 1.000000e+00 : f32
    %135 = vector.broadcast %cst_80 : f32 to vector<8x128xf32>
    %136 = arith.subf %135, %116 : vector<8x128xf32>
    %137 = arith.mulf %136, %117 : vector<8x128xf32>
    %138 = arith.addf %134, %137 : vector<8x128xf32>
    %c0_81 = arith.constant 0 : index
    %c0_82 = arith.constant 0 : index
    %139 = vector.load %arg20[%c0_81, %c0_82] : memref<8x128xf32, #tpu.memory_space<vmem>>, vector<8x128xf32>
    tpu.vector_store %arg20[%c0_81, %c0_82], %138 {strides = array<i32>} : memref<8x128xf32, #tpu.memory_space<vmem>>, vector<8x128xf32>,
    %c5_i32_83 = arith.constant 5 : i32
    %140 = arith.subi %c5_i32_83, %c1_i32 : i32
    %c8_i32_84 = arith.constant 8 : i32
    %141 = arith.muli %140, %c8_i32_84 : i32
    %142 = tpu.assume_multiple %141, 8 : i32
    %143 = arith.index_cast %142 : i32 to index
    %c0_85 = arith.constant 0 : index
    %144 = vector.load %arg18[%143, %c0_85] : memref<48x256xf32, #tpu.memory_space<vmem>>, vector<8x256xf32>
    %145 = arith.index_cast %140 : i32 to index
    %c0_86 = arith.constant 0 : index
    %c0_87 = arith.constant 0 : index
    %146 = vector.load %arg19[%145, %c0_86, %c0_87] : memref<6x8x128xf32, #tpu.memory_space<vmem>>, vector<1x8x128xf32>
    %147 = vector.shape_cast %146 : vector<1x8x128xf32> to vector<8x128xf32>
    %c0_88 = arith.constant 0 : index
    %c0_89 = arith.constant 0 : index
    %148 = vector.load %arg21[%c0_88, %c0_89] : memref<8x128xf32, #tpu.memory_space<vmem>>, vector<8x128xf32>
    %c0_90 = arith.constant 0 : index
    %c0_91 = arith.constant 0 : index
    %149 = vector.load %arg12[%c0_90, %c0_91] : memref<128x256xf32, #tpu.memory_space<vmem>>, vector<128x256xf32>
    %cst_92 = arith.constant dense<0.000000e+00> : vector<8x256xf32>
    %150 = tpu.matmul %148, %149, %cst_92 {dimension_numbers = #tpu.dot_dimension_numbers<[1], [0], [0], [1], [0, 0, 1, 1], [], []>} : vector<8x128xf32>, vector<128x256xf32>, vector<8x256xf32> -> vector<8x256xf32>
    %151 = vector.extract_strided_slice %144 {offsets = [0, 0], sizes = [8, 128], strides = [1, 1]} : vector<8x256xf32> to vector<8x128xf32>
    %152 = vector.extract_strided_slice %150 {offsets = [0, 0], sizes = [8, 128], strides = [1, 1]} : vector<8x256xf32> to vector<8x128xf32>
    %153 = arith.addf %151, %152 : vector<8x128xf32>
    %154 = arith.negf %153 : vector<8x128xf32>
    %155 = math.exp %154 : vector<8x128xf32>
    %cst_93 = arith.constant 1.000000e+00 : f32
    %156 = vector.broadcast %cst_93 : f32 to vector<8x128xf32>
    %157 = arith.addf %156, %155 : vector<8x128xf32>
    %158 = arith.divf %156, %157 : vector<8x128xf32>
    %159 = vector.extract_strided_slice %144 {offsets = [0, 128], sizes = [8, 128], strides = [1, 1]} : vector<8x256xf32> to vector<8x128xf32>
    %160 = vector.extract_strided_slice %150 {offsets = [0, 128], sizes = [8, 128], strides = [1, 1]} : vector<8x256xf32> to vector<8x128xf32>
    %161 = arith.addf %160, %44 : vector<8x128xf32>
    %162 = arith.mulf %158, %161 : vector<8x128xf32>
    %163 = arith.addf %159, %162 : vector<8x128xf32>
    %164 = math.tanh %163 : vector<8x128xf32>
    %165 = arith.mulf %147, %164 : vector<8x128xf32>
    %cst_94 = arith.constant 1.000000e+00 : f32
    %166 = vector.broadcast %cst_94 : f32 to vector<8x128xf32>
    %167 = arith.subf %166, %147 : vector<8x128xf32>
    %168 = arith.mulf %167, %148 : vector<8x128xf32>
    %169 = arith.addf %165, %168 : vector<8x128xf32>
    %c0_95 = arith.constant 0 : index
    %c0_96 = arith.constant 0 : index
    %170 = vector.load %arg21[%c0_95, %c0_96] : memref<8x128xf32, #tpu.memory_space<vmem>>, vector<8x128xf32>
    tpu.vector_store %arg21[%c0_95, %c0_96], %169 {strides = array<i32>} : memref<8x128xf32, #tpu.memory_space<vmem>>, vector<8x128xf32>,
    %c2_i32 = arith.constant 2 : i32
    %c8_i32_97 = arith.constant 8 : i32
    %171 = arith.muli %c2_i32, %c8_i32_97 : i32
    %172 = tpu.assume_multiple %171, 8 : i32
    %173 = arith.index_cast %172 : i32 to index
    %c0_98 = arith.constant 0 : index
    %174 = vector.load %arg17[%173, %c0_98] : memref<48x256xf32, #tpu.memory_space<vmem>>, vector<8x256xf32>
    %175 = arith.index_cast %c2_i32 : i32 to index
    %c0_99 = arith.constant 0 : index
    %c0_100 = arith.constant 0 : index
    %176 = vector.load %arg19[%175, %c0_99, %c0_100] : memref<6x8x128xf32, #tpu.memory_space<vmem>>, vector<1x8x128xf32>
    %177 = vector.shape_cast %176 : vector<1x8x128xf32> to vector<8x128xf32>
    %c0_101 = arith.constant 0 : index
    %c0_102 = arith.constant 0 : index
    %178 = vector.load %arg20[%c0_101, %c0_102] : memref<8x128xf32, #tpu.memory_space<vmem>>, vector<8x128xf32>
    %c0_103 = arith.constant 0 : index
    %c0_104 = arith.constant 0 : index
    %179 = vector.load %arg7[%c0_103, %c0_104] : memref<128x256xf32, #tpu.memory_space<vmem>>, vector<128x256xf32>
    %cst_105 = arith.constant dense<0.000000e+00> : vector<8x256xf32>
    %180 = tpu.matmul %178, %179, %cst_105 {dimension_numbers = #tpu.dot_dimension_numbers<[1], [0], [0], [1], [0, 0, 1, 1], [], []>} : vector<8x128xf32>, vector<128x256xf32>, vector<8x256xf32> -> vector<8x256xf32>
    %181 = vector.extract_strided_slice %174 {offsets = [0, 0], sizes = [8, 128], strides = [1, 1]} : vector<8x256xf32> to vector<8x128xf32>
    %182 = vector.extract_strided_slice %180 {offsets = [0, 0], sizes = [8, 128], strides = [1, 1]} : vector<8x256xf32> to vector<8x128xf32>
    %183 = arith.addf %181, %182 : vector<8x128xf32>
    %184 = arith.negf %183 : vector<8x128xf32>
    %185 = math.exp %184 : vector<8x128xf32>
    %cst_106 = arith.constant 1.000000e+00 : f32
    %186 = vector.broadcast %cst_106 : f32 to vector<8x128xf32>
    %187 = arith.addf %186, %185 : vector<8x128xf32>
    %188 = arith.divf %186, %187 : vector<8x128xf32>
    %189 = vector.extract_strided_slice %174 {offsets = [0, 128], sizes = [8, 128], strides = [1, 1]} : vector<8x256xf32> to vector<8x128xf32>
    %190 = vector.extract_strided_slice %180 {offsets = [0, 128], sizes = [8, 128], strides = [1, 1]} : vector<8x256xf32> to vector<8x128xf32>
    %191 = arith.addf %190, %41 : vector<8x128xf32>
    %192 = arith.mulf %188, %191 : vector<8x128xf32>
    %193 = arith.addf %189, %192 : vector<8x128xf32>
    %194 = math.tanh %193 : vector<8x128xf32>
    %195 = arith.mulf %177, %194 : vector<8x128xf32>
    %cst_107 = arith.constant 1.000000e+00 : f32
    %196 = vector.broadcast %cst_107 : f32 to vector<8x128xf32>
    %197 = arith.subf %196, %177 : vector<8x128xf32>
    %198 = arith.mulf %197, %178 : vector<8x128xf32>
    %199 = arith.addf %195, %198 : vector<8x128xf32>
    %c0_108 = arith.constant 0 : index
    %c0_109 = arith.constant 0 : index
    %200 = vector.load %arg20[%c0_108, %c0_109] : memref<8x128xf32, #tpu.memory_space<vmem>>, vector<8x128xf32>
    tpu.vector_store %arg20[%c0_108, %c0_109], %199 {strides = array<i32>} : memref<8x128xf32, #tpu.memory_space<vmem>>, vector<8x128xf32>,
    %c5_i32_110 = arith.constant 5 : i32
    %201 = arith.subi %c5_i32_110, %c2_i32 : i32
    %c8_i32_111 = arith.constant 8 : i32
    %202 = arith.muli %201, %c8_i32_111 : i32
    %203 = tpu.assume_multiple %202, 8 : i32
    %204 = arith.index_cast %203 : i32 to index
    %c0_112 = arith.constant 0 : index
    %205 = vector.load %arg18[%204, %c0_112] : memref<48x256xf32, #tpu.memory_space<vmem>>, vector<8x256xf32>
    %206 = arith.index_cast %201 : i32 to index
    %c0_113 = arith.constant 0 : index
    %c0_114 = arith.constant 0 : index
    %207 = vector.load %arg19[%206, %c0_113, %c0_114] : memref<6x8x128xf32, #tpu.memory_space<vmem>>, vector<1x8x128xf32>
    %208 = vector.shape_cast %207 : vector<1x8x128xf32> to vector<8x128xf32>
    %c0_115 = arith.constant 0 : index
    %c0_116 = arith.constant 0 : index
    %209 = vector.load %arg21[%c0_115, %c0_116] : memref<8x128xf32, #tpu.memory_space<vmem>>, vector<8x128xf32>
    %c0_117 = arith.constant 0 : index
    %c0_118 = arith.constant 0 : index
    %210 = vector.load %arg12[%c0_117, %c0_118] : memref<128x256xf32, #tpu.memory_space<vmem>>, vector<128x256xf32>
    %cst_119 = arith.constant dense<0.000000e+00> : vector<8x256xf32>
    %211 = tpu.matmul %209, %210, %cst_119 {dimension_numbers = #tpu.dot_dimension_numbers<[1], [0], [0], [1], [0, 0, 1, 1], [], []>} : vector<8x128xf32>, vector<128x256xf32>, vector<8x256xf32> -> vector<8x256xf32>
    %212 = vector.extract_strided_slice %205 {offsets = [0, 0], sizes = [8, 128], strides = [1, 1]} : vector<8x256xf32> to vector<8x128xf32>
    %213 = vector.extract_strided_slice %211 {offsets = [0, 0], sizes = [8, 128], strides = [1, 1]} : vector<8x256xf32> to vector<8x128xf32>
    %214 = arith.addf %212, %213 : vector<8x128xf32>
    %215 = arith.negf %214 : vector<8x128xf32>
    %216 = math.exp %215 : vector<8x128xf32>
    %cst_120 = arith.constant 1.000000e+00 : f32
    %217 = vector.broadcast %cst_120 : f32 to vector<8x128xf32>
    %218 = arith.addf %217, %216 : vector<8x128xf32>
    %219 = arith.divf %217, %218 : vector<8x128xf32>
    %220 = vector.extract_strided_slice %205 {offsets = [0, 128], sizes = [8, 128], strides = [1, 1]} : vector<8x256xf32> to vector<8x128xf32>
    %221 = vector.extract_strided_slice %211 {offsets = [0, 128], sizes = [8, 128], strides = [1, 1]} : vector<8x256xf32> to vector<8x128xf32>
    %222 = arith.addf %221, %44 : vector<8x128xf32>
    %223 = arith.mulf %219, %222 : vector<8x128xf32>
    %224 = arith.addf %220, %223 : vector<8x128xf32>
    %225 = math.tanh %224 : vector<8x128xf32>
    %226 = arith.mulf %208, %225 : vector<8x128xf32>
    %cst_121 = arith.constant 1.000000e+00 : f32
    %227 = vector.broadcast %cst_121 : f32 to vector<8x128xf32>
    %228 = arith.subf %227, %208 : vector<8x128xf32>
    %229 = arith.mulf %228, %209 : vector<8x128xf32>
    %230 = arith.addf %226, %229 : vector<8x128xf32>
    %c0_122 = arith.constant 0 : index
    %c0_123 = arith.constant 0 : index
    %231 = vector.load %arg21[%c0_122, %c0_123] : memref<8x128xf32, #tpu.memory_space<vmem>>, vector<8x128xf32>
    tpu.vector_store %arg21[%c0_122, %c0_123], %230 {strides = array<i32>} : memref<8x128xf32, #tpu.memory_space<vmem>>, vector<8x128xf32>,
    %c3_i32 = arith.constant 3 : i32
    %c8_i32_124 = arith.constant 8 : i32
    %232 = arith.muli %c3_i32, %c8_i32_124 : i32
    %233 = tpu.assume_multiple %232, 8 : i32
    %234 = arith.index_cast %233 : i32 to index
    %c0_125 = arith.constant 0 : index
    %235 = vector.load %arg17[%234, %c0_125] : memref<48x256xf32, #tpu.memory_space<vmem>>, vector<8x256xf32>
    %236 = arith.index_cast %c3_i32 : i32 to index
    %c0_126 = arith.constant 0 : index
    %c0_127 = arith.constant 0 : index
    %237 = vector.load %arg19[%236, %c0_126, %c0_127] : memref<6x8x128xf32, #tpu.memory_space<vmem>>, vector<1x8x128xf32>
    %238 = vector.shape_cast %237 : vector<1x8x128xf32> to vector<8x128xf32>
    %c0_128 = arith.constant 0 : index
    %c0_129 = arith.constant 0 : index
    %239 = vector.load %arg20[%c0_128, %c0_129] : memref<8x128xf32, #tpu.memory_space<vmem>>, vector<8x128xf32>
    %c0_130 = arith.constant 0 : index
    %c0_131 = arith.constant 0 : index
    %240 = vector.load %arg7[%c0_130, %c0_131] : memref<128x256xf32, #tpu.memory_space<vmem>>, vector<128x256xf32>
    %cst_132 = arith.constant dense<0.000000e+00> : vector<8x256xf32>
    %241 = tpu.matmul %239, %240, %cst_132 {dimension_numbers = #tpu.dot_dimension_numbers<[1], [0], [0], [1], [0, 0, 1, 1], [], []>} : vector<8x128xf32>, vector<128x256xf32>, vector<8x256xf32> -> vector<8x256xf32>
    %242 = vector.extract_strided_slice %235 {offsets = [0, 0], sizes = [8, 128], strides = [1, 1]} : vector<8x256xf32> to vector<8x128xf32>
    %243 = vector.extract_strided_slice %241 {offsets = [0, 0], sizes = [8, 128], strides = [1, 1]} : vector<8x256xf32> to vector<8x128xf32>
    %244 = arith.addf %242, %243 : vector<8x128xf32>
    %245 = arith.negf %244 : vector<8x128xf32>
    %246 = math.exp %245 : vector<8x128xf32>
    %cst_133 = arith.constant 1.000000e+00 : f32
    %247 = vector.broadcast %cst_133 : f32 to vector<8x128xf32>
    %248 = arith.addf %247, %246 : vector<8x128xf32>
    %249 = arith.divf %247, %248 : vector<8x128xf32>
    %250 = vector.extract_strided_slice %235 {offsets = [0, 128], sizes = [8, 128], strides = [1, 1]} : vector<8x256xf32> to vector<8x128xf32>
    %251 = vector.extract_strided_slice %241 {offsets = [0, 128], sizes = [8, 128], strides = [1, 1]} : vector<8x256xf32> to vector<8x128xf32>
    %252 = arith.addf %251, %41 : vector<8x128xf32>
    %253 = arith.mulf %249, %252 : vector<8x128xf32>
    %254 = arith.addf %250, %253 : vector<8x128xf32>
    %255 = math.tanh %254 : vector<8x128xf32>
    %256 = arith.mulf %238, %255 : vector<8x128xf32>
    %cst_134 = arith.constant 1.000000e+00 : f32
    %257 = vector.broadcast %cst_134 : f32 to vector<8x128xf32>
    %258 = arith.subf %257, %238 : vector<8x128xf32>
    %259 = arith.mulf %258, %239 : vector<8x128xf32>
    %260 = arith.addf %256, %259 : vector<8x128xf32>
    %c0_135 = arith.constant 0 : index
    %c0_136 = arith.constant 0 : index
    %261 = vector.load %arg20[%c0_135, %c0_136] : memref<8x128xf32, #tpu.memory_space<vmem>>, vector<8x128xf32>
    tpu.vector_store %arg20[%c0_135, %c0_136], %260 {strides = array<i32>} : memref<8x128xf32, #tpu.memory_space<vmem>>, vector<8x128xf32>,
    %c5_i32_137 = arith.constant 5 : i32
    %262 = arith.subi %c5_i32_137, %c3_i32 : i32
    %c8_i32_138 = arith.constant 8 : i32
    %263 = arith.muli %262, %c8_i32_138 : i32
    %264 = tpu.assume_multiple %263, 8 : i32
    %265 = arith.index_cast %264 : i32 to index
    %c0_139 = arith.constant 0 : index
    %266 = vector.load %arg18[%265, %c0_139] : memref<48x256xf32, #tpu.memory_space<vmem>>, vector<8x256xf32>
    %267 = arith.index_cast %262 : i32 to index
    %c0_140 = arith.constant 0 : index
    %c0_141 = arith.constant 0 : index
    %268 = vector.load %arg19[%267, %c0_140, %c0_141] : memref<6x8x128xf32, #tpu.memory_space<vmem>>, vector<1x8x128xf32>
    %269 = vector.shape_cast %268 : vector<1x8x128xf32> to vector<8x128xf32>
    %c0_142 = arith.constant 0 : index
    %c0_143 = arith.constant 0 : index
    %270 = vector.load %arg21[%c0_142, %c0_143] : memref<8x128xf32, #tpu.memory_space<vmem>>, vector<8x128xf32>
    %c0_144 = arith.constant 0 : index
    %c0_145 = arith.constant 0 : index
    %271 = vector.load %arg12[%c0_144, %c0_145] : memref<128x256xf32, #tpu.memory_space<vmem>>, vector<128x256xf32>
    %cst_146 = arith.constant dense<0.000000e+00> : vector<8x256xf32>
    %272 = tpu.matmul %270, %271, %cst_146 {dimension_numbers = #tpu.dot_dimension_numbers<[1], [0], [0], [1], [0, 0, 1, 1], [], []>} : vector<8x128xf32>, vector<128x256xf32>, vector<8x256xf32> -> vector<8x256xf32>
    %273 = vector.extract_strided_slice %266 {offsets = [0, 0], sizes = [8, 128], strides = [1, 1]} : vector<8x256xf32> to vector<8x128xf32>
    %274 = vector.extract_strided_slice %272 {offsets = [0, 0], sizes = [8, 128], strides = [1, 1]} : vector<8x256xf32> to vector<8x128xf32>
    %275 = arith.addf %273, %274 : vector<8x128xf32>
    %276 = arith.negf %275 : vector<8x128xf32>
    %277 = math.exp %276 : vector<8x128xf32>
    %cst_147 = arith.constant 1.000000e+00 : f32
    %278 = vector.broadcast %cst_147 : f32 to vector<8x128xf32>
    %279 = arith.addf %278, %277 : vector<8x128xf32>
    %280 = arith.divf %278, %279 : vector<8x128xf32>
    %281 = vector.extract_strided_slice %266 {offsets = [0, 128], sizes = [8, 128], strides = [1, 1]} : vector<8x256xf32> to vector<8x128xf32>
    %282 = vector.extract_strided_slice %272 {offsets = [0, 128], sizes = [8, 128], strides = [1, 1]} : vector<8x256xf32> to vector<8x128xf32>
    %283 = arith.addf %282, %44 : vector<8x128xf32>
    %284 = arith.mulf %280, %283 : vector<8x128xf32>
    %285 = arith.addf %281, %284 : vector<8x128xf32>
    %286 = math.tanh %285 : vector<8x128xf32>
    %287 = arith.mulf %269, %286 : vector<8x128xf32>
    %cst_148 = arith.constant 1.000000e+00 : f32
    %288 = vector.broadcast %cst_148 : f32 to vector<8x128xf32>
    %289 = arith.subf %288, %269 : vector<8x128xf32>
    %290 = arith.mulf %289, %270 : vector<8x128xf32>
    %291 = arith.addf %287, %290 : vector<8x128xf32>
    %c0_149 = arith.constant 0 : index
    %c0_150 = arith.constant 0 : index
    %292 = vector.load %arg21[%c0_149, %c0_150] : memref<8x128xf32, #tpu.memory_space<vmem>>, vector<8x128xf32>
    tpu.vector_store %arg21[%c0_149, %c0_150], %291 {strides = array<i32>} : memref<8x128xf32, #tpu.memory_space<vmem>>, vector<8x128xf32>,
    %c4_i32 = arith.constant 4 : i32
    %c8_i32_151 = arith.constant 8 : i32
    %293 = arith.muli %c4_i32, %c8_i32_151 : i32
    %294 = tpu.assume_multiple %293, 8 : i32
    %295 = arith.index_cast %294 : i32 to index
    %c0_152 = arith.constant 0 : index
    %296 = vector.load %arg17[%295, %c0_152] : memref<48x256xf32, #tpu.memory_space<vmem>>, vector<8x256xf32>
    %297 = arith.index_cast %c4_i32 : i32 to index
    %c0_153 = arith.constant 0 : index
    %c0_154 = arith.constant 0 : index
    %298 = vector.load %arg19[%297, %c0_153, %c0_154] : memref<6x8x128xf32, #tpu.memory_space<vmem>>, vector<1x8x128xf32>
    %299 = vector.shape_cast %298 : vector<1x8x128xf32> to vector<8x128xf32>
    %c0_155 = arith.constant 0 : index
    %c0_156 = arith.constant 0 : index
    %300 = vector.load %arg20[%c0_155, %c0_156] : memref<8x128xf32, #tpu.memory_space<vmem>>, vector<8x128xf32>
    %c0_157 = arith.constant 0 : index
    %c0_158 = arith.constant 0 : index
    %301 = vector.load %arg7[%c0_157, %c0_158] : memref<128x256xf32, #tpu.memory_space<vmem>>, vector<128x256xf32>
    %cst_159 = arith.constant dense<0.000000e+00> : vector<8x256xf32>
    %302 = tpu.matmul %300, %301, %cst_159 {dimension_numbers = #tpu.dot_dimension_numbers<[1], [0], [0], [1], [0, 0, 1, 1], [], []>} : vector<8x128xf32>, vector<128x256xf32>, vector<8x256xf32> -> vector<8x256xf32>
    %303 = vector.extract_strided_slice %296 {offsets = [0, 0], sizes = [8, 128], strides = [1, 1]} : vector<8x256xf32> to vector<8x128xf32>
    %304 = vector.extract_strided_slice %302 {offsets = [0, 0], sizes = [8, 128], strides = [1, 1]} : vector<8x256xf32> to vector<8x128xf32>
    %305 = arith.addf %303, %304 : vector<8x128xf32>
    %306 = arith.negf %305 : vector<8x128xf32>
    %307 = math.exp %306 : vector<8x128xf32>
    %cst_160 = arith.constant 1.000000e+00 : f32
    %308 = vector.broadcast %cst_160 : f32 to vector<8x128xf32>
    %309 = arith.addf %308, %307 : vector<8x128xf32>
    %310 = arith.divf %308, %309 : vector<8x128xf32>
    %311 = vector.extract_strided_slice %296 {offsets = [0, 128], sizes = [8, 128], strides = [1, 1]} : vector<8x256xf32> to vector<8x128xf32>
    %312 = vector.extract_strided_slice %302 {offsets = [0, 128], sizes = [8, 128], strides = [1, 1]} : vector<8x256xf32> to vector<8x128xf32>
    %313 = arith.addf %312, %41 : vector<8x128xf32>
    %314 = arith.mulf %310, %313 : vector<8x128xf32>
    %315 = arith.addf %311, %314 : vector<8x128xf32>
    %316 = math.tanh %315 : vector<8x128xf32>
    %317 = arith.mulf %299, %316 : vector<8x128xf32>
    %cst_161 = arith.constant 1.000000e+00 : f32
    %318 = vector.broadcast %cst_161 : f32 to vector<8x128xf32>
    %319 = arith.subf %318, %299 : vector<8x128xf32>
    %320 = arith.mulf %319, %300 : vector<8x128xf32>
    %321 = arith.addf %317, %320 : vector<8x128xf32>
    %c0_162 = arith.constant 0 : index
    %c0_163 = arith.constant 0 : index
    %322 = vector.load %arg20[%c0_162, %c0_163] : memref<8x128xf32, #tpu.memory_space<vmem>>, vector<8x128xf32>
    tpu.vector_store %arg20[%c0_162, %c0_163], %321 {strides = array<i32>} : memref<8x128xf32, #tpu.memory_space<vmem>>, vector<8x128xf32>,
    %c5_i32_164 = arith.constant 5 : i32
    %323 = arith.subi %c5_i32_164, %c4_i32 : i32
    %c8_i32_165 = arith.constant 8 : i32
    %324 = arith.muli %323, %c8_i32_165 : i32
    %325 = tpu.assume_multiple %324, 8 : i32
    %326 = arith.index_cast %325 : i32 to index
    %c0_166 = arith.constant 0 : index
    %327 = vector.load %arg18[%326, %c0_166] : memref<48x256xf32, #tpu.memory_space<vmem>>, vector<8x256xf32>
    %328 = arith.index_cast %323 : i32 to index
    %c0_167 = arith.constant 0 : index
    %c0_168 = arith.constant 0 : index
    %329 = vector.load %arg19[%328, %c0_167, %c0_168] : memref<6x8x128xf32, #tpu.memory_space<vmem>>, vector<1x8x128xf32>
    %330 = vector.shape_cast %329 : vector<1x8x128xf32> to vector<8x128xf32>
    %c0_169 = arith.constant 0 : index
    %c0_170 = arith.constant 0 : index
    %331 = vector.load %arg21[%c0_169, %c0_170] : memref<8x128xf32, #tpu.memory_space<vmem>>, vector<8x128xf32>
    %c0_171 = arith.constant 0 : index
    %c0_172 = arith.constant 0 : index
    %332 = vector.load %arg12[%c0_171, %c0_172] : memref<128x256xf32, #tpu.memory_space<vmem>>, vector<128x256xf32>
    %cst_173 = arith.constant dense<0.000000e+00> : vector<8x256xf32>
    %333 = tpu.matmul %331, %332, %cst_173 {dimension_numbers = #tpu.dot_dimension_numbers<[1], [0], [0], [1], [0, 0, 1, 1], [], []>} : vector<8x128xf32>, vector<128x256xf32>, vector<8x256xf32> -> vector<8x256xf32>
    %334 = vector.extract_strided_slice %327 {offsets = [0, 0], sizes = [8, 128], strides = [1, 1]} : vector<8x256xf32> to vector<8x128xf32>
    %335 = vector.extract_strided_slice %333 {offsets = [0, 0], sizes = [8, 128], strides = [1, 1]} : vector<8x256xf32> to vector<8x128xf32>
    %336 = arith.addf %334, %335 : vector<8x128xf32>
    %337 = arith.negf %336 : vector<8x128xf32>
    %338 = math.exp %337 : vector<8x128xf32>
    %cst_174 = arith.constant 1.000000e+00 : f32
    %339 = vector.broadcast %cst_174 : f32 to vector<8x128xf32>
    %340 = arith.addf %339, %338 : vector<8x128xf32>
    %341 = arith.divf %339, %340 : vector<8x128xf32>
    %342 = vector.extract_strided_slice %327 {offsets = [0, 128], sizes = [8, 128], strides = [1, 1]} : vector<8x256xf32> to vector<8x128xf32>
    %343 = vector.extract_strided_slice %333 {offsets = [0, 128], sizes = [8, 128], strides = [1, 1]} : vector<8x256xf32> to vector<8x128xf32>
    %344 = arith.addf %343, %44 : vector<8x128xf32>
    %345 = arith.mulf %341, %344 : vector<8x128xf32>
    %346 = arith.addf %342, %345 : vector<8x128xf32>
    %347 = math.tanh %346 : vector<8x128xf32>
    %348 = arith.mulf %330, %347 : vector<8x128xf32>
    %cst_175 = arith.constant 1.000000e+00 : f32
    %349 = vector.broadcast %cst_175 : f32 to vector<8x128xf32>
    %350 = arith.subf %349, %330 : vector<8x128xf32>
    %351 = arith.mulf %350, %331 : vector<8x128xf32>
    %352 = arith.addf %348, %351 : vector<8x128xf32>
    %c0_176 = arith.constant 0 : index
    %c0_177 = arith.constant 0 : index
    %353 = vector.load %arg21[%c0_176, %c0_177] : memref<8x128xf32, #tpu.memory_space<vmem>>, vector<8x128xf32>
    tpu.vector_store %arg21[%c0_176, %c0_177], %352 {strides = array<i32>} : memref<8x128xf32, #tpu.memory_space<vmem>>, vector<8x128xf32>,
    %c5_i32_178 = arith.constant 5 : i32
    %c8_i32_179 = arith.constant 8 : i32
    %354 = arith.muli %c5_i32_178, %c8_i32_179 : i32
    %355 = tpu.assume_multiple %354, 8 : i32
    %356 = arith.index_cast %355 : i32 to index
    %c0_180 = arith.constant 0 : index
    %357 = vector.load %arg17[%356, %c0_180] : memref<48x256xf32, #tpu.memory_space<vmem>>, vector<8x256xf32>
    %358 = arith.index_cast %c5_i32_178 : i32 to index
    %c0_181 = arith.constant 0 : index
    %c0_182 = arith.constant 0 : index
    %359 = vector.load %arg19[%358, %c0_181, %c0_182] : memref<6x8x128xf32, #tpu.memory_space<vmem>>, vector<1x8x128xf32>
    %360 = vector.shape_cast %359 : vector<1x8x128xf32> to vector<8x128xf32>
    %c0_183 = arith.constant 0 : index
    %c0_184 = arith.constant 0 : index
    %361 = vector.load %arg20[%c0_183, %c0_184] : memref<8x128xf32, #tpu.memory_space<vmem>>, vector<8x128xf32>
    %c0_185 = arith.constant 0 : index
    %c0_186 = arith.constant 0 : index
    %362 = vector.load %arg7[%c0_185, %c0_186] : memref<128x256xf32, #tpu.memory_space<vmem>>, vector<128x256xf32>
    %cst_187 = arith.constant dense<0.000000e+00> : vector<8x256xf32>
    %363 = tpu.matmul %361, %362, %cst_187 {dimension_numbers = #tpu.dot_dimension_numbers<[1], [0], [0], [1], [0, 0, 1, 1], [], []>} : vector<8x128xf32>, vector<128x256xf32>, vector<8x256xf32> -> vector<8x256xf32>
    %364 = vector.extract_strided_slice %357 {offsets = [0, 0], sizes = [8, 128], strides = [1, 1]} : vector<8x256xf32> to vector<8x128xf32>
    %365 = vector.extract_strided_slice %363 {offsets = [0, 0], sizes = [8, 128], strides = [1, 1]} : vector<8x256xf32> to vector<8x128xf32>
    %366 = arith.addf %364, %365 : vector<8x128xf32>
    %367 = arith.negf %366 : vector<8x128xf32>
    %368 = math.exp %367 : vector<8x128xf32>
    %cst_188 = arith.constant 1.000000e+00 : f32
    %369 = vector.broadcast %cst_188 : f32 to vector<8x128xf32>
    %370 = arith.addf %369, %368 : vector<8x128xf32>
    %371 = arith.divf %369, %370 : vector<8x128xf32>
    %372 = vector.extract_strided_slice %357 {offsets = [0, 128], sizes = [8, 128], strides = [1, 1]} : vector<8x256xf32> to vector<8x128xf32>
    %373 = vector.extract_strided_slice %363 {offsets = [0, 128], sizes = [8, 128], strides = [1, 1]} : vector<8x256xf32> to vector<8x128xf32>
    %374 = arith.addf %373, %41 : vector<8x128xf32>
    %375 = arith.mulf %371, %374 : vector<8x128xf32>
    %376 = arith.addf %372, %375 : vector<8x128xf32>
    %377 = math.tanh %376 : vector<8x128xf32>
    %378 = arith.mulf %360, %377 : vector<8x128xf32>
    %cst_189 = arith.constant 1.000000e+00 : f32
    %379 = vector.broadcast %cst_189 : f32 to vector<8x128xf32>
    %380 = arith.subf %379, %360 : vector<8x128xf32>
    %381 = arith.mulf %380, %361 : vector<8x128xf32>
    %382 = arith.addf %378, %381 : vector<8x128xf32>
    %c0_190 = arith.constant 0 : index
    %c0_191 = arith.constant 0 : index
    %383 = vector.load %arg20[%c0_190, %c0_191] : memref<8x128xf32, #tpu.memory_space<vmem>>, vector<8x128xf32>
    tpu.vector_store %arg20[%c0_190, %c0_191], %382 {strides = array<i32>} : memref<8x128xf32, #tpu.memory_space<vmem>>, vector<8x128xf32>,
    %c5_i32_192 = arith.constant 5 : i32
    %384 = arith.subi %c5_i32_192, %c5_i32_178 : i32
    %c8_i32_193 = arith.constant 8 : i32
    %385 = arith.muli %384, %c8_i32_193 : i32
    %386 = tpu.assume_multiple %385, 8 : i32
    %387 = arith.index_cast %386 : i32 to index
    %c0_194 = arith.constant 0 : index
    %388 = vector.load %arg18[%387, %c0_194] : memref<48x256xf32, #tpu.memory_space<vmem>>, vector<8x256xf32>
    %389 = arith.index_cast %384 : i32 to index
    %c0_195 = arith.constant 0 : index
    %c0_196 = arith.constant 0 : index
    %390 = vector.load %arg19[%389, %c0_195, %c0_196] : memref<6x8x128xf32, #tpu.memory_space<vmem>>, vector<1x8x128xf32>
    %391 = vector.shape_cast %390 : vector<1x8x128xf32> to vector<8x128xf32>
    %c0_197 = arith.constant 0 : index
    %c0_198 = arith.constant 0 : index
    %392 = vector.load %arg21[%c0_197, %c0_198] : memref<8x128xf32, #tpu.memory_space<vmem>>, vector<8x128xf32>
    %c0_199 = arith.constant 0 : index
    %c0_200 = arith.constant 0 : index
    %393 = vector.load %arg12[%c0_199, %c0_200] : memref<128x256xf32, #tpu.memory_space<vmem>>, vector<128x256xf32>
    %cst_201 = arith.constant dense<0.000000e+00> : vector<8x256xf32>
    %394 = tpu.matmul %392, %393, %cst_201 {dimension_numbers = #tpu.dot_dimension_numbers<[1], [0], [0], [1], [0, 0, 1, 1], [], []>} : vector<8x128xf32>, vector<128x256xf32>, vector<8x256xf32> -> vector<8x256xf32>
    %395 = vector.extract_strided_slice %388 {offsets = [0, 0], sizes = [8, 128], strides = [1, 1]} : vector<8x256xf32> to vector<8x128xf32>
    %396 = vector.extract_strided_slice %394 {offsets = [0, 0], sizes = [8, 128], strides = [1, 1]} : vector<8x256xf32> to vector<8x128xf32>
    %397 = arith.addf %395, %396 : vector<8x128xf32>
    %398 = arith.negf %397 : vector<8x128xf32>
    %399 = math.exp %398 : vector<8x128xf32>
    %cst_202 = arith.constant 1.000000e+00 : f32
    %400 = vector.broadcast %cst_202 : f32 to vector<8x128xf32>
    %401 = arith.addf %400, %399 : vector<8x128xf32>
    %402 = arith.divf %400, %401 : vector<8x128xf32>
    %403 = vector.extract_strided_slice %388 {offsets = [0, 128], sizes = [8, 128], strides = [1, 1]} : vector<8x256xf32> to vector<8x128xf32>
    %404 = vector.extract_strided_slice %394 {offsets = [0, 128], sizes = [8, 128], strides = [1, 1]} : vector<8x256xf32> to vector<8x128xf32>
    %405 = arith.addf %404, %44 : vector<8x128xf32>
    %406 = arith.mulf %402, %405 : vector<8x128xf32>
    %407 = arith.addf %403, %406 : vector<8x128xf32>
    %408 = math.tanh %407 : vector<8x128xf32>
    %409 = arith.mulf %391, %408 : vector<8x128xf32>
    %cst_203 = arith.constant 1.000000e+00 : f32
    %410 = vector.broadcast %cst_203 : f32 to vector<8x128xf32>
    %411 = arith.subf %410, %391 : vector<8x128xf32>
    %412 = arith.mulf %411, %392 : vector<8x128xf32>
    %413 = arith.addf %409, %412 : vector<8x128xf32>
    %c0_204 = arith.constant 0 : index
    %c0_205 = arith.constant 0 : index
    %414 = vector.load %arg21[%c0_204, %c0_205] : memref<8x128xf32, #tpu.memory_space<vmem>>, vector<8x128xf32>
    tpu.vector_store %arg21[%c0_204, %c0_205], %413 {strides = array<i32>} : memref<8x128xf32, #tpu.memory_space<vmem>>, vector<8x128xf32>,
    %c6_i32 = arith.constant 6 : i32
    %c0_206 = arith.constant 0 : index
    %c0_207 = arith.constant 0 : index
    %415 = vector.load %arg20[%c0_206, %c0_207] : memref<8x128xf32, #tpu.memory_space<vmem>>, vector<8x128xf32>
    %c0_208 = arith.constant 0 : index
    %c0_209 = arith.constant 0 : index
    %416 = vector.load %arg14[%c0_208, %c0_209] : memref<8x128xf32, #tpu.memory_space<vmem>>, vector<8x128xf32>
    tpu.vector_store %arg14[%c0_208, %c0_209], %415 {strides = array<i32>} : memref<8x128xf32, #tpu.memory_space<vmem>>, vector<8x128xf32>,
    %c0_210 = arith.constant 0 : index
    %c0_211 = arith.constant 0 : index
    %417 = vector.load %arg21[%c0_210, %c0_211] : memref<8x128xf32, #tpu.memory_space<vmem>>, vector<8x128xf32>
    %c0_212 = arith.constant 0 : index
    %c0_213 = arith.constant 0 : index
    %418 = vector.load %arg15[%c0_212, %c0_213] : memref<8x128xf32, #tpu.memory_space<vmem>>, vector<8x128xf32>
    tpu.vector_store %arg15[%c0_212, %c0_213], %417 {strides = array<i32>} : memref<8x128xf32, #tpu.memory_space<vmem>>, vector<8x128xf32>,
    return
  }
}

</mosaic_0001>

<llo_original>
// kernel: tpu_custom_call.1
$region0: #{tpu_custom_call.1}
  #allocation0 [shape = 'u32[]', space=smem, size = 0x4, offset = 0x4, fixed_abs, tag = 'smem constant byte address 0x4 - core index']
  #allocation1 [shape = 'u32[144,128]{1,0:T(1,128)}', space=vmem, size = 0x12000, scoped, tag = 'internal scratch']
  #allocation2 [shape = 'f32[48,256]{1,0:T(8,128)}', space=vmem, size = 0xc000, scoped, tag = 'scratch operand']
  #allocation3 [shape = 'f32[48,256]{1,0:T(8,128)}', space=vmem, size = 0xc000, scoped, tag = 'scratch operand']
  #allocation4 [shape = 'f32[6,8,128]{2,1,0:T(8,128)}', space=vmem, size = 0x6000, scoped, tag = 'scratch operand']
  #allocation5 [shape = 'f32[8,128]{1,0:T(8,128)}', space=vmem, size = 0x1000, scoped, tag = 'scratch operand']
  #allocation6 [shape = 'f32[8,128]{1,0:T(8,128)}', space=vmem, size = 0x1000, scoped, tag = 'scratch operand']
  %s0 = inlined_call_operand.vmem [shape: f32[8,128], index: 0, kind: input, shape index: {}]
  %s1 = inlined_call_operand.vmem [shape: f32[6,8,128], index: 1, kind: input, shape index: {}]
  %s2 = inlined_call_operand.hbm [shape: f32[48,128], index: 2, kind: input, shape index: {}]
  %s3 = inlined_call_operand.vmem [shape: s32[6,8,1], index: 3, kind: input, shape index: {}]
  %s4 = inlined_call_operand.vmem [shape: f32[8,128], index: 4, kind: input, shape index: {}]
  %s5 = inlined_call_operand.hbm [shape: f32[128,256], index: 5, kind: input, shape index: {}]
  %s6 = inlined_call_operand.vmem [shape: f32[1,256], index: 6, kind: input, shape index: {}]
  %s7 = inlined_call_operand.hbm [shape: f32[128,256], index: 7, kind: input, shape index: {}]
  %s8 = inlined_call_operand.vmem [shape: f32[1,128], index: 8, kind: input, shape index: {}]
  %s9 = inlined_call_operand.vmem [shape: f32[8,128], index: 9, kind: input, shape index: {}]
  %s10 = inlined_call_operand.hbm [shape: f32[128,256], index: 10, kind: input, shape index: {}]
  %s11 = inlined_call_operand.vmem [shape: f32[1,256], index: 11, kind: input, shape index: {}]
  %s12 = inlined_call_operand.hbm [shape: f32[128,256], index: 12, kind: input, shape index: {}]
  %s13 = inlined_call_operand.vmem [shape: f32[1,128], index: 13, kind: input, shape index: {}]
  %s14 = inlined_call_operand.hbm [shape: f32[8,128], index: 14, kind: output, shape index: {0}]
  %s15 = inlined_call_operand.hbm [shape: f32[8,128], index: 15, kind: output, shape index: {1}]
  %s16 = inlined_call_operand.vmem [shape: f32[6,8,1], index: 16, kind: output, shape index: {2}]
  %17 = xla_tuple %s14, %s15, %s16
  %s18 = sld [smem:[#allocation0]]
  $region102: #{tpu_custom_call.1} parent=0
    _
  %s20 = ssub.s32 1, %s18
  %s21 = scalar_select 0, %s20, %s18
  $region1: #{tpu_custom_call.1} parent=0
    #allocation7 [shape = 'u8[24576]{0}', space=vmem, size = 0x6000, scoped, tag = 'input window, operand 2, single buffered']
    #allocation8 [shape = 's32[1]{0}', space=sflag, size = 0x4, scoped, tag = 'scoped memory for tpu_custom_call.1']
    #allocation9 [shape = 's32[1]{0}', space=sflag, size = 0x4, scoped, tag = 'scoped memory for tpu_custom_call.1']
    #allocation10 [shape = 'u8[131072]{0}', space=vmem, size = 0x20000, scoped, tag = 'input window, operand 5, single buffered']
    #allocation11 [shape = 's32[1]{0}', space=sflag, size = 0x4, scoped, tag = 'scoped memory for tpu_custom_call.1']
    #allocation12 [shape = 'u8[131072]{0}', space=vmem, size = 0x20000, scoped, tag = 'input window, operand 7, single buffered']
    #allocation13 [shape = 'u8[131072]{0}', space=vmem, size = 0x20000, scoped, tag = 'input window, operand 10, single buffered']
    #allocation14 [shape = 's32[1]{0}', space=sflag, size = 0x4, scoped, tag = 'scoped memory for tpu_custom_call.1']
    #allocation15 [shape = 'u8[131072]{0}', space=vmem, size = 0x20000, scoped, tag = 'input window, operand 12, single buffered']
    #allocation16 [shape = 'u8[4096]{0}', space=vmem, size = 0x1000, scoped, tag = 'output window, operand 0, single buffered']
    #allocation17 [shape = 'u8[4096]{0}', space=vmem, size = 0x1000, scoped, tag = 'output window, operand 1, single buffered']
    #allocation18 [shape = 's32[1]{0}', space=sflag, size = 0x4, scoped, tag = 'scoped memory for tpu_custom_call.1']
    %22 = vsyncpa [#allocation8], 0
    %23 = vsyncpa [#allocation11], 0
    %24 = vsyncpa [#allocation14], 0
    %25 = vsyncpa [#allocation9], 0
    %26 = vsyncpa [#allocation18], 0
    // Predicated region
    $region2: #{tpu_custom_call.1} parent=1 // pred_check
      _
    $region3: #{tpu_custom_call.1} parent=1 // pred_check_branch
      %28 = sbr.rel (0) target = $region5
    $region4: #{tpu_custom_call.1} parent=1 // pred_region
      _
    $region5: #{tpu_custom_call.1} parent=1 // pred_fallthru
      _
    // Predicated region
    $region6: #{tpu_custom_call.1} parent=1 // pred_check
      _
    $region7: #{tpu_custom_call.1} parent=1 // pred_check_branch
      %30 = sbr.rel (0) target = $region9
    $region8: #{tpu_custom_call.1} parent=1 // pred_region
      _
    $region9: #{tpu_custom_call.1} parent=1 // pred_fallthru
      _
    // Predicated region
    $region10: #{tpu_custom_call.1} parent=1 // pred_check
      _
    $region11: #{tpu_custom_call.1} parent=1 // pred_check_branch
      %32 = sbr.rel (0) target = $region13
    $region12: #{tpu_custom_call.1} parent=1 // pred_region
      %s34 = ssub.s32 768, 768
      %35 = vsyncadd [#allocation8], %s34
      %s36 = sshll.u32 [#allocation7], 4
      %s37 = int_to_ptr.vmem [resolvable:$true] %s36
      %42 = dma.hbm_to_vmem [thread:$0]  %s2, 768, %s37, [#allocation8], 128, 128, 8
    $region13: #{tpu_custom_call.1} parent=1 // pred_fallthru
      _
    // Predicated region
    $region14: #{tpu_custom_call.1} parent=1 // pred_check
      _
    $region15: #{tpu_custom_call.1} parent=1 // pred_check_branch
      %44 = sbr.rel (0) target = $region17
    $region16: #{tpu_custom_call.1} parent=1 // pred_region
      _
    $region17: #{tpu_custom_call.1} parent=1 // pred_fallthru
      _
    // Predicated region
    $region18: #{tpu_custom_call.1} parent=1 // pred_check
      _
    $region19: #{tpu_custom_call.1} parent=1 // pred_check_branch
      %46 = sbr.rel (0) target = $region21
    $region20: #{tpu_custom_call.1} parent=1 // pred_region
      _
    $region21: #{tpu_custom_call.1} parent=1 // pred_fallthru
      _
    // Predicated region
    $region22: #{tpu_custom_call.1} parent=1 // pred_check
      _
    $region23: #{tpu_custom_call.1} parent=1 // pred_check_branch
      %48 = sbr.rel (0) target = $region25
    $region24: #{tpu_custom_call.1} parent=1 // pred_region
      %s50 = ssub.s32 4096, 4096
      %51 = vsyncadd [#allocation11], %s50
      %s52 = sshll.u32 [#allocation10], 4
      %s53 = int_to_ptr.vmem [resolvable:$true] %s52
      %58 = dma.hbm_to_vmem [thread:$0]  %s5, 4096, %s53, [#allocation11], 256, 256, 16
    $region25: #{tpu_custom_call.1} parent=1 // pred_fallthru
      _
    // Predicated region
    $region26: #{tpu_custom_call.1} parent=1 // pred_check
      _
    $region27: #{tpu_custom_call.1} parent=1 // pred_check_branch
      %60 = sbr.rel (0) target = $region29
    $region28: #{tpu_custom_call.1} parent=1 // pred_region
      _
    $region29: #{tpu_custom_call.1} parent=1 // pred_fallthru
      _
    // Predicated region
    $region30: #{tpu_custom_call.1} parent=1 // pred_check
      _
    $region31: #{tpu_custom_call.1} parent=1 // pred_check_branch
      %62 = sbr.rel (0) target = $region33
    $region32: #{tpu_custom_call.1} parent=1 // pred_region
      %s64 = ssub.s32 4096, 4096
      %65 = vsyncadd [#allocation11], %s64
      %s66 = sshll.u32 [#allocation12], 4
      %s67 = int_to_ptr.vmem [resolvable:$true] %s66
      %72 = dma.hbm_to_vmem [thread:$0]  %s7, 4096, %s67, [#allocation11], 256, 256, 16
    $region33: #{tpu_custom_call.1} parent=1 // pred_fallthru
      _
    // Predicated region
    $region34: #{tpu_custom_call.1} parent=1 // pred_check
      _
    $region35: #{tpu_custom_call.1} parent=1 // pred_check_branch
      %74 = sbr.rel (0) target = $region37
    $region36: #{tpu_custom_call.1} parent=1 // pred_region
      _
    $region37: #{tpu_custom_call.1} parent=1 // pred_fallthru
      _
    // Predicated region
    $region38: #{tpu_custom_call.1} parent=1 // pred_check
      _
    $region39: #{tpu_custom_call.1} parent=1 // pred_check_branch
      %76 = sbr.rel (0) target = $region41
    $region40: #{tpu_custom_call.1} parent=1 // pred_region
      _
    $region41: #{tpu_custom_call.1} parent=1 // pred_fallthru
      _
    // Predicated region
    $region42: #{tpu_custom_call.1} parent=1 // pred_check
      _
    $region43: #{tpu_custom_call.1} parent=1 // pred_check_branch
      %78 = sbr.rel (0) target = $region45
    $region44: #{tpu_custom_call.1} parent=1 // pred_region
      %s80 = ssub.s32 4096, 4096
      %81 = vsyncadd [#allocation14], %s80
      %s82 = sshll.u32 [#allocation13], 4
      %s83 = int_to_ptr.vmem [resolvable:$true] %s82
      %88 = dma.hbm_to_vmem [thread:$0]  %s10, 4096, %s83, [#allocation14], 256, 256, 16
    $region45: #{tpu_custom_call.1} parent=1 // pred_fallthru
      _
    // Predicated region
    $region46: #{tpu_custom_call.1} parent=1 // pred_check
      _
    $region47: #{tpu_custom_call.1} parent=1 // pred_check_branch
      %90 = sbr.rel (0) target = $region49
    $region48: #{tpu_custom_call.1} parent=1 // pred_region
      _
    $region49: #{tpu_custom_call.1} parent=1 // pred_fallthru
      _
    // Predicated region
    $region50: #{tpu_custom_call.1} parent=1 // pred_check
      _
    $region51: #{tpu_custom_call.1} parent=1 // pred_check_branch
      %92 = sbr.rel (0) target = $region53
    $region52: #{tpu_custom_call.1} parent=1 // pred_region
      %s94 = ssub.s32 4096, 4096
      %95 = vsyncadd [#allocation14], %s94
      %s96 = sshll.u32 [#allocation15], 4
      %s97 = int_to_ptr.vmem [resolvable:$true] %s96
      %102 = dma.hbm_to_vmem [thread:$0]  %s12, 4096, %s97, [#allocation14], 256, 256, 16
    $region53: #{tpu_custom_call.1} parent=1 // pred_fallthru
      _
    // Predicated region
    $region54: #{tpu_custom_call.1} parent=1 // pred_check
      _
    $region55: #{tpu_custom_call.1} parent=1 // pred_check_branch
      %104 = sbr.rel (0) target = $region57
    $region56: #{tpu_custom_call.1} parent=1 // pred_region
      _
    $region57: #{tpu_custom_call.1} parent=1 // pred_fallthru
      _
    // Predicated region
    $region58: #{tpu_custom_call.1} parent=1 // pred_check
      _
    $region59: #{tpu_custom_call.1} parent=1 // pred_check_branch
      %106 = sbr.rel (0) target = $region61
    $region60: #{tpu_custom_call.1} parent=1 // pred_region
      %107 = dma.done [#allocation8], 768
    $region61: #{tpu_custom_call.1} parent=1 // pred_fallthru
      _
    // Predicated region
    $region62: #{tpu_custom_call.1} parent=1 // pred_check
      _
    $region63: #{tpu_custom_call.1} parent=1 // pred_check_branch
      %109 = sbr.rel (0) target = $region65
    $region64: #{tpu_custom_call.1} parent=1 // pred_region
      %110 = dma.done [#allocation11], 4096
    $region65: #{tpu_custom_call.1} parent=1 // pred_fallthru
      _
    // Predicated region
    $region66: #{tpu_custom_call.1} parent=1 // pred_check
      _
    $region67: #{tpu_custom_call.1} parent=1 // pred_check_branch
      %112 = sbr.rel (0) target = $region69
    $region68: #{tpu_custom_call.1} parent=1 // pred_region
      %113 = dma.done [#allocation11], 4096
    $region69: #{tpu_custom_call.1} parent=1 // pred_fallthru
      _
    // Predicated region
    $region70: #{tpu_custom_call.1} parent=1 // pred_check
      _
    $region71: #{tpu_custom_call.1} parent=1 // pred_check_branch
      %115 = sbr.rel (0) target = $region73
    $region72: #{tpu_custom_call.1} parent=1 // pred_region
      %116 = dma.done [#allocation14], 4096
    $region73: #{tpu_custom_call.1} parent=1 // pred_fallthru
      _
    // Predicated region
    $region74: #{tpu_custom_call.1} parent=1 // pred_check
      _
    $region75: #{tpu_custom_call.1} parent=1 // pred_check_branch
      %118 = sbr.rel (0) target = $region77
    $region76: #{tpu_custom_call.1} parent=1 // pred_region
      %119 = dma.done [#allocation14], 4096
    $region77: #{tpu_custom_call.1} parent=1 // pred_fallthru
      _
    %v120 = vld [vmem:[%s0] sm:$0xff]
    %v121 = vld [vmem:[%s1] sm:$0xff]
    %v122 = vld [vmem:[%s1 + $0x8] sm:$0xff]
    %v123 = vld [vmem:[%s1 + $0x10] sm:$0xff]
    %v124 = vld [vmem:[%s1 + $0x18] sm:$0xff]
    %v125 = vld [vmem:[%s1 + $0x20] sm:$0xff]
    %v126 = vld [vmem:[%s1 + $0x28] sm:$0xff]
    %v127 = vmul.f32 %v121, %v120
    %v128 = vmul.f32 %v122, %v120
    %v129 = vmul.f32 %v123, %v120
    %v130 = vmul.f32 %v124, %v120
    %v131 = vmul.f32 %v125, %v120
    %v132 = vmul.f32 %v126, %v120
    %133 = vadd.xlane.f32.xlu0 %v127
    %v134 = vpop.xlane.xlu0 %133
    %135 = vadd.xlane.f32.xlu0 %v128
    %v136 = vpop.xlane.xlu0 %135
    %137 = vadd.xlane.f32.xlu0 %v129
    %v138 = vpop.xlane.xlu0 %137
    %139 = vadd.xlane.f32.xlu0 %v130
    %v140 = vpop.xlane.xlu0 %139
    %141 = vadd.xlane.f32.xlu0 %v131
    %v142 = vpop.xlane.xlu0 %141
    %143 = vadd.xlane.f32.xlu0 %v132
    %v144 = vpop.xlane.xlu0 %143
    %v145 = vld [vmem:[%s3] sm:$0xff]
    %v146 = vld [vmem:[%s3 + $0x8] sm:$0xff]
    %v147 = vld [vmem:[%s3 + $0x10] sm:$0xff]
    %v148 = vld [vmem:[%s3 + $0x18] sm:$0xff]
    %v149 = vld [vmem:[%s3 + $0x20] sm:$0xff]
    %v150 = vld [vmem:[%s3 + $0x28] sm:$0xff]
    %vm151 = vcmp.gt.s32.totalorder %v145, 0
    %vm152 = vcmp.gt.s32.totalorder %v146, 0
    %vm153 = vcmp.gt.s32.totalorder %v147, 0
    %vm154 = vcmp.gt.s32.totalorder %v148, 0
    %vm155 = vcmp.gt.s32.totalorder %v149, 0
    %vm156 = vcmp.gt.s32.totalorder %v150, 0
    %v157 = vsel %vm151, -1e+10, %v134
    %v158 = vsel %vm152, -1e+10, %v136
    %v159 = vsel %vm153, -1e+10, %v138
    %v160 = vsel %vm154, -1e+10, %v140
    %v161 = vsel %vm155, -1e+10, %v142
    %v162 = vsel %vm156, -1e+10, %v144
    %vm163 = vcmask 7168
    %v164 = vsel %vm163, %v157, -inf
    %v165 = vsel %vm163, %v158, -inf
    %v166 = vsel %vm163, %v159, -inf
    %v167 = vsel %vm163, %v160, -inf
    %v168 = vsel %vm163, %v161, -inf
    %v169 = vmax.f32 %v164, %v168
    %v170 = vsel %vm163, %v162, -inf
    %v171 = vmax.f32 %v165, %v170
    %v172 = vmax.f32 %v169, %v171
    %v173 = vmax.f32 %v166, %v167
    %v174 = vmax.f32 %v172, %v173
    %v175 = vsub.f32 %v157, %v174
    %v176 = vsub.f32 %v158, %v174
    %v177 = vsub.f32 %v159, %v174
    %v178 = vsub.f32 %v160, %v174
    %v179 = vsub.f32 %v161, %v174
    %v180 = vsub.f32 %v162, %v174
    %v181 = vmul.f32 %v175, 1.442695
    %v182 = vpow.pop %v181
    %v183 = vmul.f32 %v176, 1.442695
    %v184 = vpow.pop %v183
    %v185 = vmul.f32 %v177, 1.442695
    %v186 = vpow.pop %v185
    %v187 = vmul.f32 %v178, 1.442695
    %v188 = vpow.pop %v187
    %v189 = vmul.f32 %v179, 1.442695
    %v190 = vpow.pop %v189
    %v191 = vmul.f32 %v180, 1.442695
    %v192 = vpow.pop %v191
    %v193 = vsel %vm163, %v182, 0.0
    %v194 = vsel %vm163, %v184, 0.0
    %v195 = vadd.f32 %v193, %v194
    %v196 = vsel %vm163, %v186, 0.0
    %v197 = vadd.f32 %v195, %v196
    %v198 = vsel %vm163, %v188, 0.0
    %v199 = vadd.f32 %v197, %v198
    %v200 = vsel %vm163, %v190, 0.0
    %v201 = vadd.f32 %v199, %v200
    %v202 = vsel %vm163, %v192, 0.0
    %v203 = vadd.f32 %v201, %v202
    %v204 = vrcp.pop %v203
    %v205 = vmul.f32 %v182, %v204
    %v206 = vmul.f32 %v184, %v204
    %v207 = vmul.f32 %v186, %v204
    %v208 = vmul.f32 %v188, %v204
    %v209 = vmul.f32 %v190, %v204
    %v210 = vmul.f32 %v192, %v204
    %211 = vst.msk [vmem:[%s16] sm:$0xff] %vm163, %v205
    %212 = vst.msk [vmem:[%s16 + $0x8] sm:$0xff] %vm163, %v206
    %213 = vst.msk [vmem:[%s16 + $0x10] sm:$0xff] %vm163, %v207
    %214 = vst.msk [vmem:[%s16 + $0x18] sm:$0xff] %vm163, %v208
    %215 = vst.msk [vmem:[%s16 + $0x20] sm:$0xff] %vm163, %v209
    %216 = vst.msk [vmem:[%s16 + $0x28] sm:$0xff] %vm163, %v210
    %218 = vset.pattern.permute.xlu0 0
    %219 = vperm.xlu0 %218, %v205
    %v220 = vpop.permute.xlu0 %219
    %223 = vset.pattern.permute.xlu0 0
    %224 = vperm.xlu0 %223, %v206
    %v225 = vpop.permute.xlu0 %224
    %228 = vset.pattern.permute.xlu0 0
    %229 = vperm.xlu0 %228, %v207
    %v230 = vpop.permute.xlu0 %229
    %233 = vset.pattern.permute.xlu0 0
    %234 = vperm.xlu0 %233, %v208
    %v235 = vpop.permute.xlu0 %234
    %238 = vset.pattern.permute.xlu0 0
    %239 = vperm.xlu0 %238, %v209
    %v240 = vpop.permute.xlu0 %239
    %243 = vset.pattern.permute.xlu0 0
    %244 = vperm.xlu0 %243, %v210
    %v245 = vpop.permute.xlu0 %244
    %247 = vst [vmem:[#allocation4] sm:$0xff] %v220
    %248 = vst [vmem:[#allocation4 + $0x8] sm:$0xff] %v225
    %249 = vst [vmem:[#allocation4 + $0x10] sm:$0xff] %v230
    %250 = vst [vmem:[#allocation4 + $0x18] sm:$0xff] %v235
    %251 = vst [vmem:[#allocation4 + $0x20] sm:$0xff] %v240
    %252 = vst [vmem:[#allocation4 + $0x28] sm:$0xff] %v245
    %v253 = vld [vmem:[#allocation7] sm:$0xff]
    %v254 = vld [vmem:[#allocation7 + $0x8] sm:$0xff]
    %v255 = vld [vmem:[#allocation7 + $0x10] sm:$0xff]
    %v256 = vld [vmem:[#allocation7 + $0x18] sm:$0xff]
    %v257 = vld [vmem:[#allocation7 + $0x20] sm:$0xff]
    %v258 = vld [vmem:[#allocation7 + $0x28] sm:$0xff]
    %v259 = vld [vmem:[#allocation10] sm:$0xff]
    %v260 = vld [vmem:[#allocation10 + $0x8] sm:$0xff]
    %v261 = vld [vmem:[#allocation10 + $0x10] sm:$0xff]
    %v262 = vld [vmem:[#allocation10 + $0x18] sm:$0xff]
    %v263 = vld [vmem:[#allocation10 + $0x20] sm:$0xff]
    %v264 = vld [vmem:[#allocation10 + $0x28] sm:$0xff]
    %v265 = vld [vmem:[#allocation10 + $0x30] sm:$0xff]
    %v266 = vld [vmem:[#allocation10 + $0x38] sm:$0xff]
    %v267 = vld [vmem:[#allocation10 + $0x40] sm:$0xff]
    %v268 = vld [vmem:[#allocation10 + $0x48] sm:$0xff]
    %v269 = vld [vmem:[#allocation10 + $0x50] sm:$0xff]
    %v270 = vld [vmem:[#allocation10 + $0x58] sm:$0xff]
    %v271 = vld [vmem:[#allocation10 + $0x60] sm:$0xff]
    %v272 = vld [vmem:[#allocation10 + $0x68] sm:$0xff]
    %v273 = vld [vmem:[#allocation10 + $0x70] sm:$0xff]
    %v274 = vld [vmem:[#allocation10 + $0x78] sm:$0xff]
    %v275 = vld [vmem:[#allocation10 + $0x80] sm:$0xff]
    %v276 = vld [vmem:[#allocation10 + $0x88] sm:$0xff]
    %v277 = vld [vmem:[#allocation10 + $0x90] sm:$0xff]
    %v278 = vld [vmem:[#allocation10 + $0x98] sm:$0xff]
    %v279 = vld [vmem:[#allocation10 + $0xa0] sm:$0xff]
    %v280 = vld [vmem:[#allocation10 + $0xa8] sm:$0xff]
    %v281 = vld [vmem:[#allocation10 + $0xb0] sm:$0xff]
    %v282 = vld [vmem:[#allocation10 + $0xb8] sm:$0xff]
    %v283 = vld [vmem:[#allocation10 + $0xc0] sm:$0xff]
    %v284 = vld [vmem:[#allocation10 + $0xc8] sm:$0xff]
    %v285 = vld [vmem:[#allocation10 + $0xd0] sm:$0xff]
    %v286 = vld [vmem:[#allocation10 + $0xd8] sm:$0xff]
    %v287 = vld [vmem:[#allocation10 + $0xe0] sm:$0xff]
    %v288 = vld [vmem:[#allocation10 + $0xe8] sm:$0xff]
    %v289 = vld [vmem:[#allocation10 + $0xf0] sm:$0xff]
    %v290 = vld [vmem:[#allocation10 + $0xf8] sm:$0xff]
    %v291 = vld [vmem:[%s6] sm:$0x3]
    %v293 = vlaneseq
    %v294 = vshrl.u32 %v293, 7
    %v295 = vsub.s32 0, %v294
    %v296 = vrot.slane %v291, %v295
    %v297 = vlaneseq
    %v298 = vshrl.u32 %v297, 7
    %v299 = vsub.s32 1, %v298
    %v300 = vrot.slane %v291, %v299
    %303 = vmatprep.subr.mxu0 %v260
    %304 = vmatpush1.msra.mxu0 %v259
    %305 = vmatprep.subr.mxu0 %v262
    %306 = vmatpush1.msra.mxu0 %v261
    %307 = vmatprep.subr.mxu0 %v264
    %308 = vmatpush1.msra.mxu0 %v263
    %309 = vmatprep.subr.mxu0 %v266
    %310 = vmatpush1.msra.mxu0 %v265
    %311 = vmatprep.subr.mxu0 %v268
    %312 = vmatpush1.msra.mxu0 %v267
    %313 = vmatprep.subr.mxu0 %v270
    %314 = vmatpush1.msra.mxu0 %v269
    %315 = vmatprep.subr.mxu0 %v272
    %316 = vmatpush1.msra.mxu0 %v271
    %317 = vmatprep.subr.mxu0 %v274
    %318 = vmatpush1.msra.mxu0 %v273
    %319 = vmatprep.subr.mxu0 %v276
    %320 = vmatpush1.msra.mxu0 %v275
    %321 = vmatprep.subr.mxu0 %v278
    %322 = vmatpush1.msra.mxu0 %v277
    %323 = vmatprep.subr.mxu0 %v280
    %324 = vmatpush1.msra.mxu0 %v279
    %325 = vmatprep.subr.mxu0 %v282
    %326 = vmatpush1.msra.mxu0 %v281
    %327 = vmatprep.subr.mxu0 %v284
    %328 = vmatpush1.msra.mxu0 %v283
    %329 = vmatprep.subr.mxu0 %v286
    %330 = vmatpush1.msra.mxu0 %v285
    %331 = vmatprep.subr.mxu0 %v288
    %332 = vmatpush1.msra.mxu0 %v287
    %333 = vmatprep.subr.mxu0 %v290
    %334 = vmatpush1.msra.mxu0 %v289
    %335 = vmatprep.subr.mxu0 0.0
    %336 = vmatpush1.msra.mxu0 0.0
    %337 = vmatprep.subr.mxu0 0.0
    %338 = vmatpush1.msra.mxu0 0.0
    %339 = vmatprep.subr.mxu0 0.0
    %340 = vmatpush1.msra.mxu0 0.0
    %341 = vmatprep.subr.mxu0 0.0
    %342 = vmatpush1.msra.mxu0 0.0
    %343 = vmatprep.subr.mxu0 0.0
    %344 = vmatpush1.msra.mxu0 0.0
    %345 = vmatprep.subr.mxu0 0.0
    %346 = vmatpush1.msra.mxu0 0.0
    %347 = vmatprep.subr.mxu0 0.0
    %348 = vmatpush1.msra.mxu0 0.0
    %349 = vmatprep.subr.mxu0 0.0
    %350 = vmatpush1.msra.mxu0 0.0
    %351 = vmatprep.subr.mxu0 0.0
    %352 = vmatpush1.msra.mxu0 0.0
    %353 = vmatprep.subr.mxu0 0.0
    %354 = vmatpush1.msra.mxu0 0.0
    %355 = vmatprep.subr.mxu0 0.0
    %356 = vmatpush1.msra.mxu0 0.0
    %357 = vmatprep.subr.mxu0 0.0
    %358 = vmatpush1.msra.mxu0 0.0
    %359 = vmatprep.subr.mxu0 0.0
    %360 = vmatpush1.msra.mxu0 0.0
    %361 = vmatprep.subr.mxu0 0.0
    %362 = vmatpush1.msra.mxu0 0.0
    %363 = vmatprep.subr.mxu0 0.0
    %364 = vmatpush1.msra.mxu0 0.0
    %365 = vmatprep.subr.mxu0 0.0
    %366 = vmatpush1.msra.mxu0 0.0
    %367 = vmatprep.mubr.f32.mxu0 0.0
    %368 = vmatmul.mubr.f32.gmra.mrb[0].mxu0 %v253
    %v369 = vpop.f32.mrb[0].mxu0
    %v370 = vadd.f32 %v296, %v369
    %v371 = vpop.f32.mrb[0].mxu0
    %v372 = vadd.f32 %v300, %v371
    %373 = vmatprep.mubr.f32.mxu0 0.0
    %374 = vmatmul.mubr.f32.gmra.mrb[0].mxu0 %v254
    %v375 = vpop.f32.mrb[0].mxu0
    %v376 = vadd.f32 %v296, %v375
    %v377 = vpop.f32.mrb[0].mxu0
    %v378 = vadd.f32 %v300, %v377
    %379 = vmatprep.mubr.f32.mxu0 0.0
    %380 = vmatmul.mubr.f32.gmra.mrb[0].mxu0 %v255
    %v381 = vpop.f32.mrb[0].mxu0
    %v382 = vadd.f32 %v296, %v381
    %v383 = vpop.f32.mrb[0].mxu0
    %v384 = vadd.f32 %v300, %v383
    %385 = vmatprep.mubr.f32.mxu0 0.0
    %386 = vmatmul.mubr.f32.gmra.mrb[0].mxu0 %v256
    %v387 = vpop.f32.mrb[0].mxu0
    %v388 = vadd.f32 %v296, %v387
    %v389 = vpop.f32.mrb[0].mxu0
    %v390 = vadd.f32 %v300, %v389
    %391 = vmatprep.mubr.f32.mxu0 0.0
    %392 = vmatmul.mubr.f32.gmra.mrb[0].mxu0 %v257
    %v393 = vpop.f32.mrb[0].mxu0
    %v394 = vadd.f32 %v296, %v393
    %v395 = vpop.f32.mrb[0].mxu0
    %v396 = vadd.f32 %v300, %v395
    %397 = vmatprep.mubr.f32.mxu0 0.0
    %398 = vmatmul.mubr.f32.gmra.mrb[0].mxu0 %v258
    %v399 = vpop.f32.mrb[0].mxu0
    %v400 = vadd.f32 %v296, %v399
    %v401 = vpop.f32.mrb[0].mxu0
    %v402 = vadd.f32 %v300, %v401
    %403 = vdwg.mxu0
    %404 = vst [vmem:[#allocation2] sm:$0xff] %v370
    %405 = vst [vmem:[#allocation2 + $0x8] sm:$0xff] %v372
    %406 = vst [vmem:[#allocation2 + $0x10] sm:$0xff] %v376
    %407 = vst [vmem:[#allocation2 + $0x18] sm:$0xff] %v378
    %408 = vst [vmem:[#allocation2 + $0x20] sm:$0xff] %v382
    %409 = vst [vmem:[#allocation2 + $0x28] sm:$0xff] %v384
    %410 = vst [vmem:[#allocation2 + $0x30] sm:$0xff] %v388
    %411 = vst [vmem:[#allocation2 + $0x38] sm:$0xff] %v390
    %412 = vst [vmem:[#allocation2 + $0x40] sm:$0xff] %v394
    %413 = vst [vmem:[#allocation2 + $0x48] sm:$0xff] %v396
    %414 = vst [vmem:[#allocation2 + $0x50] sm:$0xff] %v400
    %415 = vst [vmem:[#allocation2 + $0x58] sm:$0xff] %v402
    %v416 = vld [vmem:[#allocation13] sm:$0xff]
    %v417 = vld [vmem:[#allocation13 + $0x8] sm:$0xff]
    %v418 = vld [vmem:[#allocation13 + $0x10] sm:$0xff]
    %v419 = vld [vmem:[#allocation13 + $0x18] sm:$0xff]
    %v420 = vld [vmem:[#allocation13 + $0x20] sm:$0xff]
    %v421 = vld [vmem:[#allocation13 + $0x28] sm:$0xff]
    %v422 = vld [vmem:[#allocation13 + $0x30] sm:$0xff]
    %v423 = vld [vmem:[#allocation13 + $0x38] sm:$0xff]
    %v424 = vld [vmem:[#allocation13 + $0x40] sm:$0xff]
    %v425 = vld [vmem:[#allocation13 + $0x48] sm:$0xff]
    %v426 = vld [vmem:[#allocation13 + $0x50] sm:$0xff]
    %v427 = vld [vmem:[#allocation13 + $0x58] sm:$0xff]
    %v428 = vld [vmem:[#allocation13 + $0x60] sm:$0xff]
    %v429 = vld [vmem:[#allocation13 + $0x68] sm:$0xff]
    %v430 = vld [vmem:[#allocation13 + $0x70] sm:$0xff]
    %v431 = vld [vmem:[#allocation13 + $0x78] sm:$0xff]
    %v432 = vld [vmem:[#allocation13 + $0x80] sm:$0xff]
    %v433 = vld [vmem:[#allocation13 + $0x88] sm:$0xff]
    %v434 = vld [vmem:[#allocation13 + $0x90] sm:$0xff]
    %v435 = vld [vmem:[#allocation13 + $0x98] sm:$0xff]
    %v436 = vld [vmem:[#allocation13 + $0xa0] sm:$0xff]
    %v437 = vld [vmem:[#allocation13 + $0xa8] sm:$0xff]
    %v438 = vld [vmem:[#allocation13 + $0xb0] sm:$0xff]
    %v439 = vld [vmem:[#allocation13 + $0xb8] sm:$0xff]
    %v440 = vld [vmem:[#allocation13 + $0xc0] sm:$0xff]
    %v441 = vld [vmem:[#allocation13 + $0xc8] sm:$0xff]
    %v442 = vld [vmem:[#allocation13 + $0xd0] sm:$0xff]
    %v443 = vld [vmem:[#allocation13 + $0xd8] sm:$0xff]
    %v444 = vld [vmem:[#allocation13 + $0xe0] sm:$0xff]
    %v445 = vld [vmem:[#allocation13 + $0xe8] sm:$0xff]
    %v446 = vld [vmem:[#allocation13 + $0xf0] sm:$0xff]
    %v447 = vld [vmem:[#allocation13 + $0xf8] sm:$0xff]
    %v448 = vld [vmem:[%s11] sm:$0x3]
    %v450 = vlaneseq
    %v451 = vshrl.u32 %v450, 7
    %v452 = vsub.s32 0, %v451
    %v453 = vrot.slane %v448, %v452
    %v454 = vlaneseq
    %v455 = vshrl.u32 %v454, 7
    %v456 = vsub.s32 1, %v455
    %v457 = vrot.slane %v448, %v456
    %460 = vmatprep.subr.mxu0 %v417
    %461 = vmatpush1.msra.mxu0 %v416
    %462 = vmatprep.subr.mxu0 %v419
    %463 = vmatpush1.msra.mxu0 %v418
    %464 = vmatprep.subr.mxu0 %v421
    %465 = vmatpush1.msra.mxu0 %v420
    %466 = vmatprep.subr.mxu0 %v423
    %467 = vmatpush1.msra.mxu0 %v422
    %468 = vmatprep.subr.mxu0 %v425
    %469 = vmatpush1.msra.mxu0 %v424
    %470 = vmatprep.subr.mxu0 %v427
    %471 = vmatpush1.msra.mxu0 %v426
    %472 = vmatprep.subr.mxu0 %v429
    %473 = vmatpush1.msra.mxu0 %v428
    %474 = vmatprep.subr.mxu0 %v431
    %475 = vmatpush1.msra.mxu0 %v430
    %476 = vmatprep.subr.mxu0 %v433
    %477 = vmatpush1.msra.mxu0 %v432
    %478 = vmatprep.subr.mxu0 %v435
    %479 = vmatpush1.msra.mxu0 %v434
    %480 = vmatprep.subr.mxu0 %v437
    %481 = vmatpush1.msra.mxu0 %v436
    %482 = vmatprep.subr.mxu0 %v439
    %483 = vmatpush1.msra.mxu0 %v438
    %484 = vmatprep.subr.mxu0 %v441
    %485 = vmatpush1.msra.mxu0 %v440
    %486 = vmatprep.subr.mxu0 %v443
    %487 = vmatpush1.msra.mxu0 %v442
    %488 = vmatprep.subr.mxu0 %v445
    %489 = vmatpush1.msra.mxu0 %v444
    %490 = vmatprep.subr.mxu0 %v447
    %491 = vmatpush1.msra.mxu0 %v446
    %492 = vmatprep.subr.mxu0 0.0
    %493 = vmatpush1.msra.mxu0 0.0
    %494 = vmatprep.subr.mxu0 0.0
    %495 = vmatpush1.msra.mxu0 0.0
    %496 = vmatprep.subr.mxu0 0.0
    %497 = vmatpush1.msra.mxu0 0.0
    %498 = vmatprep.subr.mxu0 0.0
    %499 = vmatpush1.msra.mxu0 0.0
    %500 = vmatprep.subr.mxu0 0.0
    %501 = vmatpush1.msra.mxu0 0.0
    %502 = vmatprep.subr.mxu0 0.0
    %503 = vmatpush1.msra.mxu0 0.0
    %504 = vmatprep.subr.mxu0 0.0
    %505 = vmatpush1.msra.mxu0 0.0
    %506 = vmatprep.subr.mxu0 0.0
    %507 = vmatpush1.msra.mxu0 0.0
    %508 = vmatprep.subr.mxu0 0.0
    %509 = vmatpush1.msra.mxu0 0.0
    %510 = vmatprep.subr.mxu0 0.0
    %511 = vmatpush1.msra.mxu0 0.0
    %512 = vmatprep.subr.mxu0 0.0
    %513 = vmatpush1.msra.mxu0 0.0
    %514 = vmatprep.subr.mxu0 0.0
    %515 = vmatpush1.msra.mxu0 0.0
    %516 = vmatprep.subr.mxu0 0.0
    %517 = vmatpush1.msra.mxu0 0.0
    %518 = vmatprep.subr.mxu0 0.0
    %519 = vmatpush1.msra.mxu0 0.0
    %520 = vmatprep.subr.mxu0 0.0
    %521 = vmatpush1.msra.mxu0 0.0
    %522 = vmatprep.subr.mxu0 0.0
    %523 = vmatpush1.msra.mxu0 0.0
    %524 = vmatprep.mubr.f32.mxu0 0.0
    %525 = vmatmul.mubr.f32.gmra.mrb[0].mxu0 %v253
    %v526 = vpop.f32.mrb[0].mxu0
    %v527 = vadd.f32 %v453, %v526
    %v528 = vpop.f32.mrb[0].mxu0
    %v529 = vadd.f32 %v457, %v528
    %530 = vmatprep.mubr.f32.mxu0 0.0
    %531 = vmatmul.mubr.f32.gmra.mrb[0].mxu0 %v254
    %v532 = vpop.f32.mrb[0].mxu0
    %v533 = vadd.f32 %v453, %v532
    %v534 = vpop.f32.mrb[0].mxu0
    %v535 = vadd.f32 %v457, %v534
    %536 = vmatprep.mubr.f32.mxu0 0.0
    %537 = vmatmul.mubr.f32.gmra.mrb[0].mxu0 %v255
    %v538 = vpop.f32.mrb[0].mxu0
    %v539 = vadd.f32 %v453, %v538
    %v540 = vpop.f32.mrb[0].mxu0
    %v541 = vadd.f32 %v457, %v540
    %542 = vmatprep.mubr.f32.mxu0 0.0
    %543 = vmatmul.mubr.f32.gmra.mrb[0].mxu0 %v256
    %v544 = vpop.f32.mrb[0].mxu0
    %v545 = vadd.f32 %v453, %v544
    %v546 = vpop.f32.mrb[0].mxu0
    %v547 = vadd.f32 %v457, %v546
    %548 = vmatprep.mubr.f32.mxu0 0.0
    %549 = vmatmul.mubr.f32.gmra.mrb[0].mxu0 %v257
    %v550 = vpop.f32.mrb[0].mxu0
    %v551 = vadd.f32 %v453, %v550
    %v552 = vpop.f32.mrb[0].mxu0
    %v553 = vadd.f32 %v457, %v552
    %554 = vmatprep.mubr.f32.mxu0 0.0
    %555 = vmatmul.mubr.f32.gmra.mrb[0].mxu0 %v258
    %v556 = vpop.f32.mrb[0].mxu0
    %v557 = vadd.f32 %v453, %v556
    %v558 = vpop.f32.mrb[0].mxu0
    %v559 = vadd.f32 %v457, %v558
    %560 = vdwg.mxu0
    %561 = vst [vmem:[#allocation3] sm:$0xff] %v527
    %562 = vst [vmem:[#allocation3 + $0x8] sm:$0xff] %v529
    %563 = vst [vmem:[#allocation3 + $0x10] sm:$0xff] %v533
    %564 = vst [vmem:[#allocation3 + $0x18] sm:$0xff] %v535
    %565 = vst [vmem:[#allocation3 + $0x20] sm:$0xff] %v539
    %566 = vst [vmem:[#allocation3 + $0x28] sm:$0xff] %v541
    %567 = vst [vmem:[#allocation3 + $0x30] sm:$0xff] %v545
    %568 = vst [vmem:[#allocation3 + $0x38] sm:$0xff] %v547
    %569 = vst [vmem:[#allocation3 + $0x40] sm:$0xff] %v551
    %570 = vst [vmem:[#allocation3 + $0x48] sm:$0xff] %v553
    %571 = vst [vmem:[#allocation3 + $0x50] sm:$0xff] %v557
    %572 = vst [vmem:[#allocation3 + $0x58] sm:$0xff] %v559
    %v573 = vld [vmem:[%s8] sm:$0x1]
    %v575 = vlaneseq
    %v576 = vshrl.u32 %v575, 7
    %v577 = vsub.s32 0, %v576
    %v578 = vrot.slane %v573, %v577
    %v580 = vld [vmem:[%s13] sm:$0x1]
    %v582 = vlaneseq
    %v583 = vshrl.u32 %v582, 7
    %v584 = vsub.s32 0, %v583
    %v585 = vrot.slane %v580, %v584
    %v587 = vld [vmem:[%s4] sm:$0xff]
    %588 = vst [vmem:[#allocation5] sm:$0xff] %v587
    %v589 = vld [vmem:[%s9] sm:$0xff]
    %590 = vst [vmem:[#allocation6] sm:$0xff] %v589
    %s591 = smul.u32 0, 2
    %s592 = smul.addr %s591, 8
    %s593 = scalar_lea.vmem [#allocation2], %s592
    %v594 = vld [vmem:[%s593] sm:$0xff]
    %v595 = vld [vmem:[%s593 + $0x8] sm:$0xff]
    %v596 = vld [vmem:[#allocation4] sm:$0xff]
    %v597 = vld [vmem:[#allocation5] sm:$0xff]
    %v598 = vld [vmem:[#allocation12] sm:$0xff]
    %v599 = vld [vmem:[#allocation12 + $0x8] sm:$0xff]
    %v600 = vld [vmem:[#allocation12 + $0x10] sm:$0xff]
    %v601 = vld [vmem:[#allocation12 + $0x18] sm:$0xff]
    %v602 = vld [vmem:[#allocation12 + $0x20] sm:$0xff]
    %v603 = vld [vmem:[#allocation12 + $0x28] sm:$0xff]
    %v604 = vld [vmem:[#allocation12 + $0x30] sm:$0xff]
    %v605 = vld [vmem:[#allocation12 + $0x38] sm:$0xff]
    %v606 = vld [vmem:[#allocation12 + $0x40] sm:$0xff]
    %v607 = vld [vmem:[#allocation12 + $0x48] sm:$0xff]
    %v608 = vld [vmem:[#allocation12 + $0x50] sm:$0xff]
    %v609 = vld [vmem:[#allocation12 + $0x58] sm:$0xff]
    %v610 = vld [vmem:[#allocation12 + $0x60] sm:$0xff]
    %v611 = vld [vmem:[#allocation12 + $0x68] sm:$0xff]
    %v612 = vld [vmem:[#allocation12 + $0x70] sm:$0xff]
    %v613 = vld [vmem:[#allocation12 + $0x78] sm:$0xff]
    %v614 = vld [vmem:[#allocation12 + $0x80] sm:$0xff]
    %v615 = vld [vmem:[#allocation12 + $0x88] sm:$0xff]
    %v616 = vld [vmem:[#allocation12 + $0x90] sm:$0xff]
    %v617 = vld [vmem:[#allocation12 + $0x98] sm:$0xff]
    %v618 = vld [vmem:[#allocation12 + $0xa0] sm:$0xff]
    %v619 = vld [vmem:[#allocation12 + $0xa8] sm:$0xff]
    %v620 = vld [vmem:[#allocation12 + $0xb0] sm:$0xff]
    %v621 = vld [vmem:[#allocation12 + $0xb8] sm:$0xff]
    %v622 = vld [vmem:[#allocation12 + $0xc0] sm:$0xff]
    %v623 = vld [vmem:[#allocation12 + $0xc8] sm:$0xff]
    %v624 = vld [vmem:[#allocation12 + $0xd0] sm:$0xff]
    %v625 = vld [vmem:[#allocation12 + $0xd8] sm:$0xff]
    %v626 = vld [vmem:[#allocation12 + $0xe0] sm:$0xff]
    %v627 = vld [vmem:[#allocation12 + $0xe8] sm:$0xff]
    %v628 = vld [vmem:[#allocation12 + $0xf0] sm:$0xff]
    %v629 = vld [vmem:[#allocation12 + $0xf8] sm:$0xff]
    %630 = vmatprep.subr.mxu0 %v599
    %631 = vmatpush1.msra.mxu0 %v598
    %632 = vmatprep.subr.mxu0 %v601
    %633 = vmatpush1.msra.mxu0 %v600
    %634 = vmatprep.subr.mxu0 %v603
    %635 = vmatpush1.msra.mxu0 %v602
    %636 = vmatprep.subr.mxu0 %v605
    %637 = vmatpush1.msra.mxu0 %v604
    %638 = vmatprep.subr.mxu0 %v607
    %639 = vmatpush1.msra.mxu0 %v606
    %640 = vmatprep.subr.mxu0 %v609
    %641 = vmatpush1.msra.mxu0 %v608
    %642 = vmatprep.subr.mxu0 %v611
    %643 = vmatpush1.msra.mxu0 %v610
    %644 = vmatprep.subr.mxu0 %v613
    %645 = vmatpush1.msra.mxu0 %v612
    %646 = vmatprep.subr.mxu0 %v615
    %647 = vmatpush1.msra.mxu0 %v614
    %648 = vmatprep.subr.mxu0 %v617
    %649 = vmatpush1.msra.mxu0 %v616
    %650 = vmatprep.subr.mxu0 %v619
    %651 = vmatpush1.msra.mxu0 %v618
    %652 = vmatprep.subr.mxu0 %v621
    %653 = vmatpush1.msra.mxu0 %v620
    %654 = vmatprep.subr.mxu0 %v623
    %655 = vmatpush1.msra.mxu0 %v622
    %656 = vmatprep.subr.mxu0 %v625
    %657 = vmatpush1.msra.mxu0 %v624
    %658 = vmatprep.subr.mxu0 %v627
    %659 = vmatpush1.msra.mxu0 %v626
    %660 = vmatprep.subr.mxu0 %v629
    %661 = vmatpush1.msra.mxu0 %v628
    %662 = vmatprep.subr.mxu0 0.0
    %663 = vmatpush1.msra.mxu0 0.0
    %664 = vmatprep.subr.mxu0 0.0
    %665 = vmatpush1.msra.mxu0 0.0
    %666 = vmatprep.subr.mxu0 0.0
    %667 = vmatpush1.msra.mxu0 0.0
    %668 = vmatprep.subr.mxu0 0.0
    %669 = vmatpush1.msra.mxu0 0.0
    %670 = vmatprep.subr.mxu0 0.0
    %671 = vmatpush1.msra.mxu0 0.0
    %672 = vmatprep.subr.mxu0 0.0
    %673 = vmatpush1.msra.mxu0 0.0
    %674 = vmatprep.subr.mxu0 0.0
    %675 = vmatpush1.msra.mxu0 0.0
    %676 = vmatprep.subr.mxu0 0.0
    %677 = vmatpush1.msra.mxu0 0.0
    %678 = vmatprep.subr.mxu0 0.0
    %679 = vmatpush1.msra.mxu0 0.0
    %680 = vmatprep.subr.mxu0 0.0
    %681 = vmatpush1.msra.mxu0 0.0
    %682 = vmatprep.subr.mxu0 0.0
    %683 = vmatpush1.msra.mxu0 0.0
    %684 = vmatprep.subr.mxu0 0.0
    %685 = vmatpush1.msra.mxu0 0.0
    %686 = vmatprep.subr.mxu0 0.0
    %687 = vmatpush1.msra.mxu0 0.0
    %688 = vmatprep.subr.mxu0 0.0
    %689 = vmatpush1.msra.mxu0 0.0
    %690 = vmatprep.subr.mxu0 0.0
    %691 = vmatpush1.msra.mxu0 0.0
    %692 = vmatprep.subr.mxu0 0.0
    %693 = vmatpush1.msra.mxu0 0.0
    %694 = vmatprep.mubr.f32.mxu0 0.0
    %695 = vmatmul.mubr.f32.gmra.mrb[0].mxu0 %v597
    %v696 = vpop.f32.mrb[0].mxu0
    %v697 = vadd.f32 0.0, %v696
    %v698 = vpop.f32.mrb[0].mxu0
    %v699 = vadd.f32 0.0, %v698
    %700 = vdwg.mxu0
    %v701 = vadd.f32 %v594, %v697
    %v702 = vxor.u32 %v701, 2147483648
    %v703 = vmul.f32 %v702, 1.442695
    %v704 = vpow.pop %v703
    %v705 = vadd.f32 %v704, 1.0
    %v706 = vrcp.pop %v705
    %v707 = vmul.f32 1.0, %v706
    %v708 = vadd.f32 %v699, %v578
    %v709 = vmul.f32 %v707, %v708
    %v710 = vadd.f32 %v595, %v709
    %v711 = vtanh.pop %v710
    %v712 = vmul.f32 %v596, %v711
    %v713 = vsub.f32 1.0, %v596
    %v714 = vmul.f32 %v713, %v597
    %v715 = vadd.f32 %v712, %v714
    %716 = vst [vmem:[#allocation5] sm:$0xff] %v715
    %s717 = smul.u32 5, 2
    %s718 = smul.addr %s717, 8
    %s719 = scalar_lea.vmem [#allocation3], %s718
    %v720 = vld [vmem:[%s719] sm:$0xff]
    %v721 = vld [vmem:[%s719 + $0x8] sm:$0xff]
    %s722 = scalar_lea.vmem [#allocation4], 40
    %v723 = vld [vmem:[%s722] sm:$0xff]
    %v724 = vld [vmem:[#allocation6] sm:$0xff]
    %v725 = vld [vmem:[#allocation15] sm:$0xff]
    %v726 = vld [vmem:[#allocation15 + $0x8] sm:$0xff]
    %v727 = vld [vmem:[#allocation15 + $0x10] sm:$0xff]
    %v728 = vld [vmem:[#allocation15 + $0x18] sm:$0xff]
    %v729 = vld [vmem:[#allocation15 + $0x20] sm:$0xff]
    %v730 = vld [vmem:[#allocation15 + $0x28] sm:$0xff]
    %v731 = vld [vmem:[#allocation15 + $0x30] sm:$0xff]
    %v732 = vld [vmem:[#allocation15 + $0x38] sm:$0xff]
    %v733 = vld [vmem:[#allocation15 + $0x40] sm:$0xff]
    %v734 = vld [vmem:[#allocation15 + $0x48] sm:$0xff]
    %v735 = vld [vmem:[#allocation15 + $0x50] sm:$0xff]
    %v736 = vld [vmem:[#allocation15 + $0x58] sm:$0xff]
    %v737 = vld [vmem:[#allocation15 + $0x60] sm:$0xff]
    %v738 = vld [vmem:[#allocation15 + $0x68] sm:$0xff]
    %v739 = vld [vmem:[#allocation15 + $0x70] sm:$0xff]
    %v740 = vld [vmem:[#allocation15 + $0x78] sm:$0xff]
    %v741 = vld [vmem:[#allocation15 + $0x80] sm:$0xff]
    %v742 = vld [vmem:[#allocation15 + $0x88] sm:$0xff]
    %v743 = vld [vmem:[#allocation15 + $0x90] sm:$0xff]
    %v744 = vld [vmem:[#allocation15 + $0x98] sm:$0xff]
    %v745 = vld [vmem:[#allocation15 + $0xa0] sm:$0xff]
    %v746 = vld [vmem:[#allocation15 + $0xa8] sm:$0xff]
    %v747 = vld [vmem:[#allocation15 + $0xb0] sm:$0xff]
    %v748 = vld [vmem:[#allocation15 + $0xb8] sm:$0xff]
    %v749 = vld [vmem:[#allocation15 + $0xc0] sm:$0xff]
    %v750 = vld [vmem:[#allocation15 + $0xc8] sm:$0xff]
    %v751 = vld [vmem:[#allocation15 + $0xd0] sm:$0xff]
    %v752 = vld [vmem:[#allocation15 + $0xd8] sm:$0xff]
    %v753 = vld [vmem:[#allocation15 + $0xe0] sm:$0xff]
    %v754 = vld [vmem:[#allocation15 + $0xe8] sm:$0xff]
    %v755 = vld [vmem:[#allocation15 + $0xf0] sm:$0xff]
    %v756 = vld [vmem:[#allocation15 + $0xf8] sm:$0xff]
    %757 = vmatprep.subr.mxu0 %v726
    %758 = vmatpush1.msra.mxu0 %v725
    %759 = vmatprep.subr.mxu0 %v728
    %760 = vmatpush1.msra.mxu0 %v727
    %761 = vmatprep.subr.mxu0 %v730
    %762 = vmatpush1.msra.mxu0 %v729
    %763 = vmatprep.subr.mxu0 %v732
    %764 = vmatpush1.msra.mxu0 %v731
    %765 = vmatprep.subr.mxu0 %v734
    %766 = vmatpush1.msra.mxu0 %v733
    %767 = vmatprep.subr.mxu0 %v736
    %768 = vmatpush1.msra.mxu0 %v735
    %769 = vmatprep.subr.mxu0 %v738
    %770 = vmatpush1.msra.mxu0 %v737
    %771 = vmatprep.subr.mxu0 %v740
    %772 = vmatpush1.msra.mxu0 %v739
    %773 = vmatprep.subr.mxu0 %v742
    %774 = vmatpush1.msra.mxu0 %v741
    %775 = vmatprep.subr.mxu0 %v744
    %776 = vmatpush1.msra.mxu0 %v743
    %777 = vmatprep.subr.mxu0 %v746
    %778 = vmatpush1.msra.mxu0 %v745
    %779 = vmatprep.subr.mxu0 %v748
    %780 = vmatpush1.msra.mxu0 %v747
    %781 = vmatprep.subr.mxu0 %v750
    %782 = vmatpush1.msra.mxu0 %v749
    %783 = vmatprep.subr.mxu0 %v752
    %784 = vmatpush1.msra.mxu0 %v751
    %785 = vmatprep.subr.mxu0 %v754
    %786 = vmatpush1.msra.mxu0 %v753
    %787 = vmatprep.subr.mxu0 %v756
    %788 = vmatpush1.msra.mxu0 %v755
    %789 = vmatprep.subr.mxu0 0.0
    %790 = vmatpush1.msra.mxu0 0.0
    %791 = vmatprep.subr.mxu0 0.0
    %792 = vmatpush1.msra.mxu0 0.0
    %793 = vmatprep.subr.mxu0 0.0
    %794 = vmatpush1.msra.mxu0 0.0
    %795 = vmatprep.subr.mxu0 0.0
    %796 = vmatpush1.msra.mxu0 0.0
    %797 = vmatprep.subr.mxu0 0.0
    %798 = vmatpush1.msra.mxu0 0.0
    %799 = vmatprep.subr.mxu0 0.0
    %800 = vmatpush1.msra.mxu0 0.0
    %801 = vmatprep.subr.mxu0 0.0
    %802 = vmatpush1.msra.mxu0 0.0
    %803 = vmatprep.subr.mxu0 0.0
    %804 = vmatpush1.msra.mxu0 0.0
    %805 = vmatprep.subr.mxu0 0.0
    %806 = vmatpush1.msra.mxu0 0.0
    %807 = vmatprep.subr.mxu0 0.0
    %808 = vmatpush1.msra.mxu0 0.0
    %809 = vmatprep.subr.mxu0 0.0
    %810 = vmatpush1.msra.mxu0 0.0
    %811 = vmatprep.subr.mxu0 0.0
    %812 = vmatpush1.msra.mxu0 0.0
    %813 = vmatprep.subr.mxu0 0.0
    %814 = vmatpush1.msra.mxu0 0.0
    %815 = vmatprep.subr.mxu0 0.0
    %816 = vmatpush1.msra.mxu0 0.0
    %817 = vmatprep.subr.mxu0 0.0
    %818 = vmatpush1.msra.mxu0 0.0
    %819 = vmatprep.subr.mxu0 0.0
    %820 = vmatpush1.msra.mxu0 0.0
    %821 = vmatprep.mubr.f32.mxu0 0.0
    %822 = vmatmul.mubr.f32.gmra.mrb[0].mxu0 %v724
    %v823 = vpop.f32.mrb[0].mxu0
    %v824 = vadd.f32 0.0, %v823
    %v825 = vpop.f32.mrb[0].mxu0
    %v826 = vadd.f32 0.0, %v825
    %827 = vdwg.mxu0
    %v828 = vadd.f32 %v720, %v824
    %v829 = vxor.u32 %v828, 2147483648
    %v830 = vmul.f32 %v829, 1.442695
    %v831 = vpow.pop %v830
    %v832 = vadd.f32 %v831, 1.0
    %v833 = vrcp.pop %v832
    %v834 = vmul.f32 1.0, %v833
    %v835 = vadd.f32 %v826, %v585
    %v836 = vmul.f32 %v834, %v835
    %v837 = vadd.f32 %v721, %v836
    %v838 = vtanh.pop %v837
    %v839 = vmul.f32 %v723, %v838
    %v840 = vsub.f32 1.0, %v723
    %v841 = vmul.f32 %v840, %v724
    %v842 = vadd.f32 %v839, %v841
    %843 = vst [vmem:[#allocation6] sm:$0xff] %v842
    %s844 = smul.u32 1, 2
    %s845 = smul.addr %s844, 8
    %s846 = scalar_lea.vmem [#allocation2], %s845
    %v847 = vld [vmem:[%s846] sm:$0xff]
    %v848 = vld [vmem:[%s846 + $0x8] sm:$0xff]
    %s849 = scalar_lea.vmem [#allocation4], 8
    %v850 = vld [vmem:[%s849] sm:$0xff]
    %v851 = vld [vmem:[#allocation5] sm:$0xff]
    %v852 = vld [vmem:[#allocation12] sm:$0xff]
    %v853 = vld [vmem:[#allocation12 + $0x8] sm:$0xff]
    %v854 = vld [vmem:[#allocation12 + $0x10] sm:$0xff]
    %v855 = vld [vmem:[#allocation12 + $0x18] sm:$0xff]
    %v856 = vld [vmem:[#allocation12 + $0x20] sm:$0xff]
    %v857 = vld [vmem:[#allocation12 + $0x28] sm:$0xff]
    %v858 = vld [vmem:[#allocation12 + $0x30] sm:$0xff]
    %v859 = vld [vmem:[#allocation12 + $0x38] sm:$0xff]
    %v860 = vld [vmem:[#allocation12 + $0x40] sm:$0xff]
    %v861 = vld [vmem:[#allocation12 + $0x48] sm:$0xff]
    %v862 = vld [vmem:[#allocation12 + $0x50] sm:$0xff]
    %v863 = vld [vmem:[#allocation12 + $0x58] sm:$0xff]
    %v864 = vld [vmem:[#allocation12 + $0x60] sm:$0xff]
    %v865 = vld [vmem:[#allocation12 + $0x68] sm:$0xff]
    %v866 = vld [vmem:[#allocation12 + $0x70] sm:$0xff]
    %v867 = vld [vmem:[#allocation12 + $0x78] sm:$0xff]
    %v868 = vld [vmem:[#allocation12 + $0x80] sm:$0xff]
    %v869 = vld [vmem:[#allocation12 + $0x88] sm:$0xff]
    %v870 = vld [vmem:[#allocation12 + $0x90] sm:$0xff]
    %v871 = vld [vmem:[#allocation12 + $0x98] sm:$0xff]
    %v872 = vld [vmem:[#allocation12 + $0xa0] sm:$0xff]
    %v873 = vld [vmem:[#allocation12 + $0xa8] sm:$0xff]
    %v874 = vld [vmem:[#allocation12 + $0xb0] sm:$0xff]
    %v875 = vld [vmem:[#allocation12 + $0xb8] sm:$0xff]
    %v876 = vld [vmem:[#allocation12 + $0xc0] sm:$0xff]
    %v877 = vld [vmem:[#allocation12 + $0xc8] sm:$0xff]
    %v878 = vld [vmem:[#allocation12 + $0xd0] sm:$0xff]
    %v879 = vld [vmem:[#allocation12 + $0xd8] sm:$0xff]
    %v880 = vld [vmem:[#allocation12 + $0xe0] sm:$0xff]
    %v881 = vld [vmem:[#allocation12 + $0xe8] sm:$0xff]
    %v882 = vld [vmem:[#allocation12 + $0xf0] sm:$0xff]
    %v883 = vld [vmem:[#allocation12 + $0xf8] sm:$0xff]
    %884 = vmatprep.subr.mxu0 %v853
    %885 = vmatpush1.msra.mxu0 %v852
    %886 = vmatprep.subr.mxu0 %v855
    %887 = vmatpush1.msra.mxu0 %v854
    %888 = vmatprep.subr.mxu0 %v857
    %889 = vmatpush1.msra.mxu0 %v856
    %890 = vmatprep.subr.mxu0 %v859
    %891 = vmatpush1.msra.mxu0 %v858
    %892 = vmatprep.subr.mxu0 %v861
    %893 = vmatpush1.msra.mxu0 %v860
    %894 = vmatprep.subr.mxu0 %v863
    %895 = vmatpush1.msra.mxu0 %v862
    %896 = vmatprep.subr.mxu0 %v865
    %897 = vmatpush1.msra.mxu0 %v864
    %898 = vmatprep.subr.mxu0 %v867
    %899 = vmatpush1.msra.mxu0 %v866
    %900 = vmatprep.subr.mxu0 %v869
    %901 = vmatpush1.msra.mxu0 %v868
    %902 = vmatprep.subr.mxu0 %v871
    %903 = vmatpush1.msra.mxu0 %v870
    %904 = vmatprep.subr.mxu0 %v873
    %905 = vmatpush1.msra.mxu0 %v872
    %906 = vmatprep.subr.mxu0 %v875
    %907 = vmatpush1.msra.mxu0 %v874
    %908 = vmatprep.subr.mxu0 %v877
    %909 = vmatpush1.msra.mxu0 %v876
    %910 = vmatprep.subr.mxu0 %v879
    %911 = vmatpush1.msra.mxu0 %v878
    %912 = vmatprep.subr.mxu0 %v881
    %913 = vmatpush1.msra.mxu0 %v880
    %914 = vmatprep.subr.mxu0 %v883
    %915 = vmatpush1.msra.mxu0 %v882
    %916 = vmatprep.subr.mxu0 0.0
    %917 = vmatpush1.msra.mxu0 0.0
    %918 = vmatprep.subr.mxu0 0.0
    %919 = vmatpush1.msra.mxu0 0.0
    %920 = vmatprep.subr.mxu0 0.0
    %921 = vmatpush1.msra.mxu0 0.0
    %922 = vmatprep.subr.mxu0 0.0
    %923 = vmatpush1.msra.mxu0 0.0
    %924 = vmatprep.subr.mxu0 0.0
    %925 = vmatpush1.msra.mxu0 0.0
    %926 = vmatprep.subr.mxu0 0.0
    %927 = vmatpush1.msra.mxu0 0.0
    %928 = vmatprep.subr.mxu0 0.0
    %929 = vmatpush1.msra.mxu0 0.0
    %930 = vmatprep.subr.mxu0 0.0
    %931 = vmatpush1.msra.mxu0 0.0
    %932 = vmatprep.subr.mxu0 0.0
    %933 = vmatpush1.msra.mxu0 0.0
    %934 = vmatprep.subr.mxu0 0.0
    %935 = vmatpush1.msra.mxu0 0.0
    %936 = vmatprep.subr.mxu0 0.0
    %937 = vmatpush1.msra.mxu0 0.0
    %938 = vmatprep.subr.mxu0 0.0
    %939 = vmatpush1.msra.mxu0 0.0
    %940 = vmatprep.subr.mxu0 0.0
    %941 = vmatpush1.msra.mxu0 0.0
    %942 = vmatprep.subr.mxu0 0.0
    %943 = vmatpush1.msra.mxu0 0.0
    %944 = vmatprep.subr.mxu0 0.0
    %945 = vmatpush1.msra.mxu0 0.0
    %946 = vmatprep.subr.mxu0 0.0
    %947 = vmatpush1.msra.mxu0 0.0
    %948 = vmatprep.mubr.f32.mxu0 0.0
    %949 = vmatmul.mubr.f32.gmra.mrb[0].mxu0 %v851
    %v950 = vpop.f32.mrb[0].mxu0
    %v951 = vadd.f32 0.0, %v950
    %v952 = vpop.f32.mrb[0].mxu0
    %v953 = vadd.f32 0.0, %v952
    %954 = vdwg.mxu0
    %v955 = vadd.f32 %v847, %v951
    %v956 = vxor.u32 %v955, 2147483648
    %v957 = vmul.f32 %v956, 1.442695
    %v958 = vpow.pop %v957
    %v959 = vadd.f32 %v958, 1.0
    %v960 = vrcp.pop %v959
    %v961 = vmul.f32 1.0, %v960
    %v962 = vadd.f32 %v953, %v578
    %v963 = vmul.f32 %v961, %v962
    %v964 = vadd.f32 %v848, %v963
    %v965 = vtanh.pop %v964
    %v966 = vmul.f32 %v850, %v965
    %v967 = vsub.f32 1.0, %v850
    %v968 = vmul.f32 %v967, %v851
    %v969 = vadd.f32 %v966, %v968
    %970 = vst [vmem:[#allocation5] sm:$0xff] %v969
    %s971 = smul.u32 4, 2
    %s972 = smul.addr %s971, 8
    %s973 = scalar_lea.vmem [#allocation3], %s972
    %v974 = vld [vmem:[%s973] sm:$0xff]
    %v975 = vld [vmem:[%s973 + $0x8] sm:$0xff]
    %s976 = scalar_lea.vmem [#allocation4], 32
    %v977 = vld [vmem:[%s976] sm:$0xff]
    %v978 = vld [vmem:[#allocation6] sm:$0xff]
    %v979 = vld [vmem:[#allocation15] sm:$0xff]
    %v980 = vld [vmem:[#allocation15 + $0x8] sm:$0xff]
    %v981 = vld [vmem:[#allocation15 + $0x10] sm:$0xff]
    %v982 = vld [vmem:[#allocation15 + $0x18] sm:$0xff]
    %v983 = vld [vmem:[#allocation15 + $0x20] sm:$0xff]
    %v984 = vld [vmem:[#allocation15 + $0x28] sm:$0xff]
    %v985 = vld [vmem:[#allocation15 + $0x30] sm:$0xff]
    %v986 = vld [vmem:[#allocation15 + $0x38] sm:$0xff]
    %v987 = vld [vmem:[#allocation15 + $0x40] sm:$0xff]
    %v988 = vld [vmem:[#allocation15 + $0x48] sm:$0xff]
    %v989 = vld [vmem:[#allocation15 + $0x50] sm:$0xff]
    %v990 = vld [vmem:[#allocation15 + $0x58] sm:$0xff]
    %v991 = vld [vmem:[#allocation15 + $0x60] sm:$0xff]
    %v992 = vld [vmem:[#allocation15 + $0x68] sm:$0xff]
    %v993 = vld [vmem:[#allocation15 + $0x70] sm:$0xff]
    %v994 = vld [vmem:[#allocation15 + $0x78] sm:$0xff]
    %v995 = vld [vmem:[#allocation15 + $0x80] sm:$0xff]
    %v996 = vld [vmem:[#allocation15 + $0x88] sm:$0xff]
    %v997 = vld [vmem:[#allocation15 + $0x90] sm:$0xff]
    %v998 = vld [vmem:[#allocation15 + $0x98] sm:$0xff]
    %v999 = vld [vmem:[#allocation15 + $0xa0] sm:$0xff]
    %v1000 = vld [vmem:[#allocation15 + $0xa8] sm:$0xff]
    %v1001 = vld [vmem:[#allocation15 + $0xb0] sm:$0xff]
    %v1002 = vld [vmem:[#allocation15 + $0xb8] sm:$0xff]
    %v1003 = vld [vmem:[#allocation15 + $0xc0] sm:$0xff]
    %v1004 = vld [vmem:[#allocation15 + $0xc8] sm:$0xff]
    %v1005 = vld [vmem:[#allocation15 + $0xd0] sm:$0xff]
    %v1006 = vld [vmem:[#allocation15 + $0xd8] sm:$0xff]
    %v1007 = vld [vmem:[#allocation15 + $0xe0] sm:$0xff]
    %v1008 = vld [vmem:[#allocation15 + $0xe8] sm:$0xff]
    %v1009 = vld [vmem:[#allocation15 + $0xf0] sm:$0xff]
    %v1010 = vld [vmem:[#allocation15 + $0xf8] sm:$0xff]
    %1011 = vmatprep.subr.mxu0 %v980
    %1012 = vmatpush1.msra.mxu0 %v979
    %1013 = vmatprep.subr.mxu0 %v982
    %1014 = vmatpush1.msra.mxu0 %v981
    %1015 = vmatprep.subr.mxu0 %v984
    %1016 = vmatpush1.msra.mxu0 %v983
    %1017 = vmatprep.subr.mxu0 %v986
    %1018 = vmatpush1.msra.mxu0 %v985
    %1019 = vmatprep.subr.mxu0 %v988
    %1020 = vmatpush1.msra.mxu0 %v987
    %1021 = vmatprep.subr.mxu0 %v990
    %1022 = vmatpush1.msra.mxu0 %v989
    %1023 = vmatprep.subr.mxu0 %v992
    %1024 = vmatpush1.msra.mxu0 %v991
    %1025 = vmatprep.subr.mxu0 %v994
    %1026 = vmatpush1.msra.mxu0 %v993
    %1027 = vmatprep.subr.mxu0 %v996
    %1028 = vmatpush1.msra.mxu0 %v995
    %1029 = vmatprep.subr.mxu0 %v998
    %1030 = vmatpush1.msra.mxu0 %v997
    %1031 = vmatprep.subr.mxu0 %v1000
    %1032 = vmatpush1.msra.mxu0 %v999
    %1033 = vmatprep.subr.mxu0 %v1002
    %1034 = vmatpush1.msra.mxu0 %v1001
    %1035 = vmatprep.subr.mxu0 %v1004
    %1036 = vmatpush1.msra.mxu0 %v1003
    %1037 = vmatprep.subr.mxu0 %v1006
    %1038 = vmatpush1.msra.mxu0 %v1005
    %1039 = vmatprep.subr.mxu0 %v1008
    %1040 = vmatpush1.msra.mxu0 %v1007
    %1041 = vmatprep.subr.mxu0 %v1010
    %1042 = vmatpush1.msra.mxu0 %v1009
    %1043 = vmatprep.subr.mxu0 0.0
    %1044 = vmatpush1.msra.mxu0 0.0
    %1045 = vmatprep.subr.mxu0 0.0
    %1046 = vmatpush1.msra.mxu0 0.0
    %1047 = vmatprep.subr.mxu0 0.0
    %1048 = vmatpush1.msra.mxu0 0.0
    %1049 = vmatprep.subr.mxu0 0.0
    %1050 = vmatpush1.msra.mxu0 0.0
    %1051 = vmatprep.subr.mxu0 0.0
    %1052 = vmatpush1.msra.mxu0 0.0
    %1053 = vmatprep.subr.mxu0 0.0
    %1054 = vmatpush1.msra.mxu0 0.0
    %1055 = vmatprep.subr.mxu0 0.0
    %1056 = vmatpush1.msra.mxu0 0.0
    %1057 = vmatprep.subr.mxu0 0.0
    %1058 = vmatpush1.msra.mxu0 0.0
    %1059 = vmatprep.subr.mxu0 0.0
    %1060 = vmatpush1.msra.mxu0 0.0
    %1061 = vmatprep.subr.mxu0 0.0
    %1062 = vmatpush1.msra.mxu0 0.0
    %1063 = vmatprep.subr.mxu0 0.0
    %1064 = vmatpush1.msra.mxu0 0.0
    %1065 = vmatprep.subr.mxu0 0.0
    %1066 = vmatpush1.msra.mxu0 0.0
    %1067 = vmatprep.subr.mxu0 0.0
    %1068 = vmatpush1.msra.mxu0 0.0
    %1069 = vmatprep.subr.mxu0 0.0
    %1070 = vmatpush1.msra.mxu0 0.0
    %1071 = vmatprep.subr.mxu0 0.0
    %1072 = vmatpush1.msra.mxu0 0.0
    %1073 = vmatprep.subr.mxu0 0.0
    %1074 = vmatpush1.msra.mxu0 0.0
    %1075 = vmatprep.mubr.f32.mxu0 0.0
    %1076 = vmatmul.mubr.f32.gmra.mrb[0].mxu0 %v978
    %v1077 = vpop.f32.mrb[0].mxu0
    %v1078 = vadd.f32 0.0, %v1077
    %v1079 = vpop.f32.mrb[0].mxu0
    %v1080 = vadd.f32 0.0, %v1079
    %1081 = vdwg.mxu0
    %v1082 = vadd.f32 %v974, %v1078
    %v1083 = vxor.u32 %v1082, 2147483648
    %v1084 = vmul.f32 %v1083, 1.442695
    %v1085 = vpow.pop %v1084
    %v1086 = vadd.f32 %v1085, 1.0
    %v1087 = vrcp.pop %v1086
    %v1088 = vmul.f32 1.0, %v1087
    %v1089 = vadd.f32 %v1080, %v585
    %v1090 = vmul.f32 %v1088, %v1089
    %v1091 = vadd.f32 %v975, %v1090
    %v1092 = vtanh.pop %v1091
    %v1093 = vmul.f32 %v977, %v1092
    %v1094 = vsub.f32 1.0, %v977
    %v1095 = vmul.f32 %v1094, %v978
    %v1096 = vadd.f32 %v1093, %v1095
    %1097 = vst [vmem:[#allocation6] sm:$0xff] %v1096
    %s1098 = smul.u32 2, 2
    %s1099 = smul.addr %s1098, 8
    %s1100 = scalar_lea.vmem [#allocation2], %s1099
    %v1101 = vld [vmem:[%s1100] sm:$0xff]
    %v1102 = vld [vmem:[%s1100 + $0x8] sm:$0xff]
    %s1103 = scalar_lea.vmem [#allocation4], 16
    %v1104 = vld [vmem:[%s1103] sm:$0xff]
    %v1105 = vld [vmem:[#allocation5] sm:$0xff]
    %v1106 = vld [vmem:[#allocation12] sm:$0xff]
    %v1107 = vld [vmem:[#allocation12 + $0x8] sm:$0xff]
    %v1108 = vld [vmem:[#allocation12 + $0x10] sm:$0xff]
    %v1109 = vld [vmem:[#allocation12 + $0x18] sm:$0xff]
    %v1110 = vld [vmem:[#allocation12 + $0x20] sm:$0xff]
    %v1111 = vld [vmem:[#allocation12 + $0x28] sm:$0xff]
    %v1112 = vld [vmem:[#allocation12 + $0x30] sm:$0xff]
    %v1113 = vld [vmem:[#allocation12 + $0x38] sm:$0xff]
    %v1114 = vld [vmem:[#allocation12 + $0x40] sm:$0xff]
    %v1115 = vld [vmem:[#allocation12 + $0x48] sm:$0xff]
    %v1116 = vld [vmem:[#allocation12 + $0x50] sm:$0xff]
    %v1117 = vld [vmem:[#allocation12 + $0x58] sm:$0xff]
    %v1118 = vld [vmem:[#allocation12 + $0x60] sm:$0xff]
    %v1119 = vld [vmem:[#allocation12 + $0x68] sm:$0xff]
    %v1120 = vld [vmem:[#allocation12 + $0x70] sm:$0xff]
    %v1121 = vld [vmem:[#allocation12 + $0x78] sm:$0xff]
    %v1122 = vld [vmem:[#allocation12 + $0x80] sm:$0xff]
    %v1123 = vld [vmem:[#allocation12 + $0x88] sm:$0xff]
    %v1124 = vld [vmem:[#allocation12 + $0x90] sm:$0xff]
    %v1125 = vld [vmem:[#allocation12 + $0x98] sm:$0xff]
    %v1126 = vld [vmem:[#allocation12 + $0xa0] sm:$0xff]
    %v1127 = vld [vmem:[#allocation12 + $0xa8] sm:$0xff]
    %v1128 = vld [vmem:[#allocation12 + $0xb0] sm:$0xff]
    %v1129 = vld [vmem:[#allocation12 + $0xb8] sm:$0xff]
    %v1130 = vld [vmem:[#allocation12 + $0xc0] sm:$0xff]
    %v1131 = vld [vmem:[#allocation12 + $0xc8] sm:$0xff]
    %v1132 = vld [vmem:[#allocation12 + $0xd0] sm:$0xff]
    %v1133 = vld [vmem:[#allocation12 + $0xd8] sm:$0xff]
    %v1134 = vld [vmem:[#allocation12 + $0xe0] sm:$0xff]
    %v1135 = vld [vmem:[#allocation12 + $0xe8] sm:$0xff]
    %v1136 = vld [vmem:[#allocation12 + $0xf0] sm:$0xff]
    %v1137 = vld [vmem:[#allocation12 + $0xf8] sm:$0xff]
    %1138 = vmatprep.subr.mxu0 %v1107
    %1139 = vmatpush1.msra.mxu0 %v1106
    %1140 = vmatprep.subr.mxu0 %v1109
    %1141 = vmatpush1.msra.mxu0 %v1108
    %1142 = vmatprep.subr.mxu0 %v1111
    %1143 = vmatpush1.msra.mxu0 %v1110
    %1144 = vmatprep.subr.mxu0 %v1113
    %1145 = vmatpush1.msra.mxu0 %v1112
    %1146 = vmatprep.subr.mxu0 %v1115
    %1147 = vmatpush1.msra.mxu0 %v1114
    %1148 = vmatprep.subr.mxu0 %v1117
    %1149 = vmatpush1.msra.mxu0 %v1116
    %1150 = vmatprep.subr.mxu0 %v1119
    %1151 = vmatpush1.msra.mxu0 %v1118
    %1152 = vmatprep.subr.mxu0 %v1121
    %1153 = vmatpush1.msra.mxu0 %v1120
    %1154 = vmatprep.subr.mxu0 %v1123
    %1155 = vmatpush1.msra.mxu0 %v1122
    %1156 = vmatprep.subr.mxu0 %v1125
    %1157 = vmatpush1.msra.mxu0 %v1124
    %1158 = vmatprep.subr.mxu0 %v1127
    %1159 = vmatpush1.msra.mxu0 %v1126
    %1160 = vmatprep.subr.mxu0 %v1129
    %1161 = vmatpush1.msra.mxu0 %v1128
    %1162 = vmatprep.subr.mxu0 %v1131
    %1163 = vmatpush1.msra.mxu0 %v1130
    %1164 = vmatprep.subr.mxu0 %v1133
    %1165 = vmatpush1.msra.mxu0 %v1132
    %1166 = vmatprep.subr.mxu0 %v1135
    %1167 = vmatpush1.msra.mxu0 %v1134
    %1168 = vmatprep.subr.mxu0 %v1137
    %1169 = vmatpush1.msra.mxu0 %v1136
    %1170 = vmatprep.subr.mxu0 0.0
    %1171 = vmatpush1.msra.mxu0 0.0
    %1172 = vmatprep.subr.mxu0 0.0
    %1173 = vmatpush1.msra.mxu0 0.0
    %1174 = vmatprep.subr.mxu0 0.0
    %1175 = vmatpush1.msra.mxu0 0.0
    %1176 = vmatprep.subr.mxu0 0.0
    %1177 = vmatpush1.msra.mxu0 0.0
    %1178 = vmatprep.subr.mxu0 0.0
    %1179 = vmatpush1.msra.mxu0 0.0
    %1180 = vmatprep.subr.mxu0 0.0
    %1181 = vmatpush1.msra.mxu0 0.0
    %1182 = vmatprep.subr.mxu0 0.0
    %1183 = vmatpush1.msra.mxu0 0.0
    %1184 = vmatprep.subr.mxu0 0.0
    %1185 = vmatpush1.msra.mxu0 0.0
    %1186 = vmatprep.subr.mxu0 0.0
    %1187 = vmatpush1.msra.mxu0 0.0
    %1188 = vmatprep.subr.mxu0 0.0
    %1189 = vmatpush1.msra.mxu0 0.0
    %1190 = vmatprep.subr.mxu0 0.0
    %1191 = vmatpush1.msra.mxu0 0.0
    %1192 = vmatprep.subr.mxu0 0.0
    %1193 = vmatpush1.msra.mxu0 0.0
    %1194 = vmatprep.subr.mxu0 0.0
    %1195 = vmatpush1.msra.mxu0 0.0
    %1196 = vmatprep.subr.mxu0 0.0
    %1197 = vmatpush1.msra.mxu0 0.0
    %1198 = vmatprep.subr.mxu0 0.0
    %1199 = vmatpush1.msra.mxu0 0.0
    %1200 = vmatprep.subr.mxu0 0.0
    %1201 = vmatpush1.msra.mxu0 0.0
    %1202 = vmatprep.mubr.f32.mxu0 0.0
    %1203 = vmatmul.mubr.f32.gmra.mrb[0].mxu0 %v1105
    %v1204 = vpop.f32.mrb[0].mxu0
    %v1205 = vadd.f32 0.0, %v1204
    %v1206 = vpop.f32.mrb[0].mxu0
    %v1207 = vadd.f32 0.0, %v1206
    %1208 = vdwg.mxu0
    %v1209 = vadd.f32 %v1101, %v1205
    %v1210 = vxor.u32 %v1209, 2147483648
    %v1211 = vmul.f32 %v1210, 1.442695
    %v1212 = vpow.pop %v1211
    %v1213 = vadd.f32 %v1212, 1.0
    %v1214 = vrcp.pop %v1213
    %v1215 = vmul.f32 1.0, %v1214
    %v1216 = vadd.f32 %v1207, %v578
    %v1217 = vmul.f32 %v1215, %v1216
    %v1218 = vadd.f32 %v1102, %v1217
    %v1219 = vtanh.pop %v1218
    %v1220 = vmul.f32 %v1104, %v1219
    %v1221 = vsub.f32 1.0, %v1104
    %v1222 = vmul.f32 %v1221, %v1105
    %v1223 = vadd.f32 %v1220, %v1222
    %1224 = vst [vmem:[#allocation5] sm:$0xff] %v1223
    %s1225 = smul.u32 3, 2
    %s1226 = smul.addr %s1225, 8
    %s1227 = scalar_lea.vmem [#allocation3], %s1226
    %v1228 = vld [vmem:[%s1227] sm:$0xff]
    %v1229 = vld [vmem:[%s1227 + $0x8] sm:$0xff]
    %s1230 = scalar_lea.vmem [#allocation4], 24
    %v1231 = vld [vmem:[%s1230] sm:$0xff]
    %v1232 = vld [vmem:[#allocation6] sm:$0xff]
    %v1233 = vld [vmem:[#allocation15] sm:$0xff]
    %v1234 = vld [vmem:[#allocation15 + $0x8] sm:$0xff]
    %v1235 = vld [vmem:[#allocation15 + $0x10] sm:$0xff]
    %v1236 = vld [vmem:[#allocation15 + $0x18] sm:$0xff]
    %v1237 = vld [vmem:[#allocation15 + $0x20] sm:$0xff]
    %v1238 = vld [vmem:[#allocation15 + $0x28] sm:$0xff]
    %v1239 = vld [vmem:[#allocation15 + $0x30] sm:$0xff]
    %v1240 = vld [vmem:[#allocation15 + $0x38] sm:$0xff]
    %v1241 = vld [vmem:[#allocation15 + $0x40] sm:$0xff]
    %v1242 = vld [vmem:[#allocation15 + $0x48] sm:$0xff]
    %v1243 = vld [vmem:[#allocation15 + $0x50] sm:$0xff]
    %v1244 = vld [vmem:[#allocation15 + $0x58] sm:$0xff]
    %v1245 = vld [vmem:[#allocation15 + $0x60] sm:$0xff]
    %v1246 = vld [vmem:[#allocation15 + $0x68] sm:$0xff]
    %v1247 = vld [vmem:[#allocation15 + $0x70] sm:$0xff]
    %v1248 = vld [vmem:[#allocation15 + $0x78] sm:$0xff]
    %v1249 = vld [vmem:[#allocation15 + $0x80] sm:$0xff]
    %v1250 = vld [vmem:[#allocation15 + $0x88] sm:$0xff]
    %v1251 = vld [vmem:[#allocation15 + $0x90] sm:$0xff]
    %v1252 = vld [vmem:[#allocation15 + $0x98] sm:$0xff]
    %v1253 = vld [vmem:[#allocation15 + $0xa0] sm:$0xff]
    %v1254 = vld [vmem:[#allocation15 + $0xa8] sm:$0xff]
    %v1255 = vld [vmem:[#allocation15 + $0xb0] sm:$0xff]
    %v1256 = vld [vmem:[#allocation15 + $0xb8] sm:$0xff]
    %v1257 = vld [vmem:[#allocation15 + $0xc0] sm:$0xff]
    %v1258 = vld [vmem:[#allocation15 + $0xc8] sm:$0xff]
    %v1259 = vld [vmem:[#allocation15 + $0xd0] sm:$0xff]
    %v1260 = vld [vmem:[#allocation15 + $0xd8] sm:$0xff]
    %v1261 = vld [vmem:[#allocation15 + $0xe0] sm:$0xff]
    %v1262 = vld [vmem:[#allocation15 + $0xe8] sm:$0xff]
    %v1263 = vld [vmem:[#allocation15 + $0xf0] sm:$0xff]
    %v1264 = vld [vmem:[#allocation15 + $0xf8] sm:$0xff]
    %1265 = vmatprep.subr.mxu0 %v1234
    %1266 = vmatpush1.msra.mxu0 %v1233
    %1267 = vmatprep.subr.mxu0 %v1236
    %1268 = vmatpush1.msra.mxu0 %v1235
    %1269 = vmatprep.subr.mxu0 %v1238
    %1270 = vmatpush1.msra.mxu0 %v1237
    %1271 = vmatprep.subr.mxu0 %v1240
    %1272 = vmatpush1.msra.mxu0 %v1239
    %1273 = vmatprep.subr.mxu0 %v1242
    %1274 = vmatpush1.msra.mxu0 %v1241
    %1275 = vmatprep.subr.mxu0 %v1244
    %1276 = vmatpush1.msra.mxu0 %v1243
    %1277 = vmatprep.subr.mxu0 %v1246
    %1278 = vmatpush1.msra.mxu0 %v1245
    %1279 = vmatprep.subr.mxu0 %v1248
    %1280 = vmatpush1.msra.mxu0 %v1247
    %1281 = vmatprep.subr.mxu0 %v1250
    %1282 = vmatpush1.msra.mxu0 %v1249
    %1283 = vmatprep.subr.mxu0 %v1252
    %1284 = vmatpush1.msra.mxu0 %v1251
    %1285 = vmatprep.subr.mxu0 %v1254
    %1286 = vmatpush1.msra.mxu0 %v1253
    %1287 = vmatprep.subr.mxu0 %v1256
    %1288 = vmatpush1.msra.mxu0 %v1255
    %1289 = vmatprep.subr.mxu0 %v1258
    %1290 = vmatpush1.msra.mxu0 %v1257
    %1291 = vmatprep.subr.mxu0 %v1260
    %1292 = vmatpush1.msra.mxu0 %v1259
    %1293 = vmatprep.subr.mxu0 %v1262
    %1294 = vmatpush1.msra.mxu0 %v1261
    %1295 = vmatprep.subr.mxu0 %v1264
    %1296 = vmatpush1.msra.mxu0 %v1263
    %1297 = vmatprep.subr.mxu0 0.0
    %1298 = vmatpush1.msra.mxu0 0.0
    %1299 = vmatprep.subr.mxu0 0.0
    %1300 = vmatpush1.msra.mxu0 0.0
    %1301 = vmatprep.subr.mxu0 0.0
    %1302 = vmatpush1.msra.mxu0 0.0
    %1303 = vmatprep.subr.mxu0 0.0
    %1304 = vmatpush1.msra.mxu0 0.0
    %1305 = vmatprep.subr.mxu0 0.0
    %1306 = vmatpush1.msra.mxu0 0.0
    %1307 = vmatprep.subr.mxu0 0.0
    %1308 = vmatpush1.msra.mxu0 0.0
    %1309 = vmatprep.subr.mxu0 0.0
    %1310 = vmatpush1.msra.mxu0 0.0
    %1311 = vmatprep.subr.mxu0 0.0
    %1312 = vmatpush1.msra.mxu0 0.0
    %1313 = vmatprep.subr.mxu0 0.0
    %1314 = vmatpush1.msra.mxu0 0.0
    %1315 = vmatprep.subr.mxu0 0.0
    %1316 = vmatpush1.msra.mxu0 0.0
    %1317 = vmatprep.subr.mxu0 0.0
    %1318 = vmatpush1.msra.mxu0 0.0
    %1319 = vmatprep.subr.mxu0 0.0
    %1320 = vmatpush1.msra.mxu0 0.0
    %1321 = vmatprep.subr.mxu0 0.0
    %1322 = vmatpush1.msra.mxu0 0.0
    %1323 = vmatprep.subr.mxu0 0.0
    %1324 = vmatpush1.msra.mxu0 0.0
    %1325 = vmatprep.subr.mxu0 0.0
    %1326 = vmatpush1.msra.mxu0 0.0
    %1327 = vmatprep.subr.mxu0 0.0
    %1328 = vmatpush1.msra.mxu0 0.0
    %1329 = vmatprep.mubr.f32.mxu0 0.0
    %1330 = vmatmul.mubr.f32.gmra.mrb[0].mxu0 %v1232
    %v1331 = vpop.f32.mrb[0].mxu0
    %v1332 = vadd.f32 0.0, %v1331
    %v1333 = vpop.f32.mrb[0].mxu0
    %v1334 = vadd.f32 0.0, %v1333
    %1335 = vdwg.mxu0
    %v1336 = vadd.f32 %v1228, %v1332
    %v1337 = vxor.u32 %v1336, 2147483648
    %v1338 = vmul.f32 %v1337, 1.442695
    %v1339 = vpow.pop %v1338
    %v1340 = vadd.f32 %v1339, 1.0
    %v1341 = vrcp.pop %v1340
    %v1342 = vmul.f32 1.0, %v1341
    %v1343 = vadd.f32 %v1334, %v585
    %v1344 = vmul.f32 %v1342, %v1343
    %v1345 = vadd.f32 %v1229, %v1344
    %v1346 = vtanh.pop %v1345
    %v1347 = vmul.f32 %v1231, %v1346
    %v1348 = vsub.f32 1.0, %v1231
    %v1349 = vmul.f32 %v1348, %v1232
    %v1350 = vadd.f32 %v1347, %v1349
    %1351 = vst [vmem:[#allocation6] sm:$0xff] %v1350
    %s1352 = smul.addr %s1225, 8
    %s1353 = scalar_lea.vmem [#allocation2], %s1352
    %v1354 = vld [vmem:[%s1353] sm:$0xff]
    %v1355 = vld [vmem:[%s1353 + $0x8] sm:$0xff]
    %v1356 = vld [vmem:[%s1230] sm:$0xff]
    %v1357 = vld [vmem:[#allocation5] sm:$0xff]
    %v1358 = vld [vmem:[#allocation12] sm:$0xff]
    %v1359 = vld [vmem:[#allocation12 + $0x8] sm:$0xff]
    %v1360 = vld [vmem:[#allocation12 + $0x10] sm:$0xff]
    %v1361 = vld [vmem:[#allocation12 + $0x18] sm:$0xff]
    %v1362 = vld [vmem:[#allocation12 + $0x20] sm:$0xff]
    %v1363 = vld [vmem:[#allocation12 + $0x28] sm:$0xff]
    %v1364 = vld [vmem:[#allocation12 + $0x30] sm:$0xff]
    %v1365 = vld [vmem:[#allocation12 + $0x38] sm:$0xff]
    %v1366 = vld [vmem:[#allocation12 + $0x40] sm:$0xff]
    %v1367 = vld [vmem:[#allocation12 + $0x48] sm:$0xff]
    %v1368 = vld [vmem:[#allocation12 + $0x50] sm:$0xff]
    %v1369 = vld [vmem:[#allocation12 + $0x58] sm:$0xff]
    %v1370 = vld [vmem:[#allocation12 + $0x60] sm:$0xff]
    %v1371 = vld [vmem:[#allocation12 + $0x68] sm:$0xff]
    %v1372 = vld [vmem:[#allocation12 + $0x70] sm:$0xff]
    %v1373 = vld [vmem:[#allocation12 + $0x78] sm:$0xff]
    %v1374 = vld [vmem:[#allocation12 + $0x80] sm:$0xff]
    %v1375 = vld [vmem:[#allocation12 + $0x88] sm:$0xff]
    %v1376 = vld [vmem:[#allocation12 + $0x90] sm:$0xff]
    %v1377 = vld [vmem:[#allocation12 + $0x98] sm:$0xff]
    %v1378 = vld [vmem:[#allocation12 + $0xa0] sm:$0xff]
    %v1379 = vld [vmem:[#allocation12 + $0xa8] sm:$0xff]
    %v1380 = vld [vmem:[#allocation12 + $0xb0] sm:$0xff]
    %v1381 = vld [vmem:[#allocation12 + $0xb8] sm:$0xff]
    %v1382 = vld [vmem:[#allocation12 + $0xc0] sm:$0xff]
    %v1383 = vld [vmem:[#allocation12 + $0xc8] sm:$0xff]
    %v1384 = vld [vmem:[#allocation12 + $0xd0] sm:$0xff]
    %v1385 = vld [vmem:[#allocation12 + $0xd8] sm:$0xff]
    %v1386 = vld [vmem:[#allocation12 + $0xe0] sm:$0xff]
    %v1387 = vld [vmem:[#allocation12 + $0xe8] sm:$0xff]
    %v1388 = vld [vmem:[#allocation12 + $0xf0] sm:$0xff]
    %v1389 = vld [vmem:[#allocation12 + $0xf8] sm:$0xff]
    %1390 = vmatprep.subr.mxu0 %v1359
    %1391 = vmatpush1.msra.mxu0 %v1358
    %1392 = vmatprep.subr.mxu0 %v1361
    %1393 = vmatpush1.msra.mxu0 %v1360
    %1394 = vmatprep.subr.mxu0 %v1363
    %1395 = vmatpush1.msra.mxu0 %v1362
    %1396 = vmatprep.subr.mxu0 %v1365
    %1397 = vmatpush1.msra.mxu0 %v1364
    %1398 = vmatprep.subr.mxu0 %v1367
    %1399 = vmatpush1.msra.mxu0 %v1366
    %1400 = vmatprep.subr.mxu0 %v1369
    %1401 = vmatpush1.msra.mxu0 %v1368
    %1402 = vmatprep.subr.mxu0 %v1371
    %1403 = vmatpush1.msra.mxu0 %v1370
    %1404 = vmatprep.subr.mxu0 %v1373
    %1405 = vmatpush1.msra.mxu0 %v1372
    %1406 = vmatprep.subr.mxu0 %v1375
    %1407 = vmatpush1.msra.mxu0 %v1374
    %1408 = vmatprep.subr.mxu0 %v1377
    %1409 = vmatpush1.msra.mxu0 %v1376
    %1410 = vmatprep.subr.mxu0 %v1379
    %1411 = vmatpush1.msra.mxu0 %v1378
    %1412 = vmatprep.subr.mxu0 %v1381
    %1413 = vmatpush1.msra.mxu0 %v1380
    %1414 = vmatprep.subr.mxu0 %v1383
    %1415 = vmatpush1.msra.mxu0 %v1382
    %1416 = vmatprep.subr.mxu0 %v1385
    %1417 = vmatpush1.msra.mxu0 %v1384
    %1418 = vmatprep.subr.mxu0 %v1387
    %1419 = vmatpush1.msra.mxu0 %v1386
    %1420 = vmatprep.subr.mxu0 %v1389
    %1421 = vmatpush1.msra.mxu0 %v1388
    %1422 = vmatprep.subr.mxu0 0.0
    %1423 = vmatpush1.msra.mxu0 0.0
    %1424 = vmatprep.subr.mxu0 0.0
    %1425 = vmatpush1.msra.mxu0 0.0
    %1426 = vmatprep.subr.mxu0 0.0
    %1427 = vmatpush1.msra.mxu0 0.0
    %1428 = vmatprep.subr.mxu0 0.0
    %1429 = vmatpush1.msra.mxu0 0.0
    %1430 = vmatprep.subr.mxu0 0.0
    %1431 = vmatpush1.msra.mxu0 0.0
    %1432 = vmatprep.subr.mxu0 0.0
    %1433 = vmatpush1.msra.mxu0 0.0
    %1434 = vmatprep.subr.mxu0 0.0
    %1435 = vmatpush1.msra.mxu0 0.0
    %1436 = vmatprep.subr.mxu0 0.0
    %1437 = vmatpush1.msra.mxu0 0.0
    %1438 = vmatprep.subr.mxu0 0.0
    %1439 = vmatpush1.msra.mxu0 0.0
    %1440 = vmatprep.subr.mxu0 0.0
    %1441 = vmatpush1.msra.mxu0 0.0
    %1442 = vmatprep.subr.mxu0 0.0
    %1443 = vmatpush1.msra.mxu0 0.0
    %1444 = vmatprep.subr.mxu0 0.0
    %1445 = vmatpush1.msra.mxu0 0.0
    %1446 = vmatprep.subr.mxu0 0.0
    %1447 = vmatpush1.msra.mxu0 0.0
    %1448 = vmatprep.subr.mxu0 0.0
    %1449 = vmatpush1.msra.mxu0 0.0
    %1450 = vmatprep.subr.mxu0 0.0
    %1451 = vmatpush1.msra.mxu0 0.0
    %1452 = vmatprep.subr.mxu0 0.0
    %1453 = vmatpush1.msra.mxu0 0.0
    %1454 = vmatprep.mubr.f32.mxu0 0.0
    %1455 = vmatmul.mubr.f32.gmra.mrb[0].mxu0 %v1357
    %v1456 = vpop.f32.mrb[0].mxu0
    %v1457 = vadd.f32 0.0, %v1456
    %v1458 = vpop.f32.mrb[0].mxu0
    %v1459 = vadd.f32 0.0, %v1458
    %1460 = vdwg.mxu0
    %v1461 = vadd.f32 %v1354, %v1457
    %v1462 = vxor.u32 %v1461, 2147483648
    %v1463 = vmul.f32 %v1462, 1.442695
    %v1464 = vpow.pop %v1463
    %v1465 = vadd.f32 %v1464, 1.0
    %v1466 = vrcp.pop %v1465
    %v1467 = vmul.f32 1.0, %v1466
    %v1468 = vadd.f32 %v1459, %v578
    %v1469 = vmul.f32 %v1467, %v1468
    %v1470 = vadd.f32 %v1355, %v1469
    %v1471 = vtanh.pop %v1470
    %v1472 = vmul.f32 %v1356, %v1471
    %v1473 = vsub.f32 1.0, %v1356
    %v1474 = vmul.f32 %v1473, %v1357
    %v1475 = vadd.f32 %v1472, %v1474
    %1476 = vst [vmem:[#allocation5] sm:$0xff] %v1475
    %s1477 = smul.addr %s1098, 8
    %s1478 = scalar_lea.vmem [#allocation3], %s1477
    %v1479 = vld [vmem:[%s1478] sm:$0xff]
    %v1480 = vld [vmem:[%s1478 + $0x8] sm:$0xff]
    %v1481 = vld [vmem:[%s1103] sm:$0xff]
    %v1482 = vld [vmem:[#allocation6] sm:$0xff]
    %v1483 = vld [vmem:[#allocation15] sm:$0xff]
    %v1484 = vld [vmem:[#allocation15 + $0x8] sm:$0xff]
    %v1485 = vld [vmem:[#allocation15 + $0x10] sm:$0xff]
    %v1486 = vld [vmem:[#allocation15 + $0x18] sm:$0xff]
    %v1487 = vld [vmem:[#allocation15 + $0x20] sm:$0xff]
    %v1488 = vld [vmem:[#allocation15 + $0x28] sm:$0xff]
    %v1489 = vld [vmem:[#allocation15 + $0x30] sm:$0xff]
    %v1490 = vld [vmem:[#allocation15 + $0x38] sm:$0xff]
    %v1491 = vld [vmem:[#allocation15 + $0x40] sm:$0xff]
    %v1492 = vld [vmem:[#allocation15 + $0x48] sm:$0xff]
    %v1493 = vld [vmem:[#allocation15 + $0x50] sm:$0xff]
    %v1494 = vld [vmem:[#allocation15 + $0x58] sm:$0xff]
    %v1495 = vld [vmem:[#allocation15 + $0x60] sm:$0xff]
    %v1496 = vld [vmem:[#allocation15 + $0x68] sm:$0xff]
    %v1497 = vld [vmem:[#allocation15 + $0x70] sm:$0xff]
    %v1498 = vld [vmem:[#allocation15 + $0x78] sm:$0xff]
    %v1499 = vld [vmem:[#allocation15 + $0x80] sm:$0xff]
    %v1500 = vld [vmem:[#allocation15 + $0x88] sm:$0xff]
    %v1501 = vld [vmem:[#allocation15 + $0x90] sm:$0xff]
    %v1502 = vld [vmem:[#allocation15 + $0x98] sm:$0xff]
    %v1503 = vld [vmem:[#allocation15 + $0xa0] sm:$0xff]
    %v1504 = vld [vmem:[#allocation15 + $0xa8] sm:$0xff]
    %v1505 = vld [vmem:[#allocation15 + $0xb0] sm:$0xff]
    %v1506 = vld [vmem:[#allocation15 + $0xb8] sm:$0xff]
    %v1507 = vld [vmem:[#allocation15 + $0xc0] sm:$0xff]
    %v1508 = vld [vmem:[#allocation15 + $0xc8] sm:$0xff]
    %v1509 = vld [vmem:[#allocation15 + $0xd0] sm:$0xff]
    %v1510 = vld [vmem:[#allocation15 + $0xd8] sm:$0xff]
    %v1511 = vld [vmem:[#allocation15 + $0xe0] sm:$0xff]
    %v1512 = vld [vmem:[#allocation15 + $0xe8] sm:$0xff]
    %v1513 = vld [vmem:[#allocation15 + $0xf0] sm:$0xff]
    %v1514 = vld [vmem:[#allocation15 + $0xf8] sm:$0xff]
    %1515 = vmatprep.subr.mxu0 %v1484
    %1516 = vmatpush1.msra.mxu0 %v1483
    %1517 = vmatprep.subr.mxu0 %v1486
    %1518 = vmatpush1.msra.mxu0 %v1485
    %1519 = vmatprep.subr.mxu0 %v1488
    %1520 = vmatpush1.msra.mxu0 %v1487
    %1521 = vmatprep.subr.mxu0 %v1490
    %1522 = vmatpush1.msra.mxu0 %v1489
    %1523 = vmatprep.subr.mxu0 %v1492
    %1524 = vmatpush1.msra.mxu0 %v1491
    %1525 = vmatprep.subr.mxu0 %v1494
    %1526 = vmatpush1.msra.mxu0 %v1493
    %1527 = vmatprep.subr.mxu0 %v1496
    %1528 = vmatpush1.msra.mxu0 %v1495
    %1529 = vmatprep.subr.mxu0 %v1498
    %1530 = vmatpush1.msra.mxu0 %v1497
    %1531 = vmatprep.subr.mxu0 %v1500
    %1532 = vmatpush1.msra.mxu0 %v1499
    %1533 = vmatprep.subr.mxu0 %v1502
    %1534 = vmatpush1.msra.mxu0 %v1501
    %1535 = vmatprep.subr.mxu0 %v1504
    %1536 = vmatpush1.msra.mxu0 %v1503
    %1537 = vmatprep.subr.mxu0 %v1506
    %1538 = vmatpush1.msra.mxu0 %v1505
    %1539 = vmatprep.subr.mxu0 %v1508
    %1540 = vmatpush1.msra.mxu0 %v1507
    %1541 = vmatprep.subr.mxu0 %v1510
    %1542 = vmatpush1.msra.mxu0 %v1509
    %1543 = vmatprep.subr.mxu0 %v1512
    %1544 = vmatpush1.msra.mxu0 %v1511
    %1545 = vmatprep.subr.mxu0 %v1514
    %1546 = vmatpush1.msra.mxu0 %v1513
    %1547 = vmatprep.subr.mxu0 0.0
    %1548 = vmatpush1.msra.mxu0 0.0
    %1549 = vmatprep.subr.mxu0 0.0
    %1550 = vmatpush1.msra.mxu0 0.0
    %1551 = vmatprep.subr.mxu0 0.0
    %1552 = vmatpush1.msra.mxu0 0.0
    %1553 = vmatprep.subr.mxu0 0.0
    %1554 = vmatpush1.msra.mxu0 0.0
    %1555 = vmatprep.subr.mxu0 0.0
    %1556 = vmatpush1.msra.mxu0 0.0
    %1557 = vmatprep.subr.mxu0 0.0
    %1558 = vmatpush1.msra.mxu0 0.0
    %1559 = vmatprep.subr.mxu0 0.0
    %1560 = vmatpush1.msra.mxu0 0.0
    %1561 = vmatprep.subr.mxu0 0.0
    %1562 = vmatpush1.msra.mxu0 0.0
    %1563 = vmatprep.subr.mxu0 0.0
    %1564 = vmatpush1.msra.mxu0 0.0
    %1565 = vmatprep.subr.mxu0 0.0
    %1566 = vmatpush1.msra.mxu0 0.0
    %1567 = vmatprep.subr.mxu0 0.0
    %1568 = vmatpush1.msra.mxu0 0.0
    %1569 = vmatprep.subr.mxu0 0.0
    %1570 = vmatpush1.msra.mxu0 0.0
    %1571 = vmatprep.subr.mxu0 0.0
    %1572 = vmatpush1.msra.mxu0 0.0
    %1573 = vmatprep.subr.mxu0 0.0
    %1574 = vmatpush1.msra.mxu0 0.0
    %1575 = vmatprep.subr.mxu0 0.0
    %1576 = vmatpush1.msra.mxu0 0.0
    %1577 = vmatprep.subr.mxu0 0.0
    %1578 = vmatpush1.msra.mxu0 0.0
    %1579 = vmatprep.mubr.f32.mxu0 0.0
    %1580 = vmatmul.mubr.f32.gmra.mrb[0].mxu0 %v1482
    %v1581 = vpop.f32.mrb[0].mxu0
    %v1582 = vadd.f32 0.0, %v1581
    %v1583 = vpop.f32.mrb[0].mxu0
    %v1584 = vadd.f32 0.0, %v1583
    %1585 = vdwg.mxu0
    %v1586 = vadd.f32 %v1479, %v1582
    %v1587 = vxor.u32 %v1586, 2147483648
    %v1588 = vmul.f32 %v1587, 1.442695
    %v1589 = vpow.pop %v1588
    %v1590 = vadd.f32 %v1589, 1.0
    %v1591 = vrcp.pop %v1590
    %v1592 = vmul.f32 1.0, %v1591
    %v1593 = vadd.f32 %v1584, %v585
    %v1594 = vmul.f32 %v1592, %v1593
    %v1595 = vadd.f32 %v1480, %v1594
    %v1596 = vtanh.pop %v1595
    %v1597 = vmul.f32 %v1481, %v1596
    %v1598 = vsub.f32 1.0, %v1481
    %v1599 = vmul.f32 %v1598, %v1482
    %v1600 = vadd.f32 %v1597, %v1599
    %1601 = vst [vmem:[#allocation6] sm:$0xff] %v1600
    %s1602 = smul.addr %s971, 8
    %s1603 = scalar_lea.vmem [#allocation2], %s1602
    %v1604 = vld [vmem:[%s1603] sm:$0xff]
    %v1605 = vld [vmem:[%s1603 + $0x8] sm:$0xff]
    %v1606 = vld [vmem:[%s976] sm:$0xff]
    %v1607 = vld [vmem:[#allocation5] sm:$0xff]
    %v1608 = vld [vmem:[#allocation12] sm:$0xff]
    %v1609 = vld [vmem:[#allocation12 + $0x8] sm:$0xff]
    %v1610 = vld [vmem:[#allocation12 + $0x10] sm:$0xff]
    %v1611 = vld [vmem:[#allocation12 + $0x18] sm:$0xff]
    %v1612 = vld [vmem:[#allocation12 + $0x20] sm:$0xff]
    %v1613 = vld [vmem:[#allocation12 + $0x28] sm:$0xff]
    %v1614 = vld [vmem:[#allocation12 + $0x30] sm:$0xff]
    %v1615 = vld [vmem:[#allocation12 + $0x38] sm:$0xff]
    %v1616 = vld [vmem:[#allocation12 + $0x40] sm:$0xff]
    %v1617 = vld [vmem:[#allocation12 + $0x48] sm:$0xff]
    %v1618 = vld [vmem:[#allocation12 + $0x50] sm:$0xff]
    %v1619 = vld [vmem:[#allocation12 + $0x58] sm:$0xff]
    %v1620 = vld [vmem:[#allocation12 + $0x60] sm:$0xff]
    %v1621 = vld [vmem:[#allocation12 + $0x68] sm:$0xff]
    %v1622 = vld [vmem:[#allocation12 + $0x70] sm:$0xff]
    %v1623 = vld [vmem:[#allocation12 + $0x78] sm:$0xff]
    %v1624 = vld [vmem:[#allocation12 + $0x80] sm:$0xff]
    %v1625 = vld [vmem:[#allocation12 + $0x88] sm:$0xff]
    %v1626 = vld [vmem:[#allocation12 + $0x90] sm:$0xff]
    %v1627 = vld [vmem:[#allocation12 + $0x98] sm:$0xff]
    %v1628 = vld [vmem:[#allocation12 + $0xa0] sm:$0xff]
    %v1629 = vld [vmem:[#allocation12 + $0xa8] sm:$0xff]
    %v1630 = vld [vmem:[#allocation12 + $0xb0] sm:$0xff]
    %v1631 = vld [vmem:[#allocation12 + $0xb8] sm:$0xff]
    %v1632 = vld [vmem:[#allocation12 + $0xc0] sm:$0xff]
    %v1633 = vld [vmem:[#allocation12 + $0xc8] sm:$0xff]
    %v1634 = vld [vmem:[#allocation12 + $0xd0] sm:$0xff]
    %v1635 = vld [vmem:[#allocation12 + $0xd8] sm:$0xff]
    %v1636 = vld [vmem:[#allocation12 + $0xe0] sm:$0xff]
    %v1637 = vld [vmem:[#allocation12 + $0xe8] sm:$0xff]
    %v1638 = vld [vmem:[#allocation12 + $0xf0] sm:$0xff]
    %v1639 = vld [vmem:[#allocation12 + $0xf8] sm:$0xff]
    %1640 = vmatprep.subr.mxu0 %v1609
    %1641 = vmatpush1.msra.mxu0 %v1608
    %1642 = vmatprep.subr.mxu0 %v1611
    %1643 = vmatpush1.msra.mxu0 %v1610
    %1644 = vmatprep.subr.mxu0 %v1613
    %1645 = vmatpush1.msra.mxu0 %v1612
    %1646 = vmatprep.subr.mxu0 %v1615
    %1647 = vmatpush1.msra.mxu0 %v1614
    %1648 = vmatprep.subr.mxu0 %v1617
    %1649 = vmatpush1.msra.mxu0 %v1616
    %1650 = vmatprep.subr.mxu0 %v1619
    %1651 = vmatpush1.msra.mxu0 %v1618
    %1652 = vmatprep.subr.mxu0 %v1621
    %1653 = vmatpush1.msra.mxu0 %v1620
    %1654 = vmatprep.subr.mxu0 %v1623
    %1655 = vmatpush1.msra.mxu0 %v1622
    %1656 = vmatprep.subr.mxu0 %v1625
    %1657 = vmatpush1.msra.mxu0 %v1624
    %1658 = vmatprep.subr.mxu0 %v1627
    %1659 = vmatpush1.msra.mxu0 %v1626
    %1660 = vmatprep.subr.mxu0 %v1629
    %1661 = vmatpush1.msra.mxu0 %v1628
    %1662 = vmatprep.subr.mxu0 %v1631
    %1663 = vmatpush1.msra.mxu0 %v1630
    %1664 = vmatprep.subr.mxu0 %v1633
    %1665 = vmatpush1.msra.mxu0 %v1632
    %1666 = vmatprep.subr.mxu0 %v1635
    %1667 = vmatpush1.msra.mxu0 %v1634
    %1668 = vmatprep.subr.mxu0 %v1637
    %1669 = vmatpush1.msra.mxu0 %v1636
    %1670 = vmatprep.subr.mxu0 %v1639
    %1671 = vmatpush1.msra.mxu0 %v1638
    %1672 = vmatprep.subr.mxu0 0.0
    %1673 = vmatpush1.msra.mxu0 0.0
    %1674 = vmatprep.subr.mxu0 0.0
    %1675 = vmatpush1.msra.mxu0 0.0
    %1676 = vmatprep.subr.mxu0 0.0
    %1677 = vmatpush1.msra.mxu0 0.0
    %1678 = vmatprep.subr.mxu0 0.0
    %1679 = vmatpush1.msra.mxu0 0.0
    %1680 = vmatprep.subr.mxu0 0.0
    %1681 = vmatpush1.msra.mxu0 0.0
    %1682 = vmatprep.subr.mxu0 0.0
    %1683 = vmatpush1.msra.mxu0 0.0
    %1684 = vmatprep.subr.mxu0 0.0
    %1685 = vmatpush1.msra.mxu0 0.0
    %1686 = vmatprep.subr.mxu0 0.0
    %1687 = vmatpush1.msra.mxu0 0.0
    %1688 = vmatprep.subr.mxu0 0.0
    %1689 = vmatpush1.msra.mxu0 0.0
    %1690 = vmatprep.subr.mxu0 0.0
    %1691 = vmatpush1.msra.mxu0 0.0
    %1692 = vmatprep.subr.mxu0 0.0
    %1693 = vmatpush1.msra.mxu0 0.0
    %1694 = vmatprep.subr.mxu0 0.0
    %1695 = vmatpush1.msra.mxu0 0.0
    %1696 = vmatprep.subr.mxu0 0.0
    %1697 = vmatpush1.msra.mxu0 0.0
    %1698 = vmatprep.subr.mxu0 0.0
    %1699 = vmatpush1.msra.mxu0 0.0
    %1700 = vmatprep.subr.mxu0 0.0
    %1701 = vmatpush1.msra.mxu0 0.0
    %1702 = vmatprep.subr.mxu0 0.0
    %1703 = vmatpush1.msra.mxu0 0.0
    %1704 = vmatprep.mubr.f32.mxu0 0.0
    %1705 = vmatmul.mubr.f32.gmra.mrb[0].mxu0 %v1607
    %v1706 = vpop.f32.mrb[0].mxu0
    %v1707 = vadd.f32 0.0, %v1706
    %v1708 = vpop.f32.mrb[0].mxu0
    %v1709 = vadd.f32 0.0, %v1708
    %1710 = vdwg.mxu0
    %v1711 = vadd.f32 %v1604, %v1707
    %v1712 = vxor.u32 %v1711, 2147483648
    %v1713 = vmul.f32 %v1712, 1.442695
    %v1714 = vpow.pop %v1713
    %v1715 = vadd.f32 %v1714, 1.0
    %v1716 = vrcp.pop %v1715
    %v1717 = vmul.f32 1.0, %v1716
    %v1718 = vadd.f32 %v1709, %v578
    %v1719 = vmul.f32 %v1717, %v1718
    %v1720 = vadd.f32 %v1605, %v1719
    %v1721 = vtanh.pop %v1720
    %v1722 = vmul.f32 %v1606, %v1721
    %v1723 = vsub.f32 1.0, %v1606
    %v1724 = vmul.f32 %v1723, %v1607
    %v1725 = vadd.f32 %v1722, %v1724
    %1726 = vst [vmem:[#allocation5] sm:$0xff] %v1725
    %s1727 = smul.addr %s844, 8
    %s1728 = scalar_lea.vmem [#allocation3], %s1727
    %v1729 = vld [vmem:[%s1728] sm:$0xff]
    %v1730 = vld [vmem:[%s1728 + $0x8] sm:$0xff]
    %v1731 = vld [vmem:[%s849] sm:$0xff]
    %v1732 = vld [vmem:[#allocation6] sm:$0xff]
    %v1733 = vld [vmem:[#allocation15] sm:$0xff]
    %v1734 = vld [vmem:[#allocation15 + $0x8] sm:$0xff]
    %v1735 = vld [vmem:[#allocation15 + $0x10] sm:$0xff]
    %v1736 = vld [vmem:[#allocation15 + $0x18] sm:$0xff]
    %v1737 = vld [vmem:[#allocation15 + $0x20] sm:$0xff]
    %v1738 = vld [vmem:[#allocation15 + $0x28] sm:$0xff]
    %v1739 = vld [vmem:[#allocation15 + $0x30] sm:$0xff]
    %v1740 = vld [vmem:[#allocation15 + $0x38] sm:$0xff]
    %v1741 = vld [vmem:[#allocation15 + $0x40] sm:$0xff]
    %v1742 = vld [vmem:[#allocation15 + $0x48] sm:$0xff]
    %v1743 = vld [vmem:[#allocation15 + $0x50] sm:$0xff]
    %v1744 = vld [vmem:[#allocation15 + $0x58] sm:$0xff]
    %v1745 = vld [vmem:[#allocation15 + $0x60] sm:$0xff]
    %v1746 = vld [vmem:[#allocation15 + $0x68] sm:$0xff]
    %v1747 = vld [vmem:[#allocation15 + $0x70] sm:$0xff]
    %v1748 = vld [vmem:[#allocation15 + $0x78] sm:$0xff]
    %v1749 = vld [vmem:[#allocation15 + $0x80] sm:$0xff]
    %v1750 = vld [vmem:[#allocation15 + $0x88] sm:$0xff]
    %v1751 = vld [vmem:[#allocation15 + $0x90] sm:$0xff]
    %v1752 = vld [vmem:[#allocation15 + $0x98] sm:$0xff]
    %v1753 = vld [vmem:[#allocation15 + $0xa0] sm:$0xff]
    %v1754 = vld [vmem:[#allocation15 + $0xa8] sm:$0xff]
    %v1755 = vld [vmem:[#allocation15 + $0xb0] sm:$0xff]
    %v1756 = vld [vmem:[#allocation15 + $0xb8] sm:$0xff]
    %v1757 = vld [vmem:[#allocation15 + $0xc0] sm:$0xff]
    %v1758 = vld [vmem:[#allocation15 + $0xc8] sm:$0xff]
    %v1759 = vld [vmem:[#allocation15 + $0xd0] sm:$0xff]
    %v1760 = vld [vmem:[#allocation15 + $0xd8] sm:$0xff]
    %v1761 = vld [vmem:[#allocation15 + $0xe0] sm:$0xff]
    %v1762 = vld [vmem:[#allocation15 + $0xe8] sm:$0xff]
    %v1763 = vld [vmem:[#allocation15 + $0xf0] sm:$0xff]
    %v1764 = vld [vmem:[#allocation15 + $0xf8] sm:$0xff]
    %1765 = vmatprep.subr.mxu0 %v1734
    %1766 = vmatpush1.msra.mxu0 %v1733
    %1767 = vmatprep.subr.mxu0 %v1736
    %1768 = vmatpush1.msra.mxu0 %v1735
    %1769 = vmatprep.subr.mxu0 %v1738
    %1770 = vmatpush1.msra.mxu0 %v1737
    %1771 = vmatprep.subr.mxu0 %v1740
    %1772 = vmatpush1.msra.mxu0 %v1739
    %1773 = vmatprep.subr.mxu0 %v1742
    %1774 = vmatpush1.msra.mxu0 %v1741
    %1775 = vmatprep.subr.mxu0 %v1744
    %1776 = vmatpush1.msra.mxu0 %v1743
    %1777 = vmatprep.subr.mxu0 %v1746
    %1778 = vmatpush1.msra.mxu0 %v1745
    %1779 = vmatprep.subr.mxu0 %v1748
    %1780 = vmatpush1.msra.mxu0 %v1747
    %1781 = vmatprep.subr.mxu0 %v1750
    %1782 = vmatpush1.msra.mxu0 %v1749
    %1783 = vmatprep.subr.mxu0 %v1752
    %1784 = vmatpush1.msra.mxu0 %v1751
    %1785 = vmatprep.subr.mxu0 %v1754
    %1786 = vmatpush1.msra.mxu0 %v1753
    %1787 = vmatprep.subr.mxu0 %v1756
    %1788 = vmatpush1.msra.mxu0 %v1755
    %1789 = vmatprep.subr.mxu0 %v1758
    %1790 = vmatpush1.msra.mxu0 %v1757
    %1791 = vmatprep.subr.mxu0 %v1760
    %1792 = vmatpush1.msra.mxu0 %v1759
    %1793 = vmatprep.subr.mxu0 %v1762
    %1794 = vmatpush1.msra.mxu0 %v1761
    %1795 = vmatprep.subr.mxu0 %v1764
    %1796 = vmatpush1.msra.mxu0 %v1763
    %1797 = vmatprep.subr.mxu0 0.0
    %1798 = vmatpush1.msra.mxu0 0.0
    %1799 = vmatprep.subr.mxu0 0.0
    %1800 = vmatpush1.msra.mxu0 0.0
    %1801 = vmatprep.subr.mxu0 0.0
    %1802 = vmatpush1.msra.mxu0 0.0
    %1803 = vmatprep.subr.mxu0 0.0
    %1804 = vmatpush1.msra.mxu0 0.0
    %1805 = vmatprep.subr.mxu0 0.0
    %1806 = vmatpush1.msra.mxu0 0.0
    %1807 = vmatprep.subr.mxu0 0.0
    %1808 = vmatpush1.msra.mxu0 0.0
    %1809 = vmatprep.subr.mxu0 0.0
    %1810 = vmatpush1.msra.mxu0 0.0
    %1811 = vmatprep.subr.mxu0 0.0
    %1812 = vmatpush1.msra.mxu0 0.0
    %1813 = vmatprep.subr.mxu0 0.0
    %1814 = vmatpush1.msra.mxu0 0.0
    %1815 = vmatprep.subr.mxu0 0.0
    %1816 = vmatpush1.msra.mxu0 0.0
    %1817 = vmatprep.subr.mxu0 0.0
    %1818 = vmatpush1.msra.mxu0 0.0
    %1819 = vmatprep.subr.mxu0 0.0
    %1820 = vmatpush1.msra.mxu0 0.0
    %1821 = vmatprep.subr.mxu0 0.0
    %1822 = vmatpush1.msra.mxu0 0.0
    %1823 = vmatprep.subr.mxu0 0.0
    %1824 = vmatpush1.msra.mxu0 0.0
    %1825 = vmatprep.subr.mxu0 0.0
    %1826 = vmatpush1.msra.mxu0 0.0
    %1827 = vmatprep.subr.mxu0 0.0
    %1828 = vmatpush1.msra.mxu0 0.0
    %1829 = vmatprep.mubr.f32.mxu0 0.0
    %1830 = vmatmul.mubr.f32.gmra.mrb[0].mxu0 %v1732
    %v1831 = vpop.f32.mrb[0].mxu0
    %v1832 = vadd.f32 0.0, %v1831
    %v1833 = vpop.f32.mrb[0].mxu0
    %v1834 = vadd.f32 0.0, %v1833
    %1835 = vdwg.mxu0
    %v1836 = vadd.f32 %v1729, %v1832
    %v1837 = vxor.u32 %v1836, 2147483648
    %v1838 = vmul.f32 %v1837, 1.442695
    %v1839 = vpow.pop %v1838
    %v1840 = vadd.f32 %v1839, 1.0
    %v1841 = vrcp.pop %v1840
    %v1842 = vmul.f32 1.0, %v1841
    %v1843 = vadd.f32 %v1834, %v585
    %v1844 = vmul.f32 %v1842, %v1843
    %v1845 = vadd.f32 %v1730, %v1844
    %v1846 = vtanh.pop %v1845
    %v1847 = vmul.f32 %v1731, %v1846
    %v1848 = vsub.f32 1.0, %v1731
    %v1849 = vmul.f32 %v1848, %v1732
    %v1850 = vadd.f32 %v1847, %v1849
    %1851 = vst [vmem:[#allocation6] sm:$0xff] %v1850
    %s1852 = smul.addr %s717, 8
    %s1853 = scalar_lea.vmem [#allocation2], %s1852
    %v1854 = vld [vmem:[%s1853] sm:$0xff]
    %v1855 = vld [vmem:[%s1853 + $0x8] sm:$0xff]
    %v1856 = vld [vmem:[%s722] sm:$0xff]
    %v1857 = vld [vmem:[#allocation5] sm:$0xff]
    %v1858 = vld [vmem:[#allocation12] sm:$0xff]
    %v1859 = vld [vmem:[#allocation12 + $0x8] sm:$0xff]
    %v1860 = vld [vmem:[#allocation12 + $0x10] sm:$0xff]
    %v1861 = vld [vmem:[#allocation12 + $0x18] sm:$0xff]
    %v1862 = vld [vmem:[#allocation12 + $0x20] sm:$0xff]
    %v1863 = vld [vmem:[#allocation12 + $0x28] sm:$0xff]
    %v1864 = vld [vmem:[#allocation12 + $0x30] sm:$0xff]
    %v1865 = vld [vmem:[#allocation12 + $0x38] sm:$0xff]
    %v1866 = vld [vmem:[#allocation12 + $0x40] sm:$0xff]
    %v1867 = vld [vmem:[#allocation12 + $0x48] sm:$0xff]
    %v1868 = vld [vmem:[#allocation12 + $0x50] sm:$0xff]
    %v1869 = vld [vmem:[#allocation12 + $0x58] sm:$0xff]
    %v1870 = vld [vmem:[#allocation12 + $0x60] sm:$0xff]
    %v1871 = vld [vmem:[#allocation12 + $0x68] sm:$0xff]
    %v1872 = vld [vmem:[#allocation12 + $0x70] sm:$0xff]
    %v1873 = vld [vmem:[#allocation12 + $0x78] sm:$0xff]
    %v1874 = vld [vmem:[#allocation12 + $0x80] sm:$0xff]
    %v1875 = vld [vmem:[#allocation12 + $0x88] sm:$0xff]
    %v1876 = vld [vmem:[#allocation12 + $0x90] sm:$0xff]
    %v1877 = vld [vmem:[#allocation12 + $0x98] sm:$0xff]
    %v1878 = vld [vmem:[#allocation12 + $0xa0] sm:$0xff]
    %v1879 = vld [vmem:[#allocation12 + $0xa8] sm:$0xff]
    %v1880 = vld [vmem:[#allocation12 + $0xb0] sm:$0xff]
    %v1881 = vld [vmem:[#allocation12 + $0xb8] sm:$0xff]
    %v1882 = vld [vmem:[#allocation12 + $0xc0] sm:$0xff]
    %v1883 = vld [vmem:[#allocation12 + $0xc8] sm:$0xff]
    %v1884 = vld [vmem:[#allocation12 + $0xd0] sm:$0xff]
    %v1885 = vld [vmem:[#allocation12 + $0xd8] sm:$0xff]
    %v1886 = vld [vmem:[#allocation12 + $0xe0] sm:$0xff]
    %v1887 = vld [vmem:[#allocation12 + $0xe8] sm:$0xff]
    %v1888 = vld [vmem:[#allocation12 + $0xf0] sm:$0xff]
    %v1889 = vld [vmem:[#allocation12 + $0xf8] sm:$0xff]
    %1890 = vmatprep.subr.mxu0 %v1859
    %1891 = vmatpush1.msra.mxu0 %v1858
    %1892 = vmatprep.subr.mxu0 %v1861
    %1893 = vmatpush1.msra.mxu0 %v1860
    %1894 = vmatprep.subr.mxu0 %v1863
    %1895 = vmatpush1.msra.mxu0 %v1862
    %1896 = vmatprep.subr.mxu0 %v1865
    %1897 = vmatpush1.msra.mxu0 %v1864
    %1898 = vmatprep.subr.mxu0 %v1867
    %1899 = vmatpush1.msra.mxu0 %v1866
    %1900 = vmatprep.subr.mxu0 %v1869
    %1901 = vmatpush1.msra.mxu0 %v1868
    %1902 = vmatprep.subr.mxu0 %v1871
    %1903 = vmatpush1.msra.mxu0 %v1870
    %1904 = vmatprep.subr.mxu0 %v1873
    %1905 = vmatpush1.msra.mxu0 %v1872
    %1906 = vmatprep.subr.mxu0 %v1875
    %1907 = vmatpush1.msra.mxu0 %v1874
    %1908 = vmatprep.subr.mxu0 %v1877
    %1909 = vmatpush1.msra.mxu0 %v1876
    %1910 = vmatprep.subr.mxu0 %v1879
    %1911 = vmatpush1.msra.mxu0 %v1878
    %1912 = vmatprep.subr.mxu0 %v1881
    %1913 = vmatpush1.msra.mxu0 %v1880
    %1914 = vmatprep.subr.mxu0 %v1883
    %1915 = vmatpush1.msra.mxu0 %v1882
    %1916 = vmatprep.subr.mxu0 %v1885
    %1917 = vmatpush1.msra.mxu0 %v1884
    %1918 = vmatprep.subr.mxu0 %v1887
    %1919 = vmatpush1.msra.mxu0 %v1886
    %1920 = vmatprep.subr.mxu0 %v1889
    %1921 = vmatpush1.msra.mxu0 %v1888
    %1922 = vmatprep.subr.mxu0 0.0
    %1923 = vmatpush1.msra.mxu0 0.0
    %1924 = vmatprep.subr.mxu0 0.0
    %1925 = vmatpush1.msra.mxu0 0.0
    %1926 = vmatprep.subr.mxu0 0.0
    %1927 = vmatpush1.msra.mxu0 0.0
    %1928 = vmatprep.subr.mxu0 0.0
    %1929 = vmatpush1.msra.mxu0 0.0
    %1930 = vmatprep.subr.mxu0 0.0
    %1931 = vmatpush1.msra.mxu0 0.0
    %1932 = vmatprep.subr.mxu0 0.0
    %1933 = vmatpush1.msra.mxu0 0.0
    %1934 = vmatprep.subr.mxu0 0.0
    %1935 = vmatpush1.msra.mxu0 0.0
    %1936 = vmatprep.subr.mxu0 0.0
    %1937 = vmatpush1.msra.mxu0 0.0
    %1938 = vmatprep.subr.mxu0 0.0
    %1939 = vmatpush1.msra.mxu0 0.0
    %1940 = vmatprep.subr.mxu0 0.0
    %1941 = vmatpush1.msra.mxu0 0.0
    %1942 = vmatprep.subr.mxu0 0.0
    %1943 = vmatpush1.msra.mxu0 0.0
    %1944 = vmatprep.subr.mxu0 0.0
    %1945 = vmatpush1.msra.mxu0 0.0
    %1946 = vmatprep.subr.mxu0 0.0
    %1947 = vmatpush1.msra.mxu0 0.0
    %1948 = vmatprep.subr.mxu0 0.0
    %1949 = vmatpush1.msra.mxu0 0.0
    %1950 = vmatprep.subr.mxu0 0.0
    %1951 = vmatpush1.msra.mxu0 0.0
    %1952 = vmatprep.subr.mxu0 0.0
    %1953 = vmatpush1.msra.mxu0 0.0
    %1954 = vmatprep.mubr.f32.mxu0 0.0
    %1955 = vmatmul.mubr.f32.gmra.mrb[0].mxu0 %v1857
    %v1956 = vpop.f32.mrb[0].mxu0
    %v1957 = vadd.f32 0.0, %v1956
    %v1958 = vpop.f32.mrb[0].mxu0
    %v1959 = vadd.f32 0.0, %v1958
    %1960 = vdwg.mxu0
    %v1961 = vadd.f32 %v1854, %v1957
    %v1962 = vxor.u32 %v1961, 2147483648
    %v1963 = vmul.f32 %v1962, 1.442695
    %v1964 = vpow.pop %v1963
    %v1965 = vadd.f32 %v1964, 1.0
    %v1966 = vrcp.pop %v1965
    %v1967 = vmul.f32 1.0, %v1966
    %v1968 = vadd.f32 %v1959, %v578
    %v1969 = vmul.f32 %v1967, %v1968
    %v1970 = vadd.f32 %v1855, %v1969
    %v1971 = vtanh.pop %v1970
    %v1972 = vmul.f32 %v1856, %v1971
    %v1973 = vsub.f32 1.0, %v1856
    %v1974 = vmul.f32 %v1973, %v1857
    %v1975 = vadd.f32 %v1972, %v1974
    %1976 = vst [vmem:[#allocation5] sm:$0xff] %v1975
    %s1977 = smul.addr %s591, 8
    %s1978 = scalar_lea.vmem [#allocation3], %s1977
    %v1979 = vld [vmem:[%s1978] sm:$0xff]
    %v1980 = vld [vmem:[%s1978 + $0x8] sm:$0xff]
    %v1981 = vld [vmem:[#allocation4] sm:$0xff]
    %v1982 = vld [vmem:[#allocation6] sm:$0xff]
    %v1983 = vld [vmem:[#allocation15] sm:$0xff]
    %v1984 = vld [vmem:[#allocation15 + $0x8] sm:$0xff]
    %v1985 = vld [vmem:[#allocation15 + $0x10] sm:$0xff]
    %v1986 = vld [vmem:[#allocation15 + $0x18] sm:$0xff]
    %v1987 = vld [vmem:[#allocation15 + $0x20] sm:$0xff]
    %v1988 = vld [vmem:[#allocation15 + $0x28] sm:$0xff]
    %v1989 = vld [vmem:[#allocation15 + $0x30] sm:$0xff]
    %v1990 = vld [vmem:[#allocation15 + $0x38] sm:$0xff]
    %v1991 = vld [vmem:[#allocation15 + $0x40] sm:$0xff]
    %v1992 = vld [vmem:[#allocation15 + $0x48] sm:$0xff]
    %v1993 = vld [vmem:[#allocation15 + $0x50] sm:$0xff]
    %v1994 = vld [vmem:[#allocation15 + $0x58] sm:$0xff]
    %v1995 = vld [vmem:[#allocation15 + $0x60] sm:$0xff]
    %v1996 = vld [vmem:[#allocation15 + $0x68] sm:$0xff]
    %v1997 = vld [vmem:[#allocation15 + $0x70] sm:$0xff]
    %v1998 = vld [vmem:[#allocation15 + $0x78] sm:$0xff]
    %v1999 = vld [vmem:[#allocation15 + $0x80] sm:$0xff]
    %v2000 = vld [vmem:[#allocation15 + $0x88] sm:$0xff]
    %v2001 = vld [vmem:[#allocation15 + $0x90] sm:$0xff]
    %v2002 = vld [vmem:[#allocation15 + $0x98] sm:$0xff]
    %v2003 = vld [vmem:[#allocation15 + $0xa0] sm:$0xff]
    %v2004 = vld [vmem:[#allocation15 + $0xa8] sm:$0xff]
    %v2005 = vld [vmem:[#allocation15 + $0xb0] sm:$0xff]
    %v2006 = vld [vmem:[#allocation15 + $0xb8] sm:$0xff]
    %v2007 = vld [vmem:[#allocation15 + $0xc0] sm:$0xff]
    %v2008 = vld [vmem:[#allocation15 + $0xc8] sm:$0xff]
    %v2009 = vld [vmem:[#allocation15 + $0xd0] sm:$0xff]
    %v2010 = vld [vmem:[#allocation15 + $0xd8] sm:$0xff]
    %v2011 = vld [vmem:[#allocation15 + $0xe0] sm:$0xff]
    %v2012 = vld [vmem:[#allocation15 + $0xe8] sm:$0xff]
    %v2013 = vld [vmem:[#allocation15 + $0xf0] sm:$0xff]
    %v2014 = vld [vmem:[#allocation15 + $0xf8] sm:$0xff]
    %2015 = vmatprep.subr.mxu0 %v1984
    %2016 = vmatpush1.msra.mxu0 %v1983
    %2017 = vmatprep.subr.mxu0 %v1986
    %2018 = vmatpush1.msra.mxu0 %v1985
    %2019 = vmatprep.subr.mxu0 %v1988
    %2020 = vmatpush1.msra.mxu0 %v1987
    %2021 = vmatprep.subr.mxu0 %v1990
    %2022 = vmatpush1.msra.mxu0 %v1989
    %2023 = vmatprep.subr.mxu0 %v1992
    %2024 = vmatpush1.msra.mxu0 %v1991
    %2025 = vmatprep.subr.mxu0 %v1994
    %2026 = vmatpush1.msra.mxu0 %v1993
    %2027 = vmatprep.subr.mxu0 %v1996
    %2028 = vmatpush1.msra.mxu0 %v1995
    %2029 = vmatprep.subr.mxu0 %v1998
    %2030 = vmatpush1.msra.mxu0 %v1997
    %2031 = vmatprep.subr.mxu0 %v2000
    %2032 = vmatpush1.msra.mxu0 %v1999
    %2033 = vmatprep.subr.mxu0 %v2002
    %2034 = vmatpush1.msra.mxu0 %v2001
    %2035 = vmatprep.subr.mxu0 %v2004
    %2036 = vmatpush1.msra.mxu0 %v2003
    %2037 = vmatprep.subr.mxu0 %v2006
    %2038 = vmatpush1.msra.mxu0 %v2005
    %2039 = vmatprep.subr.mxu0 %v2008
    %2040 = vmatpush1.msra.mxu0 %v2007
    %2041 = vmatprep.subr.mxu0 %v2010
    %2042 = vmatpush1.msra.mxu0 %v2009
    %2043 = vmatprep.subr.mxu0 %v2012
    %2044 = vmatpush1.msra.mxu0 %v2011
    %2045 = vmatprep.subr.mxu0 %v2014
    %2046 = vmatpush1.msra.mxu0 %v2013
    %2047 = vmatprep.subr.mxu0 0.0
    %2048 = vmatpush1.msra.mxu0 0.0
    %2049 = vmatprep.subr.mxu0 0.0
    %2050 = vmatpush1.msra.mxu0 0.0
    %2051 = vmatprep.subr.mxu0 0.0
    %2052 = vmatpush1.msra.mxu0 0.0
    %2053 = vmatprep.subr.mxu0 0.0
    %2054 = vmatpush1.msra.mxu0 0.0
    %2055 = vmatprep.subr.mxu0 0.0
    %2056 = vmatpush1.msra.mxu0 0.0
    %2057 = vmatprep.subr.mxu0 0.0
    %2058 = vmatpush1.msra.mxu0 0.0
    %2059 = vmatprep.subr.mxu0 0.0
    %2060 = vmatpush1.msra.mxu0 0.0
    %2061 = vmatprep.subr.mxu0 0.0
    %2062 = vmatpush1.msra.mxu0 0.0
    %2063 = vmatprep.subr.mxu0 0.0
    %2064 = vmatpush1.msra.mxu0 0.0
    %2065 = vmatprep.subr.mxu0 0.0
    %2066 = vmatpush1.msra.mxu0 0.0
    %2067 = vmatprep.subr.mxu0 0.0
    %2068 = vmatpush1.msra.mxu0 0.0
    %2069 = vmatprep.subr.mxu0 0.0
    %2070 = vmatpush1.msra.mxu0 0.0
    %2071 = vmatprep.subr.mxu0 0.0
    %2072 = vmatpush1.msra.mxu0 0.0
    %2073 = vmatprep.subr.mxu0 0.0
    %2074 = vmatpush1.msra.mxu0 0.0
    %2075 = vmatprep.subr.mxu0 0.0
    %2076 = vmatpush1.msra.mxu0 0.0
    %2077 = vmatprep.subr.mxu0 0.0
    %2078 = vmatpush1.msra.mxu0 0.0
    %2079 = vmatprep.mubr.f32.mxu0 0.0
    %2080 = vmatmul.mubr.f32.gmra.mrb[0].mxu0 %v1982
    %v2081 = vpop.f32.mrb[0].mxu0
    %v2082 = vadd.f32 0.0, %v2081
    %v2083 = vpop.f32.mrb[0].mxu0
    %v2084 = vadd.f32 0.0, %v2083
    %2085 = vdwg.mxu0
    %v2086 = vadd.f32 %v1979, %v2082
    %v2087 = vxor.u32 %v2086, 2147483648
    %v2088 = vmul.f32 %v2087, 1.442695
    %v2089 = vpow.pop %v2088
    %v2090 = vadd.f32 %v2089, 1.0
    %v2091 = vrcp.pop %v2090
    %v2092 = vmul.f32 1.0, %v2091
    %v2093 = vadd.f32 %v2084, %v585
    %v2094 = vmul.f32 %v2092, %v2093
    %v2095 = vadd.f32 %v1980, %v2094
    %v2096 = vtanh.pop %v2095
    %v2097 = vmul.f32 %v1981, %v2096
    %v2098 = vsub.f32 1.0, %v1981
    %v2099 = vmul.f32 %v2098, %v1982
    %v2100 = vadd.f32 %v2097, %v2099
    %2101 = vst [vmem:[#allocation6] sm:$0xff] %v2100
    %v2102 = vld [vmem:[#allocation5] sm:$0xff]
    %2103 = vst [vmem:[#allocation16] sm:$0xff] %v2102
    %v2104 = vld [vmem:[#allocation6] sm:$0xff]
    %2105 = vst [vmem:[#allocation17] sm:$0xff] %v2104
    // Predicated region
    $region78: #{tpu_custom_call.1} parent=1 // pred_check
      _
    $region79: #{tpu_custom_call.1} parent=1 // pred_check_branch
      %2107 = sbr.rel (0) target = $region81
    $region80: #{tpu_custom_call.1} parent=1 // pred_region
      %s2109 = ssub.s32 128, 128
      %2110 = vsyncadd [#allocation9], %s2109
      %s2112 = sshll.u32 [#allocation16], 4
      %s2113 = int_to_ptr.vmem [resolvable:$true] %s2112
      %2115 = dma.vmem_to_hbm [thread:$0]  %s2113, 128, %s14, [#allocation9]
    $region81: #{tpu_custom_call.1} parent=1 // pred_fallthru
      _
    // Predicated region
    $region82: #{tpu_custom_call.1} parent=1 // pred_check
      _
    $region83: #{tpu_custom_call.1} parent=1 // pred_check_branch
      %2117 = sbr.rel (0) target = $region85
    $region84: #{tpu_custom_call.1} parent=1 // pred_region
      %s2119 = ssub.s32 128, 128
      %2120 = vsyncadd [#allocation18], %s2119
      %s2122 = sshll.u32 [#allocation17], 4
      %s2123 = int_to_ptr.vmem [resolvable:$true] %s2122
      %2125 = dma.vmem_to_hbm [thread:$0]  %s2123, 128, %s15, [#allocation18]
    $region85: #{tpu_custom_call.1} parent=1 // pred_fallthru
      _
    // Predicated region
    $region86: #{tpu_custom_call.1} parent=1 // pred_check
      _
    $region87: #{tpu_custom_call.1} parent=1 // pred_check_branch
      %2127 = sbr.rel (0) target = $region89
    $region88: #{tpu_custom_call.1} parent=1 // pred_region
      _
    $region89: #{tpu_custom_call.1} parent=1 // pred_fallthru
      _
    // Predicated region
    $region90: #{tpu_custom_call.1} parent=1 // pred_check
      _
    $region91: #{tpu_custom_call.1} parent=1 // pred_check_branch
      %2129 = sbr.rel (0) target = $region93
    $region92: #{tpu_custom_call.1} parent=1 // pred_region
      %2130 = dma.done [#allocation9], 128
    $region93: #{tpu_custom_call.1} parent=1 // pred_fallthru
      _
    // Predicated region
    $region94: #{tpu_custom_call.1} parent=1 // pred_check
      _
    $region95: #{tpu_custom_call.1} parent=1 // pred_check_branch
      %2132 = sbr.rel (0) target = $region97
    $region96: #{tpu_custom_call.1} parent=1 // pred_region
      %2133 = dma.done [#allocation18], 128
    $region97: #{tpu_custom_call.1} parent=1 // pred_fallthru
      _
    // Predicated region
    $region98: #{tpu_custom_call.1} parent=1 // pred_check
      _
    $region99: #{tpu_custom_call.1} parent=1 // pred_check_branch
      %2135 = sbr.rel (0) target = $region101
    $region100: #{tpu_custom_call.1} parent=1 // pred_region
      _
    $region101: #{tpu_custom_call.1} parent=1 // pred_fallthru
      _
    %2136 = vsyncpa [#allocation8], 1
    %2137 = vsyncpa [#allocation11], 1
    %2138 = vsyncpa [#allocation14], 1
    %2139 = vsyncpa [#allocation9], 1
    %2140 = vsyncpa [#allocation18], 1

</llo_original>
